<compile_context>
chip_gen: v7x
topology: tpu7x:2x2x1
jax: 0.10.0
libtpu: 0.0.40
codegen_flags: <defaults>
</compile_context>

<pallas_src>
import functools

import numpy as np
import jax
import jax.numpy as jnp
from jax.experimental import pallas as pl
from jax.experimental.pallas import tpu as pltpu

VMEM_SPEC = pl.BlockSpec(memory_space=pltpu.MemorySpace.VMEM)
_COMPILER_PARAMS_GRID = pltpu.CompilerParams(
    dimension_semantics=("parallel",), vmem_limit_bytes=32 * 1024 * 1024)
_COMPILER_PARAMS_FLAT = pltpu.CompilerParams(vmem_limit_bytes=32 * 1024 * 1024)


# ----------------------------------------------------------------------------
# Pallas kernels
# ----------------------------------------------------------------------------
def _enc_block_kernel(x_ref, d_ref, b_ref, o_ref, acc_ref):
    """Fused Conv2d(3x3, same) + ReLU + MaxPool(2x2).

    x_ref:  (1, Hp, 2*W*Cin)  bf16  -- row-pairs packed on lanes
    d_ref:  (8, 2*W*Cin, Wo*Cout) bf16 -- banded conv+pool-selection matrices
    b_ref:  (1, Wo*Cout) f32
    o_ref:  (1, Hp, Wo*Cout)
    acc:    (4, Hp, Wo*Cout) f32 -- one accumulator per 2x2 pool-window position
    """
    X = x_ref[0]                                   # (Hp, K) bf16
    Hp = X.shape[0]

    def mm(a, m):
        return jnp.dot(a, d_ref[m], preferred_element_type=jnp.float32)

    Xp = X[0:Hp - 1, :]                            # feeds rows 1..Hp-1 ("prev" taps)
    Xn = X[1:Hp, :]                                # feeds rows 0..Hp-2 ("next" taps)

    # pool window position (r=row parity, q=col parity) accumulators
    acc_ref[0] = mm(X, 0)                          # (r=0, q=0)
    acc_ref[0, 1:Hp, :] += mm(Xp, 1)
    acc_ref[1] = mm(X, 2)                          # (r=0, q=1)
    acc_ref[1, 1:Hp, :] += mm(Xp, 3)
    acc_ref[2] = mm(X, 4)                          # (r=1, q=0)
    acc_ref[2, 0:Hp - 1, :] += mm(Xn, 5)
    acc_ref[3] = mm(X, 6)                          # (r=1, q=1)
    acc_ref[3, 0:Hp - 1, :] += mm(Xn, 7)

    # max over the 2x2 window, then bias + ReLU (commutes with max: both monotone)
    y = jnp.maximum(jnp.maximum(acc_ref[0], acc_ref[1]),
                    jnp.maximum(acc_ref[2], acc_ref[3])) + b_ref[...]
    o_ref[0] = jnp.maximum(y, 0.0).astype(o_ref.dtype)


def _dec_block_kernel(x_ref, e_ref, b_ref, o_ref, acc_ref, *, act):
    """Fused ConvTranspose2d(3x3, stride 2, pad 1, output_pad 1) + bias + act
    via sub-pixel decomposition (even / odd output rows computed separately).

    x_ref: (1, H, W*I) bf16   e_ref: (3, W*I, 2*W*O) bf16   b_ref: (1, 2*W*O) f32
    o_ref: (1, 2, H, 2*W*O)   -- [row parity, packed row];  acc: (H, 2*W*O) f32
    """
    X = x_ref[0]                                   # (H, K) bf16
    H = X.shape[0]

    def mm(a, m):
        return jnp.dot(a, e_ref[m], preferred_element_type=jnp.float32)

    even = mm(X, 0) + b_ref[...]                   # even output rows: only input row h
    acc_ref[...] = mm(X, 1)                        # odd rows: input row h ...
    acc_ref[0:H - 1, :] += mm(X[1:H, :], 2)        # ... plus input row h+1 (boundary-safe)
    odd = acc_ref[...] + b_ref[...]

    if act == "relu":
        even = jnp.maximum(even, 0.0)
        odd = jnp.maximum(odd, 0.0)
    else:                                          # fused final nn.Sigmoid
        even = jax.nn.sigmoid(even)
        odd = jax.nn.sigmoid(odd)

    o_ref[0, 0] = even.astype(o_ref.dtype)
    o_ref[0, 1] = odd.astype(o_ref.dtype)


def _head_kernel(flat_ref, eps_ref, wmu_ref, bmu_ref, wlv_ref, blv_ref,
                 wup_ref, bup_ref, mu_ref, lv_ref, up_ref):
    """Fused mu_head + logvar_head + reparameterize + up_proj."""
    flat = flat_ref[...]                                               # (B, F) bf16
    mu = jnp.dot(flat, wmu_ref[...], preferred_element_type=jnp.float32) + bmu_ref[...]
    lv = jnp.dot(flat, wlv_ref[...], preferred_element_type=jnp.float32) + blv_ref[...]
    mu_ref[...] = mu
    lv_ref[...] = lv
    # reference forward: eps = torch.rand_like(logvar); z = mu + eps * logvar.exp()
    z = (mu + eps_ref[...] * jnp.exp(lv)).astype(wup_ref.dtype)
    up = jnp.dot(z, wup_ref[...], preferred_element_type=jnp.float32) + bup_ref[...]
    up_ref[...] = up.astype(up_ref.dtype)


# ----------------------------------------------------------------------------
# pallas_call wrappers
# ----------------------------------------------------------------------------
def enc_block(x_packed, d_mats, bias_row):
    B, Hp, K = x_packed.shape
    N = d_mats.shape[-1]
    return pl.pallas_call(
        _enc_block_kernel,
        out_shape=jax.ShapeDtypeStruct((B, Hp, N), jnp.bfloat16),
        grid_spec=pltpu.PrefetchScalarGridSpec(
            num_scalar_prefetch=0,
            grid=(B,),
            in_specs=[
                pl.BlockSpec((1, Hp, K), lambda b: (b, 0, 0)),
                pl.BlockSpec((8, K, N), lambda b: (0, 0, 0)),
                pl.BlockSpec((1, N), lambda b: (0, 0)),
            ],
            out_specs=pl.BlockSpec((1, Hp, N), lambda b: (b, 0, 0)),
            scratch_shapes=[pltpu.VMEM((4, Hp, N), jnp.float32)],
        ),
        compiler_params=_COMPILER_PARAMS_GRID,
    )(x_packed, d_mats, bias_row)


def dec_block(x_packed, e_mats, bias_row, *, act, out_dtype):
    B, H, K = x_packed.shape
    N2 = e_mats.shape[-1]
    kernel = functools.partial(_dec_block_kernel, act=act)
    return pl.pallas_call(
        kernel,
        out_shape=jax.ShapeDtypeStruct((B, 2, H, N2), out_dtype),
        grid_spec=pltpu.PrefetchScalarGridSpec(
            num_scalar_prefetch=0,
            grid=(B,),
            in_specs=[
                pl.BlockSpec((1, H, K), lambda b: (b, 0, 0)),
                pl.BlockSpec((3, K, N2), lambda b: (0, 0, 0)),
                pl.BlockSpec((1, N2), lambda b: (0, 0)),
            ],
            out_specs=pl.BlockSpec((1, 2, H, N2), lambda b: (b, 0, 0, 0)),
            scratch_shapes=[pltpu.VMEM((H, N2), jnp.float32)],
        ),
        compiler_params=_COMPILER_PARAMS_GRID,
    )(x_packed, e_mats, bias_row)


def fc_head(flat, eps, wmu, bmu, wlv, blv, wup, bup):
    B, F = flat.shape
    L = wmu.shape[1]
    return pl.pallas_call(
        _head_kernel,
        out_shape=(jax.ShapeDtypeStruct((B, L), jnp.float32),
                   jax.ShapeDtypeStruct((B, L), jnp.float32),
                   jax.ShapeDtypeStruct((B, F), jnp.bfloat16)),
        in_specs=[VMEM_SPEC] * 8,
        out_specs=(VMEM_SPEC, VMEM_SPEC, VMEM_SPEC),
        compiler_params=_COMPILER_PARAMS_FLAT,
    )(flat, eps, wmu, bmu, wlv, blv, wup, bup)


# ----------------------------------------------------------------------------
# Parameter init (deterministic, PyTorch-like uniform fan-in scaling)
# ----------------------------------------------------------------------------
def _uniform(key, shape, bound):
    return jax.random.uniform(key, shape, jnp.float32, -bound, bound)


def init_vae_params(key, encoder_channels, kernel_size, latent_dim, image_size):
    in_ch, out_ch = encoder_channels[:-1], encoder_channels[1:]
    n = len(in_ch)
    feat = out_ch[-1] * (image_size // 2 ** n) ** 2
    keys = iter(jax.random.split(key, 4 * n + 6))
    params = {"enc": [], "dec": []}

    for ci, co in zip(in_ch, out_ch):
        bound = 1.0 / float(ci * kernel_size ** 2) ** 0.5
        params["enc"].append({
            "w": _uniform(next(keys), (co, ci, kernel_size, kernel_size), bound),
            "b": _uniform(next(keys), (co,), bound)})

    for name, (din, dout) in [("mu", (feat, latent_dim)),
                              ("logvar", (feat, latent_dim)),
                              ("up", (latent_dim, feat))]:
        bound = 1.0 / float(din) ** 0.5
        params[name] = {"w": _uniform(next(keys), (din, dout), bound),
                        "b": _uniform(next(keys), (dout,), bound)}

    for ci, co in list(zip(out_ch, in_ch))[::-1]:          # decoder: in=ci, out=co
        bound = 1.0 / float(ci * kernel_size ** 2) ** 0.5
        params["dec"].append({
            "w": _uniform(next(keys), (ci, co, kernel_size, kernel_size), bound),
            "b": _uniform(next(keys), (co,), bound)})
    return params


# ----------------------------------------------------------------------------
# One-time host-side conversion to the kernel-friendly layout
# ----------------------------------------------------------------------------
def prepare_params(params, encoder_channels, kernel_size, image_size):
    assert kernel_size == 3, "kernel specialised to k=3"  # TODO(synk): general odd k
    n = len(encoder_channels) - 1
    Cf = encoder_channels[-1]
    Hf = image_size // (2 ** n)
    feat = Cf * Hf * Hf
    kp = {"enc": [], "dec": []}

    # --- encoder: banded matrices D[m] -> conv(3x3,same) + 2x2 pool selection ---
    # m order: (r,q,src) = (0,0,cur),(0,0,prev),(0,1,cur),(0,1,prev),
    #                      (1,0,cur),(1,0,next),(1,1,cur),(1,1,next)
    order = [(0, 0, 0), (0, 0, -1), (0, 1, 0), (0, 1, -1),
             (1, 0, 0), (1, 0, 1), (1, 1, 0), (1, 1, 1)]
    for i, layer in enumerate(params["enc"]):
        W = image_size // (2 ** i)
        w = np.asarray(layer["w"], np.float32)             # (O, C, 3, 3)
        O, C = w.shape[0], w.shape[1]
        Wo = W // 2
        K, N = 2 * W * C, Wo * O
        D = np.zeros((8, K, N), np.float32)
        for m, (r, q, src) in enumerate(order):
            for s in range(2):
                di = 2 * src + s - r + 1                   # conv row tap
                if not 0 <= di <= 2:
                    continue
                for wo in range(Wo):
                    j = 2 * wo + q                         # conv output column
                    for wc in range(W):
                        dj = wc - j + 1                    # conv col tap
                        if not 0 <= dj <= 2:
                            continue
                        rr, cc = (s * W + wc) * C, wo * O
                        D[m, rr:rr + C, cc:cc + O] += w[:, :, di, dj].T
        b = np.asarray(layer["b"], np.float32)
        kp["enc"].append({"d": jnp.asarray(D, jnp.bfloat16),
                          "b": jnp.asarray(np.tile(b, Wo).reshape(1, N), jnp.float32)})

    # --- fc heads: fold the PyTorch NCHW-flatten permutation into the weights ---
    def rows_to_nhwc(wmat):                                # rows (c,h,w) -> (h,w,c)
        return (np.asarray(wmat, np.float32)
                .reshape(Cf, Hf, Hf, -1).transpose(1, 2, 0, 3).reshape(feat, -1))

    for name in ("mu", "logvar"):
        kp[name] = {"w": jnp.asarray(rows_to_nhwc(params[name]["w"]), jnp.bfloat16),
                    "b": jnp.asarray(np.asarray(params[name]["b"], np.float32)
                                     .reshape(1, -1), jnp.float32)}
    wup = np.asarray(params["up"]["w"], np.float32)        # (L, feat) cols (c,h,w)
    L = wup.shape[0]
    wup = wup.reshape(L, Cf, Hf, Hf).transpose(0, 2, 3, 1).reshape(L, feat)
    bup = (np.asarray(params["up"]["b"], np.float32)
           .reshape(Cf, Hf, Hf).transpose(1, 2, 0).reshape(1, feat))
    kp["up"] = {"w": jnp.asarray(wup, jnp.bfloat16), "b": jnp.asarray(bup, jnp.float32)}

    # --- decoder: sub-pixel ConvTranspose(3x3, s=2, p=1, op=1) matrices E[0..2] ---
    dec_spatial = [image_size // (2 ** (n - j)) for j in range(n)]
    for j, layer in enumerate(params["dec"]):
        w = np.asarray(layer["w"], np.float32)             # (I, O, 3, 3)
        I, O = w.shape[0], w.shape[1]
        W = dec_spatial[j]
        K, N2 = W * I, 2 * W * O
        E = np.zeros((3, K, N2), np.float32)
        for wx in range(W):
            ri, ce, co = wx * I, (2 * wx) * O, (2 * wx + 1) * O
            E[0, ri:ri + I, ce:ce + O] += w[:, :, 1, 1]    # even rows
            E[0, ri:ri + I, co:co + O] += w[:, :, 1, 2]
            E[1, ri:ri + I, ce:ce + O] += w[:, :, 2, 1]    # odd rows, input row h
            E[1, ri:ri + I, co:co + O] += w[:, :, 2, 2]
            E[2, ri:ri + I, ce:ce + O] += w[:, :, 0, 1]    # odd rows, input row h+1
            E[2, ri:ri + I, co:co + O] += w[:, :, 0, 2]
            if wx + 1 < W:
                rn = (wx + 1) * I
                E[0, rn:rn + I, co:co + O] += w[:, :, 1, 0]
                E[1, rn:rn + I, co:co + O] += w[:, :, 2, 0]
                E[2, rn:rn + I, co:co + O] += w[:, :, 0, 0]
        b = np.asarray(layer["b"], np.float32)
        kp["dec"].append({"e": jnp.asarray(E, jnp.bfloat16),
                          "b": jnp.asarray(np.tile(b, 2 * W).reshape(1, N2), jnp.float32)})
    return kp


# ----------------------------------------------------------------------------
# VAE forward
# ----------------------------------------------------------------------------
def vae_forward(kp, x_nchw, eps_key):
    B, C0, H0, W0 = x_nchw.shape
    x = jnp.transpose(x_nchw, (0, 2, 3, 1)).astype(jnp.bfloat16)   # public NCHW -> NHWC
    h = x.reshape(B, H0, W0 * C0)                                  # lane-packed (free)

    # ---- encode: fused conv + relu + pool per block ----
    for blk in kp["enc"]:
        h = h.reshape(B, h.shape[1] // 2, 2 * h.shape[2])          # pack row pairs (free)
        h = enc_block(h, blk["d"], blk["b"])                       # (B, H/2, (W/2)*Cout)

    Hf, WfC = h.shape[1], h.shape[2]
    flat = h.reshape(B, Hf * WfC)                                  # NHWC flat (free)
    L = kp["mu"]["w"].shape[1]
    eps = jax.random.uniform(eps_key, (B, L), jnp.float32)         # torch.rand_like
    mu, logvar, up = fc_head(flat, eps, kp["mu"]["w"], kp["mu"]["b"],
                             kp["logvar"]["w"], kp["logvar"]["b"],
                             kp["up"]["w"], kp["up"]["b"])

    # ---- decode: fused sub-pixel transposed conv per block ----
    d = up.reshape(B, Hf, WfC)                                     # packed NHWC (free)
    n_dec = len(kp["dec"])
    for i, blk in enumerate(kp["dec"]):
        last = i == n_dec - 1
        y = dec_block(d, blk["e"], blk["b"],
                      act="sigmoid" if last else "relu",
                      out_dtype=jnp.float32 if last else jnp.bfloat16)
        # interleave even/odd output rows (tiny XLA transpose + free reshape)
        d = jnp.transpose(y, (0, 2, 1, 3)).reshape(B, 2 * d.shape[1], y.shape[-1])

    Wimg = d.shape[2] // C0
    out = jnp.transpose(d.reshape(B, d.shape[1], Wimg, C0), (0, 3, 1, 2))  # NHWC -> NCHW
    return out, mu, logvar


# ----------------------------------------------------------------------------
if __name__ == "__main__":
    encoder_channels = [4, 8, 16]
    kernel_size = 3
    latent_dim = 8
    image_size = 16
    batch = 2

    root = jax.random.PRNGKey(0)
    pkey, xkey, ekey = jax.random.split(root, 3)

    raw_params = init_vae_params(pkey, encoder_channels, kernel_size, latent_dim, image_size)
    kparams = prepare_params(raw_params, encoder_channels, kernel_size, image_size)
    x = jax.random.uniform(xkey, (batch, encoder_channels[0], image_size, image_size),
                           jnp.float32)

    fwd = jax.jit(vae_forward)
    out, mu, logvar = fwd(kparams, x, ekey)
    jax.block_until_ready((out, mu, logvar))

    assert out.shape == (batch, encoder_channels[0], image_size, image_size), out.shape
    assert mu.shape == (batch, latent_dim), mu.shape
    assert logvar.shape == (batch, latent_dim), logvar.shape
    assert bool(jnp.all(jnp.isfinite(out)))
    assert bool(jnp.all(jnp.isfinite(mu))) and bool(jnp.all(jnp.isfinite(logvar)))
    assert bool(jnp.all((out >= 0.0) & (out <= 1.0)))   # sigmoid output range
    print("KERNEL_OK")
</pallas_src>

<mosaic_0001>
module attributes {stable_mosaic.version = 11 : i64} {
  func.func @_enc_block_kernel(%arg0: i32, %arg1: memref<1x8x128xbf16, #tpu.memory_space<vmem>>, %arg2: memref<8x128x64xbf16, #tpu.memory_space<vmem>>, %arg3: memref<1x64xf32, #tpu.memory_space<vmem>>, %arg4: memref<1x8x64xbf16, #tpu.memory_space<vmem>>, %arg5: memref<4x8x64xf32, #tpu.memory_space<vmem>>) attributes {dimension_semantics = [#tpu.dimension_semantics<parallel>], iteration_bounds = array<i64: 2>, scalar_prefetch = 0 : i64, scratch_operands = 1 : i64, tpu.core_type = #tpu.core_type<tc>, window_params = [{transform_indices = @transform_0, window_bounds = array<i64: 1, 8, 128>}, {pipeline_mode = #tpu.pipeline_mode<synchronous>, transform_indices = @transform_1, window_bounds = array<i64: 8, 128, 64>}, {pipeline_mode = #tpu.pipeline_mode<synchronous>, transform_indices = @transform_2, window_bounds = array<i64: 1, 64>}, {transform_indices = @transform_3, window_bounds = array<i64: 1, 8, 64>}]} {
    %c0 = arith.constant 0 : index
    %c0_0 = arith.constant 0 : index
    %c0_1 = arith.constant 0 : index
    %0 = vector.load %arg1[%c0, %c0_0, %c0_1] : memref<1x8x128xbf16, #tpu.memory_space<vmem>>, vector<1x8x128xbf16>
    %1 = vector.shape_cast %0 : vector<1x8x128xbf16> to vector<8x128xbf16>
    %2 = vector.extract_strided_slice %1 {offsets = [0, 0], sizes = [7, 128], strides = [1, 1]} : vector<8x128xbf16> to vector<7x128xbf16>
    %3 = vector.extract_strided_slice %1 {offsets = [1, 0], sizes = [7, 128], strides = [1, 1]} : vector<8x128xbf16> to vector<7x128xbf16>
    %c0_2 = arith.constant 0 : index
    %c0_3 = arith.constant 0 : index
    %c0_4 = arith.constant 0 : index
    %4 = vector.load %arg2[%c0_2, %c0_3, %c0_4] : memref<8x128x64xbf16, #tpu.memory_space<vmem>>, vector<1x128x64xbf16>
    %5 = vector.shape_cast %4 : vector<1x128x64xbf16> to vector<128x64xbf16>
    %cst = arith.constant dense<0.000000e+00> : vector<8x64xf32>
    %6 = tpu.matmul %1, %5, %cst {dimension_numbers = #tpu.dot_dimension_numbers<[1], [0], [0], [1], [0, 0, 1, 1], [], []>} : vector<8x128xbf16>, vector<128x64xbf16>, vector<8x64xf32> -> vector<8x64xf32>
    %c0_5 = arith.constant 0 : index
    %c0_6 = arith.constant 0 : index
    %c0_7 = arith.constant 0 : index
    %7 = vector.load %arg5[%c0_5, %c0_6, %c0_7] : memref<4x8x64xf32, #tpu.memory_space<vmem>>, vector<1x8x64xf32>
    %8 = vector.shape_cast %7 : vector<1x8x64xf32> to vector<8x64xf32>
    %9 = vector.shape_cast %6 : vector<8x64xf32> to vector<1x8x64xf32>
    tpu.vector_store %arg5[%c0_5, %c0_6, %c0_7], %9 {strides = array<i32>} : memref<4x8x64xf32, #tpu.memory_space<vmem>>, vector<1x8x64xf32>,
    %c0_8 = arith.constant 0 : index
    %c1 = arith.constant 1 : index
    %c0_9 = arith.constant 0 : index
    %10 = vector.load %arg5[%c0_8, %c1, %c0_9] : memref<4x8x64xf32, #tpu.memory_space<vmem>>, vector<1x7x64xf32>
    %11 = vector.shape_cast %10 : vector<1x7x64xf32> to vector<7x64xf32>
    %c1_10 = arith.constant 1 : index
    %c0_11 = arith.constant 0 : index
    %c0_12 = arith.constant 0 : index
    %12 = vector.load %arg2[%c1_10, %c0_11, %c0_12] : memref<8x128x64xbf16, #tpu.memory_space<vmem>>, vector<1x128x64xbf16>
    %13 = vector.shape_cast %12 : vector<1x128x64xbf16> to vector<128x64xbf16>
    %cst_13 = arith.constant dense<0.000000e+00> : vector<7x64xf32>
    %14 = tpu.matmul %2, %13, %cst_13 {dimension_numbers = #tpu.dot_dimension_numbers<[1], [0], [0], [1], [0, 0, 1, 1], [], []>} : vector<7x128xbf16>, vector<128x64xbf16>, vector<7x64xf32> -> vector<7x64xf32>
    %15 = arith.addf %11, %14 : vector<7x64xf32>
    %c0_14 = arith.constant 0 : index
    %c1_15 = arith.constant 1 : index
    %c0_16 = arith.constant 0 : index
    %16 = vector.load %arg5[%c0_14, %c1_15, %c0_16] : memref<4x8x64xf32, #tpu.memory_space<vmem>>, vector<1x7x64xf32>
    %17 = vector.shape_cast %16 : vector<1x7x64xf32> to vector<7x64xf32>
    %18 = vector.shape_cast %15 : vector<7x64xf32> to vector<1x7x64xf32>
    tpu.vector_store %arg5[%c0_14, %c1_15, %c0_16], %18 {strides = array<i32>} : memref<4x8x64xf32, #tpu.memory_space<vmem>>, vector<1x7x64xf32>,
    %c2 = arith.constant 2 : index
    %c0_17 = arith.constant 0 : index
    %c0_18 = arith.constant 0 : index
    %19 = vector.load %arg2[%c2, %c0_17, %c0_18] : memref<8x128x64xbf16, #tpu.memory_space<vmem>>, vector<1x128x64xbf16>
    %20 = vector.shape_cast %19 : vector<1x128x64xbf16> to vector<128x64xbf16>
    %cst_19 = arith.constant dense<0.000000e+00> : vector<8x64xf32>
    %21 = tpu.matmul %1, %20, %cst_19 {dimension_numbers = #tpu.dot_dimension_numbers<[1], [0], [0], [1], [0, 0, 1, 1], [], []>} : vector<8x128xbf16>, vector<128x64xbf16>, vector<8x64xf32> -> vector<8x64xf32>
    %c1_20 = arith.constant 1 : index
    %c0_21 = arith.constant 0 : index
    %c0_22 = arith.constant 0 : index
    %22 = vector.load %arg5[%c1_20, %c0_21, %c0_22] : memref<4x8x64xf32, #tpu.memory_space<vmem>>, vector<1x8x64xf32>
    %23 = vector.shape_cast %22 : vector<1x8x64xf32> to vector<8x64xf32>
    %24 = vector.shape_cast %21 : vector<8x64xf32> to vector<1x8x64xf32>
    tpu.vector_store %arg5[%c1_20, %c0_21, %c0_22], %24 {strides = array<i32>} : memref<4x8x64xf32, #tpu.memory_space<vmem>>, vector<1x8x64xf32>,
    %c1_23 = arith.constant 1 : index
    %c1_24 = arith.constant 1 : index
    %c0_25 = arith.constant 0 : index
    %25 = vector.load %arg5[%c1_23, %c1_24, %c0_25] : memref<4x8x64xf32, #tpu.memory_space<vmem>>, vector<1x7x64xf32>
    %26 = vector.shape_cast %25 : vector<1x7x64xf32> to vector<7x64xf32>
    %c3 = arith.constant 3 : index
    %c0_26 = arith.constant 0 : index
    %c0_27 = arith.constant 0 : index
    %27 = vector.load %arg2[%c3, %c0_26, %c0_27] : memref<8x128x64xbf16, #tpu.memory_space<vmem>>, vector<1x128x64xbf16>
    %28 = vector.shape_cast %27 : vector<1x128x64xbf16> to vector<128x64xbf16>
    %cst_28 = arith.constant dense<0.000000e+00> : vector<7x64xf32>
    %29 = tpu.matmul %2, %28, %cst_28 {dimension_numbers = #tpu.dot_dimension_numbers<[1], [0], [0], [1], [0, 0, 1, 1], [], []>} : vector<7x128xbf16>, vector<128x64xbf16>, vector<7x64xf32> -> vector<7x64xf32>
    %30 = arith.addf %26, %29 : vector<7x64xf32>
    %c1_29 = arith.constant 1 : index
    %c1_30 = arith.constant 1 : index
    %c0_31 = arith.constant 0 : index
    %31 = vector.load %arg5[%c1_29, %c1_30, %c0_31] : memref<4x8x64xf32, #tpu.memory_space<vmem>>, vector<1x7x64xf32>
    %32 = vector.shape_cast %31 : vector<1x7x64xf32> to vector<7x64xf32>
    %33 = vector.shape_cast %30 : vector<7x64xf32> to vector<1x7x64xf32>
    tpu.vector_store %arg5[%c1_29, %c1_30, %c0_31], %33 {strides = array<i32>} : memref<4x8x64xf32, #tpu.memory_space<vmem>>, vector<1x7x64xf32>,
    %c4 = arith.constant 4 : index
    %c0_32 = arith.constant 0 : index
    %c0_33 = arith.constant 0 : index
    %34 = vector.load %arg2[%c4, %c0_32, %c0_33] : memref<8x128x64xbf16, #tpu.memory_space<vmem>>, vector<1x128x64xbf16>
    %35 = vector.shape_cast %34 : vector<1x128x64xbf16> to vector<128x64xbf16>
    %cst_34 = arith.constant dense<0.000000e+00> : vector<8x64xf32>
    %36 = tpu.matmul %1, %35, %cst_34 {dimension_numbers = #tpu.dot_dimension_numbers<[1], [0], [0], [1], [0, 0, 1, 1], [], []>} : vector<8x128xbf16>, vector<128x64xbf16>, vector<8x64xf32> -> vector<8x64xf32>
    %c2_35 = arith.constant 2 : index
    %c0_36 = arith.constant 0 : index
    %c0_37 = arith.constant 0 : index
    %37 = vector.load %arg5[%c2_35, %c0_36, %c0_37] : memref<4x8x64xf32, #tpu.memory_space<vmem>>, vector<1x8x64xf32>
    %38 = vector.shape_cast %37 : vector<1x8x64xf32> to vector<8x64xf32>
    %39 = vector.shape_cast %36 : vector<8x64xf32> to vector<1x8x64xf32>
    tpu.vector_store %arg5[%c2_35, %c0_36, %c0_37], %39 {strides = array<i32>} : memref<4x8x64xf32, #tpu.memory_space<vmem>>, vector<1x8x64xf32>,
    %c2_38 = arith.constant 2 : index
    %c0_39 = arith.constant 0 : index
    %c0_40 = arith.constant 0 : index
    %40 = vector.load %arg5[%c2_38, %c0_39, %c0_40] : memref<4x8x64xf32, #tpu.memory_space<vmem>>, vector<1x7x64xf32>
    %41 = vector.shape_cast %40 : vector<1x7x64xf32> to vector<7x64xf32>
    %c5 = arith.constant 5 : index
    %c0_41 = arith.constant 0 : index
    %c0_42 = arith.constant 0 : index
    %42 = vector.load %arg2[%c5, %c0_41, %c0_42] : memref<8x128x64xbf16, #tpu.memory_space<vmem>>, vector<1x128x64xbf16>
    %43 = vector.shape_cast %42 : vector<1x128x64xbf16> to vector<128x64xbf16>
    %cst_43 = arith.constant dense<0.000000e+00> : vector<7x64xf32>
    %44 = tpu.matmul %3, %43, %cst_43 {dimension_numbers = #tpu.dot_dimension_numbers<[1], [0], [0], [1], [0, 0, 1, 1], [], []>} : vector<7x128xbf16>, vector<128x64xbf16>, vector<7x64xf32> -> vector<7x64xf32>
    %45 = arith.addf %41, %44 : vector<7x64xf32>
    %c2_44 = arith.constant 2 : index
    %c0_45 = arith.constant 0 : index
    %c0_46 = arith.constant 0 : index
    %46 = vector.load %arg5[%c2_44, %c0_45, %c0_46] : memref<4x8x64xf32, #tpu.memory_space<vmem>>, vector<1x7x64xf32>
    %47 = vector.shape_cast %46 : vector<1x7x64xf32> to vector<7x64xf32>
    %48 = vector.shape_cast %45 : vector<7x64xf32> to vector<1x7x64xf32>
    tpu.vector_store %arg5[%c2_44, %c0_45, %c0_46], %48 {strides = array<i32>} : memref<4x8x64xf32, #tpu.memory_space<vmem>>, vector<1x7x64xf32>,
    %c6 = arith.constant 6 : index
    %c0_47 = arith.constant 0 : index
    %c0_48 = arith.constant 0 : index
    %49 = vector.load %arg2[%c6, %c0_47, %c0_48] : memref<8x128x64xbf16, #tpu.memory_space<vmem>>, vector<1x128x64xbf16>
    %50 = vector.shape_cast %49 : vector<1x128x64xbf16> to vector<128x64xbf16>
    %cst_49 = arith.constant dense<0.000000e+00> : vector<8x64xf32>
    %51 = tpu.matmul %1, %50, %cst_49 {dimension_numbers = #tpu.dot_dimension_numbers<[1], [0], [0], [1], [0, 0, 1, 1], [], []>} : vector<8x128xbf16>, vector<128x64xbf16>, vector<8x64xf32> -> vector<8x64xf32>
    %c3_50 = arith.constant 3 : index
    %c0_51 = arith.constant 0 : index
    %c0_52 = arith.constant 0 : index
    %52 = vector.load %arg5[%c3_50, %c0_51, %c0_52] : memref<4x8x64xf32, #tpu.memory_space<vmem>>, vector<1x8x64xf32>
    %53 = vector.shape_cast %52 : vector<1x8x64xf32> to vector<8x64xf32>
    %54 = vector.shape_cast %51 : vector<8x64xf32> to vector<1x8x64xf32>
    tpu.vector_store %arg5[%c3_50, %c0_51, %c0_52], %54 {strides = array<i32>} : memref<4x8x64xf32, #tpu.memory_space<vmem>>, vector<1x8x64xf32>,
    %c3_53 = arith.constant 3 : index
    %c0_54 = arith.constant 0 : index
    %c0_55 = arith.constant 0 : index
    %55 = vector.load %arg5[%c3_53, %c0_54, %c0_55] : memref<4x8x64xf32, #tpu.memory_space<vmem>>, vector<1x7x64xf32>
    %56 = vector.shape_cast %55 : vector<1x7x64xf32> to vector<7x64xf32>
    %c7 = arith.constant 7 : index
    %c0_56 = arith.constant 0 : index
    %c0_57 = arith.constant 0 : index
    %57 = vector.load %arg2[%c7, %c0_56, %c0_57] : memref<8x128x64xbf16, #tpu.memory_space<vmem>>, vector<1x128x64xbf16>
    %58 = vector.shape_cast %57 : vector<1x128x64xbf16> to vector<128x64xbf16>
    %cst_58 = arith.constant dense<0.000000e+00> : vector<7x64xf32>
    %59 = tpu.matmul %3, %58, %cst_58 {dimension_numbers = #tpu.dot_dimension_numbers<[1], [0], [0], [1], [0, 0, 1, 1], [], []>} : vector<7x128xbf16>, vector<128x64xbf16>, vector<7x64xf32> -> vector<7x64xf32>
    %60 = arith.addf %56, %59 : vector<7x64xf32>
    %c3_59 = arith.constant 3 : index
    %c0_60 = arith.constant 0 : index
    %c0_61 = arith.constant 0 : index
    %61 = vector.load %arg5[%c3_59, %c0_60, %c0_61] : memref<4x8x64xf32, #tpu.memory_space<vmem>>, vector<1x7x64xf32>
    %62 = vector.shape_cast %61 : vector<1x7x64xf32> to vector<7x64xf32>
    %63 = vector.shape_cast %60 : vector<7x64xf32> to vector<1x7x64xf32>
    tpu.vector_store %arg5[%c3_59, %c0_60, %c0_61], %63 {strides = array<i32>} : memref<4x8x64xf32, #tpu.memory_space<vmem>>, vector<1x7x64xf32>,
    %c0_62 = arith.constant 0 : index
    %c0_63 = arith.constant 0 : index
    %c0_64 = arith.constant 0 : index
    %64 = vector.load %arg5[%c0_62, %c0_63, %c0_64] : memref<4x8x64xf32, #tpu.memory_space<vmem>>, vector<1x8x64xf32>
    %65 = vector.shape_cast %64 : vector<1x8x64xf32> to vector<8x64xf32>
    %c1_65 = arith.constant 1 : index
    %c0_66 = arith.constant 0 : index
    %c0_67 = arith.constant 0 : index
    %66 = vector.load %arg5[%c1_65, %c0_66, %c0_67] : memref<4x8x64xf32, #tpu.memory_space<vmem>>, vector<1x8x64xf32>
    %67 = vector.shape_cast %66 : vector<1x8x64xf32> to vector<8x64xf32>
    %68 = arith.maximumf %65, %67 : vector<8x64xf32>
    %c2_68 = arith.constant 2 : index
    %c0_69 = arith.constant 0 : index
    %c0_70 = arith.constant 0 : index
    %69 = vector.load %arg5[%c2_68, %c0_69, %c0_70] : memref<4x8x64xf32, #tpu.memory_space<vmem>>, vector<1x8x64xf32>
    %70 = vector.shape_cast %69 : vector<1x8x64xf32> to vector<8x64xf32>
    %c3_71 = arith.constant 3 : index
    %c0_72 = arith.constant 0 : index
    %c0_73 = arith.constant 0 : index
    %71 = vector.load %arg5[%c3_71, %c0_72, %c0_73] : memref<4x8x64xf32, #tpu.memory_space<vmem>>, vector<1x8x64xf32>
    %72 = vector.shape_cast %71 : vector<1x8x64xf32> to vector<8x64xf32>
    %73 = arith.maximumf %70, %72 : vector<8x64xf32>
    %74 = arith.maximumf %68, %73 : vector<8x64xf32>
    %c0_74 = arith.constant 0 : index
    %c0_75 = arith.constant 0 : index
    %75 = vector.load %arg3[%c0_74, %c0_75] : memref<1x64xf32, #tpu.memory_space<vmem>>, vector<1x64xf32>
    %76 = vector.broadcast %75 : vector<1x64xf32> to vector<8x64xf32>
    %77 = arith.addf %74, %76 : vector<8x64xf32>
    %cst_76 = arith.constant 0.000000e+00 : f32
    %78 = vector.broadcast %cst_76 : f32 to vector<8x64xf32>
    %79 = arith.maximumf %77, %78 : vector<8x64xf32>
    %80 = arith.truncf %79 : vector<8x64xf32> to vector<8x64xbf16>
    %c0_77 = arith.constant 0 : index
    %c0_78 = arith.constant 0 : index
    %c0_79 = arith.constant 0 : index
    %81 = vector.load %arg4[%c0_77, %c0_78, %c0_79] : memref<1x8x64xbf16, #tpu.memory_space<vmem>>, vector<1x8x64xbf16>
    %82 = vector.shape_cast %81 : vector<1x8x64xbf16> to vector<8x64xbf16>
    %83 = vector.shape_cast %80 : vector<8x64xbf16> to vector<1x8x64xbf16>
    tpu.vector_store %arg4[%c0_77, %c0_78, %c0_79], %83 {strides = array<i32>} : memref<1x8x64xbf16, #tpu.memory_space<vmem>>, vector<1x8x64xbf16>,
    return
  }
  func.func @transform_0(%arg0: i32) -> (i32, i32, i32) {
    %c0_i32 = arith.constant 0 : i32
    %c0_i32_0 = arith.constant 0 : i32
    %c0_i32_1 = arith.constant 0 : i32
    return %arg0, %c0_i32, %c0_i32_0 : i32, i32, i32
  }
  func.func @transform_1(%arg0: i32) -> (i32, i32, i32) {
    %c0_i32 = arith.constant 0 : i32
    %c0_i32_0 = arith.constant 0 : i32
    %c0_i32_1 = arith.constant 0 : i32
    %c0_i32_2 = arith.constant 0 : i32
    return %c0_i32, %c0_i32_0, %c0_i32_1 : i32, i32, i32
  }
  func.func @transform_2(%arg0: i32) -> (i32, i32) {
    %c0_i32 = arith.constant 0 : i32
    %c0_i32_0 = arith.constant 0 : i32
    %c0_i32_1 = arith.constant 0 : i32
    return %c0_i32, %c0_i32_0 : i32, i32
  }
  func.func @transform_3(%arg0: i32) -> (i32, i32, i32) {
    %c0_i32 = arith.constant 0 : i32
    %c0_i32_0 = arith.constant 0 : i32
    %c0_i32_1 = arith.constant 0 : i32
    return %arg0, %c0_i32, %c0_i32_0 : i32, i32, i32
  }
}

module attributes {stable_mosaic.version = 11 : i64} {
  func.func @_enc_block_kernel(%arg0: i32, %arg1: memref<1x4x128xbf16, #tpu.memory_space<vmem>>, %arg2: memref<8x128x64xbf16, #tpu.memory_space<vmem>>, %arg3: memref<1x64xf32, #tpu.memory_space<vmem>>, %arg4: memref<1x4x64xbf16, #tpu.memory_space<vmem>>, %arg5: memref<4x4x64xf32, #tpu.memory_space<vmem>>) attributes {dimension_semantics = [#tpu.dimension_semantics<parallel>], iteration_bounds = array<i64: 2>, scalar_prefetch = 0 : i64, scratch_operands = 1 : i64, tpu.core_type = #tpu.core_type<tc>, window_params = [{transform_indices = @transform_0, window_bounds = array<i64: 1, 4, 128>}, {pipeline_mode = #tpu.pipeline_mode<synchronous>, transform_indices = @transform_1, window_bounds = array<i64: 8, 128, 64>}, {pipeline_mode = #tpu.pipeline_mode<synchronous>, transform_indices = @transform_2, window_bounds = array<i64: 1, 64>}, {transform_indices = @transform_3, window_bounds = array<i64: 1, 4, 64>}]} {
    %c0 = arith.constant 0 : index
    %c0_0 = arith.constant 0 : index
    %c0_1 = arith.constant 0 : index
    %0 = vector.load %arg1[%c0, %c0_0, %c0_1] : memref<1x4x128xbf16, #tpu.memory_space<vmem>>, vector<1x4x128xbf16>
    %1 = vector.shape_cast %0 : vector<1x4x128xbf16> to vector<4x128xbf16>
    %2 = vector.extract_strided_slice %1 {offsets = [0, 0], sizes = [3, 128], strides = [1, 1]} : vector<4x128xbf16> to vector<3x128xbf16>
    %3 = vector.extract_strided_slice %1 {offsets = [1, 0], sizes = [3, 128], strides = [1, 1]} : vector<4x128xbf16> to vector<3x128xbf16>
    %c0_2 = arith.constant 0 : index
    %c0_3 = arith.constant 0 : index
    %c0_4 = arith.constant 0 : index
    %4 = vector.load %arg2[%c0_2, %c0_3, %c0_4] : memref<8x128x64xbf16, #tpu.memory_space<vmem>>, vector<1x128x64xbf16>
    %5 = vector.shape_cast %4 : vector<1x128x64xbf16> to vector<128x64xbf16>
    %cst = arith.constant dense<0.000000e+00> : vector<4x64xf32>
    %6 = tpu.matmul %1, %5, %cst {dimension_numbers = #tpu.dot_dimension_numbers<[1], [0], [0], [1], [0, 0, 1, 1], [], []>} : vector<4x128xbf16>, vector<128x64xbf16>, vector<4x64xf32> -> vector<4x64xf32>
    %c0_5 = arith.constant 0 : index
    %c0_6 = arith.constant 0 : index
    %c0_7 = arith.constant 0 : index
    %7 = vector.load %arg5[%c0_5, %c0_6, %c0_7] : memref<4x4x64xf32, #tpu.memory_space<vmem>>, vector<1x4x64xf32>
    %8 = vector.shape_cast %7 : vector<1x4x64xf32> to vector<4x64xf32>
    %9 = vector.shape_cast %6 : vector<4x64xf32> to vector<1x4x64xf32>
    tpu.vector_store %arg5[%c0_5, %c0_6, %c0_7], %9 {strides = array<i32>} : memref<4x4x64xf32, #tpu.memory_space<vmem>>, vector<1x4x64xf32>,
    %c0_8 = arith.constant 0 : index
    %c1 = arith.constant 1 : index
    %c0_9 = arith.constant 0 : index
    %10 = vector.load %arg5[%c0_8, %c1, %c0_9] : memref<4x4x64xf32, #tpu.memory_space<vmem>>, vector<1x3x64xf32>
    %11 = vector.shape_cast %10 : vector<1x3x64xf32> to vector<3x64xf32>
    %c1_10 = arith.constant 1 : index
    %c0_11 = arith.constant 0 : index
    %c0_12 = arith.constant 0 : index
    %12 = vector.load %arg2[%c1_10, %c0_11, %c0_12] : memref<8x128x64xbf16, #tpu.memory_space<vmem>>, vector<1x128x64xbf16>
    %13 = vector.shape_cast %12 : vector<1x128x64xbf16> to vector<128x64xbf16>
    %cst_13 = arith.constant dense<0.000000e+00> : vector<3x64xf32>
    %14 = tpu.matmul %2, %13, %cst_13 {dimension_numbers = #tpu.dot_dimension_numbers<[1], [0], [0], [1], [0, 0, 1, 1], [], []>} : vector<3x128xbf16>, vector<128x64xbf16>, vector<3x64xf32> -> vector<3x64xf32>
    %15 = arith.addf %11, %14 : vector<3x64xf32>
    %c0_14 = arith.constant 0 : index
    %c1_15 = arith.constant 1 : index
    %c0_16 = arith.constant 0 : index
    %16 = vector.load %arg5[%c0_14, %c1_15, %c0_16] : memref<4x4x64xf32, #tpu.memory_space<vmem>>, vector<1x3x64xf32>
    %17 = vector.shape_cast %16 : vector<1x3x64xf32> to vector<3x64xf32>
    %18 = vector.shape_cast %15 : vector<3x64xf32> to vector<1x3x64xf32>
    tpu.vector_store %arg5[%c0_14, %c1_15, %c0_16], %18 {strides = array<i32>} : memref<4x4x64xf32, #tpu.memory_space<vmem>>, vector<1x3x64xf32>,
    %c2 = arith.constant 2 : index
    %c0_17 = arith.constant 0 : index
    %c0_18 = arith.constant 0 : index
    %19 = vector.load %arg2[%c2, %c0_17, %c0_18] : memref<8x128x64xbf16, #tpu.memory_space<vmem>>, vector<1x128x64xbf16>
    %20 = vector.shape_cast %19 : vector<1x128x64xbf16> to vector<128x64xbf16>
    %cst_19 = arith.constant dense<0.000000e+00> : vector<4x64xf32>
    %21 = tpu.matmul %1, %20, %cst_19 {dimension_numbers = #tpu.dot_dimension_numbers<[1], [0], [0], [1], [0, 0, 1, 1], [], []>} : vector<4x128xbf16>, vector<128x64xbf16>, vector<4x64xf32> -> vector<4x64xf32>
    %c1_20 = arith.constant 1 : index
    %c0_21 = arith.constant 0 : index
    %c0_22 = arith.constant 0 : index
    %22 = vector.load %arg5[%c1_20, %c0_21, %c0_22] : memref<4x4x64xf32, #tpu.memory_space<vmem>>, vector<1x4x64xf32>
    %23 = vector.shape_cast %22 : vector<1x4x64xf32> to vector<4x64xf32>
    %24 = vector.shape_cast %21 : vector<4x64xf32> to vector<1x4x64xf32>
    tpu.vector_store %arg5[%c1_20, %c0_21, %c0_22], %24 {strides = array<i32>} : memref<4x4x64xf32, #tpu.memory_space<vmem>>, vector<1x4x64xf32>,
    %c1_23 = arith.constant 1 : index
    %c1_24 = arith.constant 1 : index
    %c0_25 = arith.constant 0 : index
    %25 = vector.load %arg5[%c1_23, %c1_24, %c0_25] : memref<4x4x64xf32, #tpu.memory_space<vmem>>, vector<1x3x64xf32>
    %26 = vector.shape_cast %25 : vector<1x3x64xf32> to vector<3x64xf32>
    %c3 = arith.constant 3 : index
    %c0_26 = arith.constant 0 : index
    %c0_27 = arith.constant 0 : index
    %27 = vector.load %arg2[%c3, %c0_26, %c0_27] : memref<8x128x64xbf16, #tpu.memory_space<vmem>>, vector<1x128x64xbf16>
    %28 = vector.shape_cast %27 : vector<1x128x64xbf16> to vector<128x64xbf16>
    %cst_28 = arith.constant dense<0.000000e+00> : vector<3x64xf32>
    %29 = tpu.matmul %2, %28, %cst_28 {dimension_numbers = #tpu.dot_dimension_numbers<[1], [0], [0], [1], [0, 0, 1, 1], [], []>} : vector<3x128xbf16>, vector<128x64xbf16>, vector<3x64xf32> -> vector<3x64xf32>
    %30 = arith.addf %26, %29 : vector<3x64xf32>
    %c1_29 = arith.constant 1 : index
    %c1_30 = arith.constant 1 : index
    %c0_31 = arith.constant 0 : index
    %31 = vector.load %arg5[%c1_29, %c1_30, %c0_31] : memref<4x4x64xf32, #tpu.memory_space<vmem>>, vector<1x3x64xf32>
    %32 = vector.shape_cast %31 : vector<1x3x64xf32> to vector<3x64xf32>
    %33 = vector.shape_cast %30 : vector<3x64xf32> to vector<1x3x64xf32>
    tpu.vector_store %arg5[%c1_29, %c1_30, %c0_31], %33 {strides = array<i32>} : memref<4x4x64xf32, #tpu.memory_space<vmem>>, vector<1x3x64xf32>,
    %c4 = arith.constant 4 : index
    %c0_32 = arith.constant 0 : index
    %c0_33 = arith.constant 0 : index
    %34 = vector.load %arg2[%c4, %c0_32, %c0_33] : memref<8x128x64xbf16, #tpu.memory_space<vmem>>, vector<1x128x64xbf16>
    %35 = vector.shape_cast %34 : vector<1x128x64xbf16> to vector<128x64xbf16>
    %cst_34 = arith.constant dense<0.000000e+00> : vector<4x64xf32>
    %36 = tpu.matmul %1, %35, %cst_34 {dimension_numbers = #tpu.dot_dimension_numbers<[1], [0], [0], [1], [0, 0, 1, 1], [], []>} : vector<4x128xbf16>, vector<128x64xbf16>, vector<4x64xf32> -> vector<4x64xf32>
    %c2_35 = arith.constant 2 : index
    %c0_36 = arith.constant 0 : index
    %c0_37 = arith.constant 0 : index
    %37 = vector.load %arg5[%c2_35, %c0_36, %c0_37] : memref<4x4x64xf32, #tpu.memory_space<vmem>>, vector<1x4x64xf32>
    %38 = vector.shape_cast %37 : vector<1x4x64xf32> to vector<4x64xf32>
    %39 = vector.shape_cast %36 : vector<4x64xf32> to vector<1x4x64xf32>
    tpu.vector_store %arg5[%c2_35, %c0_36, %c0_37], %39 {strides = array<i32>} : memref<4x4x64xf32, #tpu.memory_space<vmem>>, vector<1x4x64xf32>,
    %c2_38 = arith.constant 2 : index
    %c0_39 = arith.constant 0 : index
    %c0_40 = arith.constant 0 : index
    %40 = vector.load %arg5[%c2_38, %c0_39, %c0_40] : memref<4x4x64xf32, #tpu.memory_space<vmem>>, vector<1x3x64xf32>
    %41 = vector.shape_cast %40 : vector<1x3x64xf32> to vector<3x64xf32>
    %c5 = arith.constant 5 : index
    %c0_41 = arith.constant 0 : index
    %c0_42 = arith.constant 0 : index
    %42 = vector.load %arg2[%c5, %c0_41, %c0_42] : memref<8x128x64xbf16, #tpu.memory_space<vmem>>, vector<1x128x64xbf16>
    %43 = vector.shape_cast %42 : vector<1x128x64xbf16> to vector<128x64xbf16>
    %cst_43 = arith.constant dense<0.000000e+00> : vector<3x64xf32>
    %44 = tpu.matmul %3, %43, %cst_43 {dimension_numbers = #tpu.dot_dimension_numbers<[1], [0], [0], [1], [0, 0, 1, 1], [], []>} : vector<3x128xbf16>, vector<128x64xbf16>, vector<3x64xf32> -> vector<3x64xf32>
    %45 = arith.addf %41, %44 : vector<3x64xf32>
    %c2_44 = arith.constant 2 : index
    %c0_45 = arith.constant 0 : index
    %c0_46 = arith.constant 0 : index
    %46 = vector.load %arg5[%c2_44, %c0_45, %c0_46] : memref<4x4x64xf32, #tpu.memory_space<vmem>>, vector<1x3x64xf32>
    %47 = vector.shape_cast %46 : vector<1x3x64xf32> to vector<3x64xf32>
    %48 = vector.shape_cast %45 : vector<3x64xf32> to vector<1x3x64xf32>
    tpu.vector_store %arg5[%c2_44, %c0_45, %c0_46], %48 {strides = array<i32>} : memref<4x4x64xf32, #tpu.memory_space<vmem>>, vector<1x3x64xf32>,
    %c6 = arith.constant 6 : index
    %c0_47 = arith.constant 0 : index
    %c0_48 = arith.constant 0 : index
    %49 = vector.load %arg2[%c6, %c0_47, %c0_48] : memref<8x128x64xbf16, #tpu.memory_space<vmem>>, vector<1x128x64xbf16>
    %50 = vector.shape_cast %49 : vector<1x128x64xbf16> to vector<128x64xbf16>
    %cst_49 = arith.constant dense<0.000000e+00> : vector<4x64xf32>
    %51 = tpu.matmul %1, %50, %cst_49 {dimension_numbers = #tpu.dot_dimension_numbers<[1], [0], [0], [1], [0, 0, 1, 1], [], []>} : vector<4x128xbf16>, vector<128x64xbf16>, vector<4x64xf32> -> vector<4x64xf32>
    %c3_50 = arith.constant 3 : index
    %c0_51 = arith.constant 0 : index
    %c0_52 = arith.constant 0 : index
    %52 = vector.load %arg5[%c3_50, %c0_51, %c0_52] : memref<4x4x64xf32, #tpu.memory_space<vmem>>, vector<1x4x64xf32>
    %53 = vector.shape_cast %52 : vector<1x4x64xf32> to vector<4x64xf32>
    %54 = vector.shape_cast %51 : vector<4x64xf32> to vector<1x4x64xf32>
    tpu.vector_store %arg5[%c3_50, %c0_51, %c0_52], %54 {strides = array<i32>} : memref<4x4x64xf32, #tpu.memory_space<vmem>>, vector<1x4x64xf32>,
    %c3_53 = arith.constant 3 : index
    %c0_54 = arith.constant 0 : index
    %c0_55 = arith.constant 0 : index
    %55 = vector.load %arg5[%c3_53, %c0_54, %c0_55] : memref<4x4x64xf32, #tpu.memory_space<vmem>>, vector<1x3x64xf32>
    %56 = vector.shape_cast %55 : vector<1x3x64xf32> to vector<3x64xf32>
    %c7 = arith.constant 7 : index
    %c0_56 = arith.constant 0 : index
    %c0_57 = arith.constant 0 : index
    %57 = vector.load %arg2[%c7, %c0_56, %c0_57] : memref<8x128x64xbf16, #tpu.memory_space<vmem>>, vector<1x128x64xbf16>
    %58 = vector.shape_cast %57 : vector<1x128x64xbf16> to vector<128x64xbf16>
    %cst_58 = arith.constant dense<0.000000e+00> : vector<3x64xf32>
    %59 = tpu.matmul %3, %58, %cst_58 {dimension_numbers = #tpu.dot_dimension_numbers<[1], [0], [0], [1], [0, 0, 1, 1], [], []>} : vector<3x128xbf16>, vector<128x64xbf16>, vector<3x64xf32> -> vector<3x64xf32>
    %60 = arith.addf %56, %59 : vector<3x64xf32>
    %c3_59 = arith.constant 3 : index
    %c0_60 = arith.constant 0 : index
    %c0_61 = arith.constant 0 : index
    %61 = vector.load %arg5[%c3_59, %c0_60, %c0_61] : memref<4x4x64xf32, #tpu.memory_space<vmem>>, vector<1x3x64xf32>
    %62 = vector.shape_cast %61 : vector<1x3x64xf32> to vector<3x64xf32>
    %63 = vector.shape_cast %60 : vector<3x64xf32> to vector<1x3x64xf32>
    tpu.vector_store %arg5[%c3_59, %c0_60, %c0_61], %63 {strides = array<i32>} : memref<4x4x64xf32, #tpu.memory_space<vmem>>, vector<1x3x64xf32>,
    %c0_62 = arith.constant 0 : index
    %c0_63 = arith.constant 0 : index
    %c0_64 = arith.constant 0 : index
    %64 = vector.load %arg5[%c0_62, %c0_63, %c0_64] : memref<4x4x64xf32, #tpu.memory_space<vmem>>, vector<1x4x64xf32>
    %65 = vector.shape_cast %64 : vector<1x4x64xf32> to vector<4x64xf32>
    %c1_65 = arith.constant 1 : index
    %c0_66 = arith.constant 0 : index
    %c0_67 = arith.constant 0 : index
    %66 = vector.load %arg5[%c1_65, %c0_66, %c0_67] : memref<4x4x64xf32, #tpu.memory_space<vmem>>, vector<1x4x64xf32>
    %67 = vector.shape_cast %66 : vector<1x4x64xf32> to vector<4x64xf32>
    %68 = arith.maximumf %65, %67 : vector<4x64xf32>
    %c2_68 = arith.constant 2 : index
    %c0_69 = arith.constant 0 : index
    %c0_70 = arith.constant 0 : index
    %69 = vector.load %arg5[%c2_68, %c0_69, %c0_70] : memref<4x4x64xf32, #tpu.memory_space<vmem>>, vector<1x4x64xf32>
    %70 = vector.shape_cast %69 : vector<1x4x64xf32> to vector<4x64xf32>
    %c3_71 = arith.constant 3 : index
    %c0_72 = arith.constant 0 : index
    %c0_73 = arith.constant 0 : index
    %71 = vector.load %arg5[%c3_71, %c0_72, %c0_73] : memref<4x4x64xf32, #tpu.memory_space<vmem>>, vector<1x4x64xf32>
    %72 = vector.shape_cast %71 : vector<1x4x64xf32> to vector<4x64xf32>
    %73 = arith.maximumf %70, %72 : vector<4x64xf32>
    %74 = arith.maximumf %68, %73 : vector<4x64xf32>
    %c0_74 = arith.constant 0 : index
    %c0_75 = arith.constant 0 : index
    %75 = vector.load %arg3[%c0_74, %c0_75] : memref<1x64xf32, #tpu.memory_space<vmem>>, vector<1x64xf32>
    %76 = vector.broadcast %75 : vector<1x64xf32> to vector<4x64xf32>
    %77 = arith.addf %74, %76 : vector<4x64xf32>
    %cst_76 = arith.constant 0.000000e+00 : f32
    %78 = vector.broadcast %cst_76 : f32 to vector<4x64xf32>
    %79 = arith.maximumf %77, %78 : vector<4x64xf32>
    %80 = arith.truncf %79 : vector<4x64xf32> to vector<4x64xbf16>
    %c0_77 = arith.constant 0 : index
    %c0_78 = arith.constant 0 : index
    %c0_79 = arith.constant 0 : index
    %81 = vector.load %arg4[%c0_77, %c0_78, %c0_79] : memref<1x4x64xbf16, #tpu.memory_space<vmem>>, vector<1x4x64xbf16>
    %82 = vector.shape_cast %81 : vector<1x4x64xbf16> to vector<4x64xbf16>
    %83 = vector.shape_cast %80 : vector<4x64xbf16> to vector<1x4x64xbf16>
    tpu.vector_store %arg4[%c0_77, %c0_78, %c0_79], %83 {strides = array<i32>} : memref<1x4x64xbf16, #tpu.memory_space<vmem>>, vector<1x4x64xbf16>,
    return
  }
  func.func @transform_0(%arg0: i32) -> (i32, i32, i32) {
    %c0_i32 = arith.constant 0 : i32
    %c0_i32_0 = arith.constant 0 : i32
    %c0_i32_1 = arith.constant 0 : i32
    return %arg0, %c0_i32, %c0_i32_0 : i32, i32, i32
  }
  func.func @transform_1(%arg0: i32) -> (i32, i32, i32) {
    %c0_i32 = arith.constant 0 : i32
    %c0_i32_0 = arith.constant 0 : i32
    %c0_i32_1 = arith.constant 0 : i32
    %c0_i32_2 = arith.constant 0 : i32
    return %c0_i32, %c0_i32_0, %c0_i32_1 : i32, i32, i32
  }
  func.func @transform_2(%arg0: i32) -> (i32, i32) {
    %c0_i32 = arith.constant 0 : i32
    %c0_i32_0 = arith.constant 0 : i32
    %c0_i32_1 = arith.constant 0 : i32
    return %c0_i32, %c0_i32_0 : i32, i32
  }
  func.func @transform_3(%arg0: i32) -> (i32, i32, i32) {
    %c0_i32 = arith.constant 0 : i32
    %c0_i32_0 = arith.constant 0 : i32
    %c0_i32_1 = arith.constant 0 : i32
    return %arg0, %c0_i32, %c0_i32_0 : i32, i32, i32
  }
}

module attributes {stable_mosaic.version = 11 : i64} {
  func.func @_head_kernel(%arg0: memref<2x256xbf16, #tpu.memory_space<vmem>>, %arg1: memref<2x8xf32, #tpu.memory_space<vmem>>, %arg2: memref<256x8xbf16, #tpu.memory_space<vmem>>, %arg3: memref<1x8xf32, #tpu.memory_space<vmem>>, %arg4: memref<256x8xbf16, #tpu.memory_space<vmem>>, %arg5: memref<1x8xf32, #tpu.memory_space<vmem>>, %arg6: memref<8x256xbf16, #tpu.memory_space<vmem>>, %arg7: memref<1x256xf32, #tpu.memory_space<vmem>>, %arg8: memref<2x8xf32, #tpu.memory_space<vmem>>, %arg9: memref<2x8xf32, #tpu.memory_space<vmem>>, %arg10: memref<2x256xbf16, #tpu.memory_space<vmem>>) attributes {dimension_semantics = [], scalar_prefetch = 0 : i64, scratch_operands = 0 : i64, tpu.core_type = #tpu.core_type<tc>} {
    %c0 = arith.constant 0 : index
    %c0_0 = arith.constant 0 : index
    %0 = vector.load %arg0[%c0, %c0_0] : memref<2x256xbf16, #tpu.memory_space<vmem>>, vector<2x256xbf16>
    %c0_1 = arith.constant 0 : index
    %c0_2 = arith.constant 0 : index
    %1 = vector.load %arg2[%c0_1, %c0_2] : memref<256x8xbf16, #tpu.memory_space<vmem>>, vector<256x8xbf16>
    %cst = arith.constant dense<0.000000e+00> : vector<2x8xf32>
    %2 = tpu.matmul %0, %1, %cst {dimension_numbers = #tpu.dot_dimension_numbers<[1], [0], [0], [1], [0, 0, 1, 1], [], []>} : vector<2x256xbf16>, vector<256x8xbf16>, vector<2x8xf32> -> vector<2x8xf32>
    %c0_3 = arith.constant 0 : index
    %c0_4 = arith.constant 0 : index
    %3 = vector.load %arg3[%c0_3, %c0_4] : memref<1x8xf32, #tpu.memory_space<vmem>>, vector<1x8xf32>
    %4 = vector.broadcast %3 : vector<1x8xf32> to vector<2x8xf32>
    %5 = arith.addf %2, %4 : vector<2x8xf32>
    %c0_5 = arith.constant 0 : index
    %c0_6 = arith.constant 0 : index
    %6 = vector.load %arg4[%c0_5, %c0_6] : memref<256x8xbf16, #tpu.memory_space<vmem>>, vector<256x8xbf16>
    %cst_7 = arith.constant dense<0.000000e+00> : vector<2x8xf32>
    %7 = tpu.matmul %0, %6, %cst_7 {dimension_numbers = #tpu.dot_dimension_numbers<[1], [0], [0], [1], [0, 0, 1, 1], [], []>} : vector<2x256xbf16>, vector<256x8xbf16>, vector<2x8xf32> -> vector<2x8xf32>
    %c0_8 = arith.constant 0 : index
    %c0_9 = arith.constant 0 : index
    %8 = vector.load %arg5[%c0_8, %c0_9] : memref<1x8xf32, #tpu.memory_space<vmem>>, vector<1x8xf32>
    %9 = vector.broadcast %8 : vector<1x8xf32> to vector<2x8xf32>
    %10 = arith.addf %7, %9 : vector<2x8xf32>
    %c0_10 = arith.constant 0 : index
    %c0_11 = arith.constant 0 : index
    %11 = vector.load %arg8[%c0_10, %c0_11] : memref<2x8xf32, #tpu.memory_space<vmem>>, vector<2x8xf32>
    tpu.vector_store %arg8[%c0_10, %c0_11], %5 {strides = array<i32>} : memref<2x8xf32, #tpu.memory_space<vmem>>, vector<2x8xf32>,
    %c0_12 = arith.constant 0 : index
    %c0_13 = arith.constant 0 : index
    %12 = vector.load %arg9[%c0_12, %c0_13] : memref<2x8xf32, #tpu.memory_space<vmem>>, vector<2x8xf32>
    tpu.vector_store %arg9[%c0_12, %c0_13], %10 {strides = array<i32>} : memref<2x8xf32, #tpu.memory_space<vmem>>, vector<2x8xf32>,
    %c0_14 = arith.constant 0 : index
    %c0_15 = arith.constant 0 : index
    %13 = vector.load %arg1[%c0_14, %c0_15] : memref<2x8xf32, #tpu.memory_space<vmem>>, vector<2x8xf32>
    %14 = math.exp %10 : vector<2x8xf32>
    %15 = arith.mulf %13, %14 : vector<2x8xf32>
    %16 = arith.addf %5, %15 : vector<2x8xf32>
    %17 = arith.truncf %16 : vector<2x8xf32> to vector<2x8xbf16>
    %c0_16 = arith.constant 0 : index
    %c0_17 = arith.constant 0 : index
    %18 = vector.load %arg6[%c0_16, %c0_17] : memref<8x256xbf16, #tpu.memory_space<vmem>>, vector<8x256xbf16>
    %cst_18 = arith.constant dense<0.000000e+00> : vector<2x256xf32>
    %19 = tpu.matmul %17, %18, %cst_18 {dimension_numbers = #tpu.dot_dimension_numbers<[1], [0], [0], [1], [0, 0, 1, 1], [], []>} : vector<2x8xbf16>, vector<8x256xbf16>, vector<2x256xf32> -> vector<2x256xf32>
    %c0_19 = arith.constant 0 : index
    %c0_20 = arith.constant 0 : index
    %20 = vector.load %arg7[%c0_19, %c0_20] : memref<1x256xf32, #tpu.memory_space<vmem>>, vector<1x256xf32>
    %21 = vector.broadcast %20 : vector<1x256xf32> to vector<2x256xf32>
    %22 = arith.addf %19, %21 : vector<2x256xf32>
    %23 = arith.truncf %22 : vector<2x256xf32> to vector<2x256xbf16>
    %c0_21 = arith.constant 0 : index
    %c0_22 = arith.constant 0 : index
    %24 = vector.load %arg10[%c0_21, %c0_22] : memref<2x256xbf16, #tpu.memory_space<vmem>>, vector<2x256xbf16>
    tpu.vector_store %arg10[%c0_21, %c0_22], %23 {strides = array<i32>} : memref<2x256xbf16, #tpu.memory_space<vmem>>, vector<2x256xbf16>,
    return
  }
}

module attributes {stable_mosaic.version = 11 : i64} {
  func.func @_dec_block_kernel(%arg0: i32, %arg1: memref<1x4x64xbf16, #tpu.memory_space<vmem>>, %arg2: memref<3x64x64xbf16, #tpu.memory_space<vmem>>, %arg3: memref<1x64xf32, #tpu.memory_space<vmem>>, %arg4: memref<1x2x4x64xbf16, #tpu.memory_space<vmem>>, %arg5: memref<4x64xf32, #tpu.memory_space<vmem>>) attributes {dimension_semantics = [#tpu.dimension_semantics<parallel>], iteration_bounds = array<i64: 2>, scalar_prefetch = 0 : i64, scratch_operands = 1 : i64, tpu.core_type = #tpu.core_type<tc>, window_params = [{transform_indices = @transform_0, window_bounds = array<i64: 1, 4, 64>}, {pipeline_mode = #tpu.pipeline_mode<synchronous>, transform_indices = @transform_1, window_bounds = array<i64: 3, 64, 64>}, {pipeline_mode = #tpu.pipeline_mode<synchronous>, transform_indices = @transform_2, window_bounds = array<i64: 1, 64>}, {transform_indices = @transform_3, window_bounds = array<i64: 1, 2, 4, 64>}]} {
    %c0 = arith.constant 0 : index
    %c0_0 = arith.constant 0 : index
    %c0_1 = arith.constant 0 : index
    %0 = vector.load %arg1[%c0, %c0_0, %c0_1] : memref<1x4x64xbf16, #tpu.memory_space<vmem>>, vector<1x4x64xbf16>
    %1 = vector.shape_cast %0 : vector<1x4x64xbf16> to vector<4x64xbf16>
    %c0_2 = arith.constant 0 : index
    %c0_3 = arith.constant 0 : index
    %c0_4 = arith.constant 0 : index
    %2 = vector.load %arg2[%c0_2, %c0_3, %c0_4] : memref<3x64x64xbf16, #tpu.memory_space<vmem>>, vector<1x64x64xbf16>
    %3 = vector.shape_cast %2 : vector<1x64x64xbf16> to vector<64x64xbf16>
    %cst = arith.constant dense<0.000000e+00> : vector<4x64xf32>
    %4 = tpu.matmul %1, %3, %cst {dimension_numbers = #tpu.dot_dimension_numbers<[1], [0], [0], [1], [0, 0, 1, 1], [], []>} : vector<4x64xbf16>, vector<64x64xbf16>, vector<4x64xf32> -> vector<4x64xf32>
    %c0_5 = arith.constant 0 : index
    %c0_6 = arith.constant 0 : index
    %5 = vector.load %arg3[%c0_5, %c0_6] : memref<1x64xf32, #tpu.memory_space<vmem>>, vector<1x64xf32>
    %6 = vector.broadcast %5 : vector<1x64xf32> to vector<4x64xf32>
    %7 = arith.addf %4, %6 : vector<4x64xf32>
    %c1 = arith.constant 1 : index
    %c0_7 = arith.constant 0 : index
    %c0_8 = arith.constant 0 : index
    %8 = vector.load %arg2[%c1, %c0_7, %c0_8] : memref<3x64x64xbf16, #tpu.memory_space<vmem>>, vector<1x64x64xbf16>
    %9 = vector.shape_cast %8 : vector<1x64x64xbf16> to vector<64x64xbf16>
    %cst_9 = arith.constant dense<0.000000e+00> : vector<4x64xf32>
    %10 = tpu.matmul %1, %9, %cst_9 {dimension_numbers = #tpu.dot_dimension_numbers<[1], [0], [0], [1], [0, 0, 1, 1], [], []>} : vector<4x64xbf16>, vector<64x64xbf16>, vector<4x64xf32> -> vector<4x64xf32>
    %c0_10 = arith.constant 0 : index
    %c0_11 = arith.constant 0 : index
    %11 = vector.load %arg5[%c0_10, %c0_11] : memref<4x64xf32, #tpu.memory_space<vmem>>, vector<4x64xf32>
    tpu.vector_store %arg5[%c0_10, %c0_11], %10 {strides = array<i32>} : memref<4x64xf32, #tpu.memory_space<vmem>>, vector<4x64xf32>,
    %c0_12 = arith.constant 0 : index
    %c0_13 = arith.constant 0 : index
    %12 = vector.load %arg5[%c0_12, %c0_13] : memref<4x64xf32, #tpu.memory_space<vmem>>, vector<3x64xf32>
    %13 = vector.extract_strided_slice %1 {offsets = [1, 0], sizes = [3, 64], strides = [1, 1]} : vector<4x64xbf16> to vector<3x64xbf16>
    %c2 = arith.constant 2 : index
    %c0_14 = arith.constant 0 : index
    %c0_15 = arith.constant 0 : index
    %14 = vector.load %arg2[%c2, %c0_14, %c0_15] : memref<3x64x64xbf16, #tpu.memory_space<vmem>>, vector<1x64x64xbf16>
    %15 = vector.shape_cast %14 : vector<1x64x64xbf16> to vector<64x64xbf16>
    %cst_16 = arith.constant dense<0.000000e+00> : vector<3x64xf32>
    %16 = tpu.matmul %13, %15, %cst_16 {dimension_numbers = #tpu.dot_dimension_numbers<[1], [0], [0], [1], [0, 0, 1, 1], [], []>} : vector<3x64xbf16>, vector<64x64xbf16>, vector<3x64xf32> -> vector<3x64xf32>
    %17 = arith.addf %12, %16 : vector<3x64xf32>
    %c0_17 = arith.constant 0 : index
    %c0_18 = arith.constant 0 : index
    %18 = vector.load %arg5[%c0_17, %c0_18] : memref<4x64xf32, #tpu.memory_space<vmem>>, vector<3x64xf32>
    tpu.vector_store %arg5[%c0_17, %c0_18], %17 {strides = array<i32>} : memref<4x64xf32, #tpu.memory_space<vmem>>, vector<3x64xf32>,
    %c0_19 = arith.constant 0 : index
    %c0_20 = arith.constant 0 : index
    %19 = vector.load %arg5[%c0_19, %c0_20] : memref<4x64xf32, #tpu.memory_space<vmem>>, vector<4x64xf32>
    %c0_21 = arith.constant 0 : index
    %c0_22 = arith.constant 0 : index
    %20 = vector.load %arg3[%c0_21, %c0_22] : memref<1x64xf32, #tpu.memory_space<vmem>>, vector<1x64xf32>
    %21 = vector.broadcast %20 : vector<1x64xf32> to vector<4x64xf32>
    %22 = arith.addf %19, %21 : vector<4x64xf32>
    %cst_23 = arith.constant 0.000000e+00 : f32
    %23 = vector.broadcast %cst_23 : f32 to vector<4x64xf32>
    %24 = arith.maximumf %7, %23 : vector<4x64xf32>
    %cst_24 = arith.constant 0.000000e+00 : f32
    %25 = vector.broadcast %cst_24 : f32 to vector<4x64xf32>
    %26 = arith.maximumf %22, %25 : vector<4x64xf32>
    %27 = arith.truncf %24 : vector<4x64xf32> to vector<4x64xbf16>
    %c0_25 = arith.constant 0 : index
    %c0_26 = arith.constant 0 : index
    %c0_27 = arith.constant 0 : index
    %c0_28 = arith.constant 0 : index
    %28 = vector.load %arg4[%c0_25, %c0_26, %c0_27, %c0_28] : memref<1x2x4x64xbf16, #tpu.memory_space<vmem>>, vector<1x1x4x64xbf16>
    %29 = vector.shape_cast %28 : vector<1x1x4x64xbf16> to vector<4x64xbf16>
    %30 = vector.shape_cast %27 : vector<4x64xbf16> to vector<1x1x4x64xbf16>
    tpu.vector_store %arg4[%c0_25, %c0_26, %c0_27, %c0_28], %30 {strides = array<i32>} : memref<1x2x4x64xbf16, #tpu.memory_space<vmem>>, vector<1x1x4x64xbf16>,
    %31 = arith.truncf %26 : vector<4x64xf32> to vector<4x64xbf16>
    %c0_29 = arith.constant 0 : index
    %c1_30 = arith.constant 1 : index
    %c0_31 = arith.constant 0 : index
    %c0_32 = arith.constant 0 : index
    %32 = vector.load %arg4[%c0_29, %c1_30, %c0_31, %c0_32] : memref<1x2x4x64xbf16, #tpu.memory_space<vmem>>, vector<1x1x4x64xbf16>
    %33 = vector.shape_cast %32 : vector<1x1x4x64xbf16> to vector<4x64xbf16>
    %34 = vector.shape_cast %31 : vector<4x64xbf16> to vector<1x1x4x64xbf16>
    tpu.vector_store %arg4[%c0_29, %c1_30, %c0_31, %c0_32], %34 {strides = array<i32>} : memref<1x2x4x64xbf16, #tpu.memory_space<vmem>>, vector<1x1x4x64xbf16>,
    return
  }
  func.func @transform_0(%arg0: i32) -> (i32, i32, i32) {
    %c0_i32 = arith.constant 0 : i32
    %c0_i32_0 = arith.constant 0 : i32
    %c0_i32_1 = arith.constant 0 : i32
    return %arg0, %c0_i32, %c0_i32_0 : i32, i32, i32
  }
  func.func @transform_1(%arg0: i32) -> (i32, i32, i32) {
    %c0_i32 = arith.constant 0 : i32
    %c0_i32_0 = arith.constant 0 : i32
    %c0_i32_1 = arith.constant 0 : i32
    %c0_i32_2 = arith.constant 0 : i32
    return %c0_i32, %c0_i32_0, %c0_i32_1 : i32, i32, i32
  }
  func.func @transform_2(%arg0: i32) -> (i32, i32) {
    %c0_i32 = arith.constant 0 : i32
    %c0_i32_0 = arith.constant 0 : i32
    %c0_i32_1 = arith.constant 0 : i32
    return %c0_i32, %c0_i32_0 : i32, i32
  }
  func.func @transform_3(%arg0: i32) -> (i32, i32, i32, i32) {
    %c0_i32 = arith.constant 0 : i32
    %c0_i32_0 = arith.constant 0 : i32
    %c0_i32_1 = arith.constant 0 : i32
    %c0_i32_2 = arith.constant 0 : i32
    return %arg0, %c0_i32, %c0_i32_0, %c0_i32_1 : i32, i32, i32, i32
  }
}

module attributes {stable_mosaic.version = 11 : i64} {
  func.func @_dec_block_kernel(%arg0: i32, %arg1: memref<1x8x64xbf16, #tpu.memory_space<vmem>>, %arg2: memref<3x64x64xbf16, #tpu.memory_space<vmem>>, %arg3: memref<1x64xf32, #tpu.memory_space<vmem>>, %arg4: memref<1x2x8x64xf32, #tpu.memory_space<vmem>>, %arg5: memref<8x64xf32, #tpu.memory_space<vmem>>) attributes {dimension_semantics = [#tpu.dimension_semantics<parallel>], iteration_bounds = array<i64: 2>, scalar_prefetch = 0 : i64, scratch_operands = 1 : i64, tpu.core_type = #tpu.core_type<tc>, window_params = [{transform_indices = @transform_0, window_bounds = array<i64: 1, 8, 64>}, {pipeline_mode = #tpu.pipeline_mode<synchronous>, transform_indices = @transform_1, window_bounds = array<i64: 3, 64, 64>}, {pipeline_mode = #tpu.pipeline_mode<synchronous>, transform_indices = @transform_2, window_bounds = array<i64: 1, 64>}, {transform_indices = @transform_3, window_bounds = array<i64: 1, 2, 8, 64>}]} {
    %c0 = arith.constant 0 : index
    %c0_0 = arith.constant 0 : index
    %c0_1 = arith.constant 0 : index
    %0 = vector.load %arg1[%c0, %c0_0, %c0_1] : memref<1x8x64xbf16, #tpu.memory_space<vmem>>, vector<1x8x64xbf16>
    %1 = vector.shape_cast %0 : vector<1x8x64xbf16> to vector<8x64xbf16>
    %c0_2 = arith.constant 0 : index
    %c0_3 = arith.constant 0 : index
    %c0_4 = arith.constant 0 : index
    %2 = vector.load %arg2[%c0_2, %c0_3, %c0_4] : memref<3x64x64xbf16, #tpu.memory_space<vmem>>, vector<1x64x64xbf16>
    %3 = vector.shape_cast %2 : vector<1x64x64xbf16> to vector<64x64xbf16>
    %cst = arith.constant dense<0.000000e+00> : vector<8x64xf32>
    %4 = tpu.matmul %1, %3, %cst {dimension_numbers = #tpu.dot_dimension_numbers<[1], [0], [0], [1], [0, 0, 1, 1], [], []>} : vector<8x64xbf16>, vector<64x64xbf16>, vector<8x64xf32> -> vector<8x64xf32>
    %c0_5 = arith.constant 0 : index
    %c0_6 = arith.constant 0 : index
    %5 = vector.load %arg3[%c0_5, %c0_6] : memref<1x64xf32, #tpu.memory_space<vmem>>, vector<1x64xf32>
    %6 = vector.broadcast %5 : vector<1x64xf32> to vector<8x64xf32>
    %7 = arith.addf %4, %6 : vector<8x64xf32>
    %c1 = arith.constant 1 : index
    %c0_7 = arith.constant 0 : index
    %c0_8 = arith.constant 0 : index
    %8 = vector.load %arg2[%c1, %c0_7, %c0_8] : memref<3x64x64xbf16, #tpu.memory_space<vmem>>, vector<1x64x64xbf16>
    %9 = vector.shape_cast %8 : vector<1x64x64xbf16> to vector<64x64xbf16>
    %cst_9 = arith.constant dense<0.000000e+00> : vector<8x64xf32>
    %10 = tpu.matmul %1, %9, %cst_9 {dimension_numbers = #tpu.dot_dimension_numbers<[1], [0], [0], [1], [0, 0, 1, 1], [], []>} : vector<8x64xbf16>, vector<64x64xbf16>, vector<8x64xf32> -> vector<8x64xf32>
    %c0_10 = arith.constant 0 : index
    %c0_11 = arith.constant 0 : index
    %11 = vector.load %arg5[%c0_10, %c0_11] : memref<8x64xf32, #tpu.memory_space<vmem>>, vector<8x64xf32>
    tpu.vector_store %arg5[%c0_10, %c0_11], %10 {strides = array<i32>} : memref<8x64xf32, #tpu.memory_space<vmem>>, vector<8x64xf32>,
    %c0_12 = arith.constant 0 : index
    %c0_13 = arith.constant 0 : index
    %12 = vector.load %arg5[%c0_12, %c0_13] : memref<8x64xf32, #tpu.memory_space<vmem>>, vector<7x64xf32>
    %13 = vector.extract_strided_slice %1 {offsets = [1, 0], sizes = [7, 64], strides = [1, 1]} : vector<8x64xbf16> to vector<7x64xbf16>
    %c2 = arith.constant 2 : index
    %c0_14 = arith.constant 0 : index
    %c0_15 = arith.constant 0 : index
    %14 = vector.load %arg2[%c2, %c0_14, %c0_15] : memref<3x64x64xbf16, #tpu.memory_space<vmem>>, vector<1x64x64xbf16>
    %15 = vector.shape_cast %14 : vector<1x64x64xbf16> to vector<64x64xbf16>
    %cst_16 = arith.constant dense<0.000000e+00> : vector<7x64xf32>
    %16 = tpu.matmul %13, %15, %cst_16 {dimension_numbers = #tpu.dot_dimension_numbers<[1], [0], [0], [1], [0, 0, 1, 1], [], []>} : vector<7x64xbf16>, vector<64x64xbf16>, vector<7x64xf32> -> vector<7x64xf32>
    %17 = arith.addf %12, %16 : vector<7x64xf32>
    %c0_17 = arith.constant 0 : index
    %c0_18 = arith.constant 0 : index
    %18 = vector.load %arg5[%c0_17, %c0_18] : memref<8x64xf32, #tpu.memory_space<vmem>>, vector<7x64xf32>
    tpu.vector_store %arg5[%c0_17, %c0_18], %17 {strides = array<i32>} : memref<8x64xf32, #tpu.memory_space<vmem>>, vector<7x64xf32>,
    %c0_19 = arith.constant 0 : index
    %c0_20 = arith.constant 0 : index
    %19 = vector.load %arg5[%c0_19, %c0_20] : memref<8x64xf32, #tpu.memory_space<vmem>>, vector<8x64xf32>
    %c0_21 = arith.constant 0 : index
    %c0_22 = arith.constant 0 : index
    %20 = vector.load %arg3[%c0_21, %c0_22] : memref<1x64xf32, #tpu.memory_space<vmem>>, vector<1x64xf32>
    %21 = vector.broadcast %20 : vector<1x64xf32> to vector<8x64xf32>
    %22 = arith.addf %19, %21 : vector<8x64xf32>
    %23 = arith.negf %7 : vector<8x64xf32>
    %24 = math.exp %23 : vector<8x64xf32>
    %cst_23 = arith.constant 1.000000e+00 : f32
    %25 = vector.broadcast %cst_23 : f32 to vector<8x64xf32>
    %26 = arith.addf %25, %24 : vector<8x64xf32>
    %27 = arith.divf %25, %26 : vector<8x64xf32>
    %28 = arith.negf %22 : vector<8x64xf32>
    %29 = math.exp %28 : vector<8x64xf32>
    %cst_24 = arith.constant 1.000000e+00 : f32
    %30 = vector.broadcast %cst_24 : f32 to vector<8x64xf32>
    %31 = arith.addf %30, %29 : vector<8x64xf32>
    %32 = arith.divf %30, %31 : vector<8x64xf32>
    %c0_25 = arith.constant 0 : index
    %c0_26 = arith.constant 0 : index
    %c0_27 = arith.constant 0 : index
    %c0_28 = arith.constant 0 : index
    %33 = vector.load %arg4[%c0_25, %c0_26, %c0_27, %c0_28] : memref<1x2x8x64xf32, #tpu.memory_space<vmem>>, vector<1x1x8x64xf32>
    %34 = vector.shape_cast %33 : vector<1x1x8x64xf32> to vector<8x64xf32>
    %35 = vector.shape_cast %27 : vector<8x64xf32> to vector<1x1x8x64xf32>
    tpu.vector_store %arg4[%c0_25, %c0_26, %c0_27, %c0_28], %35 {strides = array<i32>} : memref<1x2x8x64xf32, #tpu.memory_space<vmem>>, vector<1x1x8x64xf32>,
    %c0_29 = arith.constant 0 : index
    %c1_30 = arith.constant 1 : index
    %c0_31 = arith.constant 0 : index
    %c0_32 = arith.constant 0 : index
    %36 = vector.load %arg4[%c0_29, %c1_30, %c0_31, %c0_32] : memref<1x2x8x64xf32, #tpu.memory_space<vmem>>, vector<1x1x8x64xf32>
    %37 = vector.shape_cast %36 : vector<1x1x8x64xf32> to vector<8x64xf32>
    %38 = vector.shape_cast %32 : vector<8x64xf32> to vector<1x1x8x64xf32>
    tpu.vector_store %arg4[%c0_29, %c1_30, %c0_31, %c0_32], %38 {strides = array<i32>} : memref<1x2x8x64xf32, #tpu.memory_space<vmem>>, vector<1x1x8x64xf32>,
    return
  }
  func.func @transform_0(%arg0: i32) -> (i32, i32, i32) {
    %c0_i32 = arith.constant 0 : i32
    %c0_i32_0 = arith.constant 0 : i32
    %c0_i32_1 = arith.constant 0 : i32
    return %arg0, %c0_i32, %c0_i32_0 : i32, i32, i32
  }
  func.func @transform_1(%arg0: i32) -> (i32, i32, i32) {
    %c0_i32 = arith.constant 0 : i32
    %c0_i32_0 = arith.constant 0 : i32
    %c0_i32_1 = arith.constant 0 : i32
    %c0_i32_2 = arith.constant 0 : i32
    return %c0_i32, %c0_i32_0, %c0_i32_1 : i32, i32, i32
  }
  func.func @transform_2(%arg0: i32) -> (i32, i32) {
    %c0_i32 = arith.constant 0 : i32
    %c0_i32_0 = arith.constant 0 : i32
    %c0_i32_1 = arith.constant 0 : i32
    return %c0_i32, %c0_i32_0 : i32, i32
  }
  func.func @transform_3(%arg0: i32) -> (i32, i32, i32, i32) {
    %c0_i32 = arith.constant 0 : i32
    %c0_i32_0 = arith.constant 0 : i32
    %c0_i32_1 = arith.constant 0 : i32
    %c0_i32_2 = arith.constant 0 : i32
    return %arg0, %c0_i32, %c0_i32_0, %c0_i32_1 : i32, i32, i32, i32
  }
}

</mosaic_0001>

<llo_original>
// kernel: vae_forward.7
$region0: #{vae_forward.7}
  #allocation0 [shape = 'u32[]', space=smem, size = 0x4, offset = 0x4, fixed_abs, tag = 'smem constant byte address 0x4 - core index']
  #allocation1 [shape = 'u32[144,128]{1,0:T(1,128)}', space=vmem, size = 0x12000, scoped, tag = 'internal scratch']
  %s0 = inlined_call_operand.vmem [shape: bf16[2,256], index: 0, kind: input, shape index: {}]
  %s1 = inlined_call_operand.vmem [shape: f32[2,8], index: 1, kind: input, shape index: {}]
  %s2 = inlined_call_operand.vmem [shape: bf16[256,8], index: 2, kind: input, shape index: {}]
  %s3 = inlined_call_operand.vmem [shape: f32[1,8], index: 3, kind: input, shape index: {}]
  %s4 = inlined_call_operand.vmem [shape: bf16[256,8], index: 4, kind: input, shape index: {}]
  %s5 = inlined_call_operand.vmem [shape: f32[1,8], index: 5, kind: input, shape index: {}]
  %s6 = inlined_call_operand.vmem [shape: bf16[8,256], index: 6, kind: input, shape index: {}]
  %s7 = inlined_call_operand.vmem [shape: f32[1,256], index: 7, kind: input, shape index: {}]
  %s8 = inlined_call_operand.hbm [shape: f32[2,8], index: 8, kind: output, shape index: {0}]
  %s9 = inlined_call_operand.hbm [shape: f32[2,8], index: 9, kind: output, shape index: {1}]
  %s10 = inlined_call_operand.vmem [shape: bf16[2,256], index: 10, kind: output, shape index: {2}]
  %11 = xla_tuple %s8, %s9, %s10
  %s12 = sld [smem:[#allocation0]]
  $region58: #{vae_forward.7} parent=0
    _
  %s14 = ssub.s32 1, %s12
  %s15 = scalar_select 0, %s14, %s12
  $region1: #{vae_forward.7} parent=0
    #allocation2 [shape = 'u8[1024]{0}', space=vmem, size = 0x400, scoped, tag = 'output window, operand 0, single buffered']
    #allocation3 [shape = 's32[1]{0}', space=sflag, size = 0x4, scoped, tag = 'scoped memory for vae_forward.7']
    #allocation4 [shape = 'u8[1024]{0}', space=vmem, size = 0x400, scoped, tag = 'output window, operand 1, single buffered']
    #allocation5 [shape = 's32[1]{0}', space=sflag, size = 0x4, scoped, tag = 'scoped memory for vae_forward.7']
    %16 = vsyncpa [#allocation3], 0
    %17 = vsyncpa [#allocation5], 0
    // Predicated region
    $region2: #{vae_forward.7} parent=1 // pred_check
      _
    $region3: #{vae_forward.7} parent=1 // pred_check_branch
      %19 = sbr.rel (0) target = $region5
    $region4: #{vae_forward.7} parent=1 // pred_region
      _
    $region5: #{vae_forward.7} parent=1 // pred_fallthru
      _
    // Predicated region
    $region6: #{vae_forward.7} parent=1 // pred_check
      _
    $region7: #{vae_forward.7} parent=1 // pred_check_branch
      %21 = sbr.rel (0) target = $region9
    $region8: #{vae_forward.7} parent=1 // pred_region
      _
    $region9: #{vae_forward.7} parent=1 // pred_fallthru
      _
    // Predicated region
    $region10: #{vae_forward.7} parent=1 // pred_check
      _
    $region11: #{vae_forward.7} parent=1 // pred_check_branch
      %23 = sbr.rel (0) target = $region13
    $region12: #{vae_forward.7} parent=1 // pred_region
      _
    $region13: #{vae_forward.7} parent=1 // pred_fallthru
      _
    // Predicated region
    $region14: #{vae_forward.7} parent=1 // pred_check
      _
    $region15: #{vae_forward.7} parent=1 // pred_check_branch
      %25 = sbr.rel (0) target = $region17
    $region16: #{vae_forward.7} parent=1 // pred_region
      _
    $region17: #{vae_forward.7} parent=1 // pred_fallthru
      _
    // Predicated region
    $region18: #{vae_forward.7} parent=1 // pred_check
      _
    $region19: #{vae_forward.7} parent=1 // pred_check_branch
      %27 = sbr.rel (0) target = $region21
    $region20: #{vae_forward.7} parent=1 // pred_region
      _
    $region21: #{vae_forward.7} parent=1 // pred_fallthru
      _
    // Predicated region
    $region22: #{vae_forward.7} parent=1 // pred_check
      _
    $region23: #{vae_forward.7} parent=1 // pred_check_branch
      %29 = sbr.rel (0) target = $region25
    $region24: #{vae_forward.7} parent=1 // pred_region
      _
    $region25: #{vae_forward.7} parent=1 // pred_fallthru
      _
    // Predicated region
    $region26: #{vae_forward.7} parent=1 // pred_check
      _
    $region27: #{vae_forward.7} parent=1 // pred_check_branch
      %31 = sbr.rel (0) target = $region29
    $region28: #{vae_forward.7} parent=1 // pred_region
      _
    $region29: #{vae_forward.7} parent=1 // pred_fallthru
      _
    // Predicated region
    $region30: #{vae_forward.7} parent=1 // pred_check
      _
    $region31: #{vae_forward.7} parent=1 // pred_check_branch
      %33 = sbr.rel (0) target = $region33
    $region32: #{vae_forward.7} parent=1 // pred_region
      _
    $region33: #{vae_forward.7} parent=1 // pred_fallthru
      _
    %v35 = vld [vmem:[%s0] sm:$0x3]
    %v36 = vld [vmem:[%s2] sm:$0xf]
    %v37 = vld [vmem:[%s2 + $0x4] sm:$0xf]
    %v38 = vld [vmem:[%s2 + $0x8] sm:$0xf]
    %v39 = vld [vmem:[%s2 + $0xc] sm:$0xf]
    %v40 = vld [vmem:[%s2 + $0x10] sm:$0xf]
    %v41 = vld [vmem:[%s2 + $0x14] sm:$0xf]
    %v42 = vld [vmem:[%s2 + $0x18] sm:$0xf]
    %v43 = vld [vmem:[%s2 + $0x1c] sm:$0xf]
    %v44 = vld [vmem:[%s2 + $0x20] sm:$0xf]
    %v45 = vld [vmem:[%s2 + $0x24] sm:$0xf]
    %v46 = vld [vmem:[%s2 + $0x28] sm:$0xf]
    %v47 = vld [vmem:[%s2 + $0x2c] sm:$0xf]
    %v48 = vld [vmem:[%s2 + $0x30] sm:$0xf]
    %v49 = vld [vmem:[%s2 + $0x34] sm:$0xf]
    %v50 = vld [vmem:[%s2 + $0x38] sm:$0xf]
    %v51 = vld [vmem:[%s2 + $0x3c] sm:$0xf]
    %v52 = vld [vmem:[%s2 + $0x40] sm:$0xf]
    %v53 = vld [vmem:[%s2 + $0x44] sm:$0xf]
    %v54 = vld [vmem:[%s2 + $0x48] sm:$0xf]
    %v55 = vld [vmem:[%s2 + $0x4c] sm:$0xf]
    %v56 = vld [vmem:[%s2 + $0x50] sm:$0xf]
    %v57 = vld [vmem:[%s2 + $0x54] sm:$0xf]
    %v58 = vld [vmem:[%s2 + $0x58] sm:$0xf]
    %v59 = vld [vmem:[%s2 + $0x5c] sm:$0xf]
    %v60 = vld [vmem:[%s2 + $0x60] sm:$0xf]
    %v61 = vld [vmem:[%s2 + $0x64] sm:$0xf]
    %v62 = vld [vmem:[%s2 + $0x68] sm:$0xf]
    %v63 = vld [vmem:[%s2 + $0x6c] sm:$0xf]
    %v64 = vld [vmem:[%s2 + $0x70] sm:$0xf]
    %v65 = vld [vmem:[%s2 + $0x74] sm:$0xf]
    %v66 = vld [vmem:[%s2 + $0x78] sm:$0xf]
    %v67 = vld [vmem:[%s2 + $0x7c] sm:$0xf]
    %v68 = vld [vmem:[%s3] sm:$0x1]
    %v70 = vlaneseq
    %v71 = vshrl.u32 %v70, 7
    %v72 = vsub.s32 0, %v71
    %v73 = vrot.slane %v68, %v72
    %v77 = vunpack.c.l.s4 1966171168
    %v78 = vunpack.c.0.s8 %v77
    %v79 = vlaneseq
    %v80 = vshrl.u32 %v79, 7
    %v81 = vsub.s32 %v78, %v80
    %v82 = vrot.slane %v35, %v81
    %v83 = vcombine.high %v82, %v82
    %v85 = vunpack.c.l.s4 1966171168
    %v86 = vunpack.c.0.s8 %v85
    %v87 = vlaneseq
    %v88 = vshrl.u32 %v87, 7
    %v89 = vsub.s32 %v86, %v88
    %v90 = vrot.slane %v82, %v89
    %v92 = vunpack.c.l.s4 1966171168
    %v93 = vunpack.c.0.s8 %v92
    %v94 = vlaneseq
    %v95 = vshrl.u32 %v94, 7
    %v96 = vsub.s32 %v93, %v95
    %v97 = vrot.slane %v83, %v96
    %v132 = vunpack.c.l.b16 %v36
    %v133 = vunpack.c.l.b16 %v37
    %v134 = vunpack.c.l.b16 %v38
    %v135 = vunpack.c.l.b16 %v39
    %v136 = vunpack.c.l.b16 %v40
    %v137 = vunpack.c.l.b16 %v41
    %v138 = vunpack.c.l.b16 %v42
    %v139 = vunpack.c.l.b16 %v43
    %v140 = vunpack.c.l.b16 %v44
    %v141 = vunpack.c.l.b16 %v45
    %v142 = vunpack.c.l.b16 %v46
    %v143 = vunpack.c.l.b16 %v47
    %v144 = vunpack.c.l.b16 %v48
    %v145 = vunpack.c.l.b16 %v49
    %v146 = vunpack.c.l.b16 %v50
    %v147 = vunpack.c.l.b16 %v51
    %v148 = vunpack.c.l.b16 %v52
    %v149 = vunpack.c.l.b16 %v53
    %v150 = vunpack.c.l.b16 %v54
    %v151 = vunpack.c.l.b16 %v55
    %v152 = vunpack.c.l.b16 %v56
    %v153 = vunpack.c.l.b16 %v57
    %v154 = vunpack.c.l.b16 %v58
    %v155 = vunpack.c.l.b16 %v59
    %v156 = vunpack.c.l.b16 %v60
    %v157 = vunpack.c.l.b16 %v61
    %v158 = vunpack.c.l.b16 %v62
    %v159 = vunpack.c.l.b16 %v63
    %v160 = vunpack.c.l.b16 %v64
    %v161 = vunpack.c.l.b16 %v65
    %v162 = vunpack.c.l.b16 %v66
    %v163 = vunpack.c.l.b16 %v67
    %v164 = vpack.c.b16 %v133, %v132
    %v165 = vpack.c.b16 %v135, %v134
    %v166 = vpack.c.b16 %v137, %v136
    %v167 = vpack.c.b16 %v139, %v138
    %v168 = vpack.c.b16 %v141, %v140
    %v169 = vpack.c.b16 %v143, %v142
    %v170 = vpack.c.b16 %v145, %v144
    %v171 = vpack.c.b16 %v147, %v146
    %v172 = vpack.c.b16 %v149, %v148
    %v173 = vpack.c.b16 %v151, %v150
    %v174 = vpack.c.b16 %v153, %v152
    %v175 = vpack.c.b16 %v155, %v154
    %v176 = vpack.c.b16 %v157, %v156
    %v177 = vpack.c.b16 %v159, %v158
    %v178 = vpack.c.b16 %v161, %v160
    %v179 = vpack.c.b16 %v163, %v162
    %196 = vmatprep.subr.bf16.mxu0 0
    %197 = vmatpush1.bf16.msra.mxu0 %v164
    %198 = vmatprep.subr.bf16.mxu0 0
    %199 = vmatpush1.bf16.msra.mxu0 %v165
    %200 = vmatprep.subr.bf16.mxu0 0
    %201 = vmatpush1.bf16.msra.mxu0 %v166
    %202 = vmatprep.subr.bf16.mxu0 0
    %203 = vmatpush1.bf16.msra.mxu0 %v167
    %204 = vmatprep.subr.bf16.mxu0 0
    %205 = vmatpush1.bf16.msra.mxu0 %v168
    %206 = vmatprep.subr.bf16.mxu0 0
    %207 = vmatpush1.bf16.msra.mxu0 %v169
    %208 = vmatprep.subr.bf16.mxu0 0
    %209 = vmatpush1.bf16.msra.mxu0 %v170
    %210 = vmatprep.subr.bf16.mxu0 0
    %211 = vmatpush1.bf16.msra.mxu0 %v171
    %212 = vmatprep.subr.bf16.mxu0 0
    %213 = vmatpush1.bf16.msra.mxu0 %v172
    %214 = vmatprep.subr.bf16.mxu0 0
    %215 = vmatpush1.bf16.msra.mxu0 %v173
    %216 = vmatprep.subr.bf16.mxu0 0
    %217 = vmatpush1.bf16.msra.mxu0 %v174
    %218 = vmatprep.subr.bf16.mxu0 0
    %219 = vmatpush1.bf16.msra.mxu0 %v175
    %220 = vmatprep.subr.bf16.mxu0 0
    %221 = vmatpush1.bf16.msra.mxu0 %v176
    %222 = vmatprep.subr.bf16.mxu0 0
    %223 = vmatpush1.bf16.msra.mxu0 %v177
    %224 = vmatprep.subr.bf16.mxu0 0
    %225 = vmatpush1.bf16.msra.mxu0 %v178
    %226 = vmatprep.subr.bf16.mxu0 0
    %227 = vmatpush1.bf16.msra.mxu0 %v179
    %228 = vmatprep.mubr.bf16.mxu0 %v97
    %229 = vmatmul.mubr.bf16.gmra.mrb[0].mxu0 %v90
    %v230 = vpop.f32.mrb[0].mxu0
    %v231 = vadd.f32 %v73, %v230
    %v232 = vpop.f32.mrb[0].mxu0
    %v233 = vpop.f32.mrb[0].mxu0
    %v234 = vpop.f32.mrb[0].mxu0
    %235 = vdwg.mxu0
    %v236 = vld [vmem:[%s4] sm:$0xf]
    %v237 = vld [vmem:[%s4 + $0x4] sm:$0xf]
    %v238 = vld [vmem:[%s4 + $0x8] sm:$0xf]
    %v239 = vld [vmem:[%s4 + $0xc] sm:$0xf]
    %v240 = vld [vmem:[%s4 + $0x10] sm:$0xf]
    %v241 = vld [vmem:[%s4 + $0x14] sm:$0xf]
    %v242 = vld [vmem:[%s4 + $0x18] sm:$0xf]
    %v243 = vld [vmem:[%s4 + $0x1c] sm:$0xf]
    %v244 = vld [vmem:[%s4 + $0x20] sm:$0xf]
    %v245 = vld [vmem:[%s4 + $0x24] sm:$0xf]
    %v246 = vld [vmem:[%s4 + $0x28] sm:$0xf]
    %v247 = vld [vmem:[%s4 + $0x2c] sm:$0xf]
    %v248 = vld [vmem:[%s4 + $0x30] sm:$0xf]
    %v249 = vld [vmem:[%s4 + $0x34] sm:$0xf]
    %v250 = vld [vmem:[%s4 + $0x38] sm:$0xf]
    %v251 = vld [vmem:[%s4 + $0x3c] sm:$0xf]
    %v252 = vld [vmem:[%s4 + $0x40] sm:$0xf]
    %v253 = vld [vmem:[%s4 + $0x44] sm:$0xf]
    %v254 = vld [vmem:[%s4 + $0x48] sm:$0xf]
    %v255 = vld [vmem:[%s4 + $0x4c] sm:$0xf]
    %v256 = vld [vmem:[%s4 + $0x50] sm:$0xf]
    %v257 = vld [vmem:[%s4 + $0x54] sm:$0xf]
    %v258 = vld [vmem:[%s4 + $0x58] sm:$0xf]
    %v259 = vld [vmem:[%s4 + $0x5c] sm:$0xf]
    %v260 = vld [vmem:[%s4 + $0x60] sm:$0xf]
    %v261 = vld [vmem:[%s4 + $0x64] sm:$0xf]
    %v262 = vld [vmem:[%s4 + $0x68] sm:$0xf]
    %v263 = vld [vmem:[%s4 + $0x6c] sm:$0xf]
    %v264 = vld [vmem:[%s4 + $0x70] sm:$0xf]
    %v265 = vld [vmem:[%s4 + $0x74] sm:$0xf]
    %v266 = vld [vmem:[%s4 + $0x78] sm:$0xf]
    %v267 = vld [vmem:[%s4 + $0x7c] sm:$0xf]
    %v268 = vld [vmem:[%s5] sm:$0x1]
    %v270 = vlaneseq
    %v271 = vshrl.u32 %v270, 7
    %v272 = vsub.s32 0, %v271
    %v273 = vrot.slane %v268, %v272
    %v307 = vunpack.c.l.b16 %v236
    %v308 = vunpack.c.l.b16 %v237
    %v309 = vunpack.c.l.b16 %v238
    %v310 = vunpack.c.l.b16 %v239
    %v311 = vunpack.c.l.b16 %v240
    %v312 = vunpack.c.l.b16 %v241
    %v313 = vunpack.c.l.b16 %v242
    %v314 = vunpack.c.l.b16 %v243
    %v315 = vunpack.c.l.b16 %v244
    %v316 = vunpack.c.l.b16 %v245
    %v317 = vunpack.c.l.b16 %v246
    %v318 = vunpack.c.l.b16 %v247
    %v319 = vunpack.c.l.b16 %v248
    %v320 = vunpack.c.l.b16 %v249
    %v321 = vunpack.c.l.b16 %v250
    %v322 = vunpack.c.l.b16 %v251
    %v323 = vunpack.c.l.b16 %v252
    %v324 = vunpack.c.l.b16 %v253
    %v325 = vunpack.c.l.b16 %v254
    %v326 = vunpack.c.l.b16 %v255
    %v327 = vunpack.c.l.b16 %v256
    %v328 = vunpack.c.l.b16 %v257
    %v329 = vunpack.c.l.b16 %v258
    %v330 = vunpack.c.l.b16 %v259
    %v331 = vunpack.c.l.b16 %v260
    %v332 = vunpack.c.l.b16 %v261
    %v333 = vunpack.c.l.b16 %v262
    %v334 = vunpack.c.l.b16 %v263
    %v335 = vunpack.c.l.b16 %v264
    %v336 = vunpack.c.l.b16 %v265
    %v337 = vunpack.c.l.b16 %v266
    %v338 = vunpack.c.l.b16 %v267
    %v339 = vpack.c.b16 %v308, %v307
    %v340 = vpack.c.b16 %v310, %v309
    %v341 = vpack.c.b16 %v312, %v311
    %v342 = vpack.c.b16 %v314, %v313
    %v343 = vpack.c.b16 %v316, %v315
    %v344 = vpack.c.b16 %v318, %v317
    %v345 = vpack.c.b16 %v320, %v319
    %v346 = vpack.c.b16 %v322, %v321
    %v347 = vpack.c.b16 %v324, %v323
    %v348 = vpack.c.b16 %v326, %v325
    %v349 = vpack.c.b16 %v328, %v327
    %v350 = vpack.c.b16 %v330, %v329
    %v351 = vpack.c.b16 %v332, %v331
    %v352 = vpack.c.b16 %v334, %v333
    %v353 = vpack.c.b16 %v336, %v335
    %v354 = vpack.c.b16 %v338, %v337
    %371 = vmatprep.subr.bf16.mxu0 0
    %372 = vmatpush1.bf16.msra.mxu0 %v339
    %373 = vmatprep.subr.bf16.mxu0 0
    %374 = vmatpush1.bf16.msra.mxu0 %v340
    %375 = vmatprep.subr.bf16.mxu0 0
    %376 = vmatpush1.bf16.msra.mxu0 %v341
    %377 = vmatprep.subr.bf16.mxu0 0
    %378 = vmatpush1.bf16.msra.mxu0 %v342
    %379 = vmatprep.subr.bf16.mxu0 0
    %380 = vmatpush1.bf16.msra.mxu0 %v343
    %381 = vmatprep.subr.bf16.mxu0 0
    %382 = vmatpush1.bf16.msra.mxu0 %v344
    %383 = vmatprep.subr.bf16.mxu0 0
    %384 = vmatpush1.bf16.msra.mxu0 %v345
    %385 = vmatprep.subr.bf16.mxu0 0
    %386 = vmatpush1.bf16.msra.mxu0 %v346
    %387 = vmatprep.subr.bf16.mxu0 0
    %388 = vmatpush1.bf16.msra.mxu0 %v347
    %389 = vmatprep.subr.bf16.mxu0 0
    %390 = vmatpush1.bf16.msra.mxu0 %v348
    %391 = vmatprep.subr.bf16.mxu0 0
    %392 = vmatpush1.bf16.msra.mxu0 %v349
    %393 = vmatprep.subr.bf16.mxu0 0
    %394 = vmatpush1.bf16.msra.mxu0 %v350
    %395 = vmatprep.subr.bf16.mxu0 0
    %396 = vmatpush1.bf16.msra.mxu0 %v351
    %397 = vmatprep.subr.bf16.mxu0 0
    %398 = vmatpush1.bf16.msra.mxu0 %v352
    %399 = vmatprep.subr.bf16.mxu0 0
    %400 = vmatpush1.bf16.msra.mxu0 %v353
    %401 = vmatprep.subr.bf16.mxu0 0
    %402 = vmatpush1.bf16.msra.mxu0 %v354
    %403 = vmatprep.mubr.bf16.mxu0 %v97
    %404 = vmatmul.mubr.bf16.gmra.mrb[0].mxu0 %v90
    %v405 = vpop.f32.mrb[0].mxu0
    %v406 = vadd.f32 %v273, %v405
    %v407 = vpop.f32.mrb[0].mxu0
    %v408 = vpop.f32.mrb[0].mxu0
    %v409 = vpop.f32.mrb[0].mxu0
    %410 = vdwg.mxu0
    %vm411 = vcmask 58368
    %412 = vst.msk [vmem:[#allocation2] sm:$0x3] %vm411, %v231
    %413 = vst.msk [vmem:[#allocation4] sm:$0x3] %vm411, %v406
    %v414 = vld [vmem:[%s1] sm:$0x3]
    %v415 = vmul.f32 %v406, 1.442695
    %v416 = vpow.pop %v415
    %v417 = vmul.f32 %v414, %v416
    %v418 = vadd.f32 %v231, %v417
    %v419 = vpack.c.bf16 %v418, %v418
    %v420 = vld [vmem:[%s6] sm:$0xff]
    %v421 = vld [vmem:[%s7] sm:$0x3]
    %v423 = vlaneseq
    %v424 = vshrl.u32 %v423, 7
    %v425 = vsub.s32 0, %v424
    %v426 = vrot.slane %v421, %v425
    %v427 = vlaneseq
    %v428 = vshrl.u32 %v427, 7
    %v429 = vsub.s32 1, %v428
    %v430 = vrot.slane %v421, %v429
    %v434 = vunpack.c.l.b16 %v420
    %v435 = vunpack.c.h.b16 %v420
    %v436 = vpack.c.b16 %v434, %v434
    %v437 = vpack.c.b16 %v435, %v435
    %vm438 = vcmask 64512
    %v440 = vsel %vm438, %v419, 0
    %vm442 = vcmask 1043456
    %v444 = vsel %vm442, %v436, 0
    %v447 = vsel %vm442, %v437, 0
    %449 = vmatprep.subr.bf16.mxu0 %v447
    %450 = vmatpush1.bf16.msra.mxu0 %v444
    %451 = vmatprep.subr.bf16.mxu0 0
    %452 = vmatpush1.bf16.msra.mxu0 0
    %453 = vmatprep.subr.bf16.mxu0 0
    %454 = vmatpush1.bf16.msra.mxu0 0
    %455 = vmatprep.subr.bf16.mxu0 0
    %456 = vmatpush1.bf16.msra.mxu0 0
    %457 = vmatprep.subr.bf16.mxu0 0
    %458 = vmatpush1.bf16.msra.mxu0 0
    %459 = vmatprep.subr.bf16.mxu0 0
    %460 = vmatpush1.bf16.msra.mxu0 0
    %461 = vmatprep.subr.bf16.mxu0 0
    %462 = vmatpush1.bf16.msra.mxu0 0
    %463 = vmatprep.subr.bf16.mxu0 0
    %464 = vmatpush1.bf16.msra.mxu0 0
    %465 = vmatprep.subr.bf16.mxu0 0
    %466 = vmatpush1.bf16.msra.mxu0 0
    %467 = vmatprep.subr.bf16.mxu0 0
    %468 = vmatpush1.bf16.msra.mxu0 0
    %469 = vmatprep.subr.bf16.mxu0 0
    %470 = vmatpush1.bf16.msra.mxu0 0
    %471 = vmatprep.subr.bf16.mxu0 0
    %472 = vmatpush1.bf16.msra.mxu0 0
    %473 = vmatprep.subr.bf16.mxu0 0
    %474 = vmatpush1.bf16.msra.mxu0 0
    %475 = vmatprep.subr.bf16.mxu0 0
    %476 = vmatpush1.bf16.msra.mxu0 0
    %477 = vmatprep.subr.bf16.mxu0 0
    %478 = vmatpush1.bf16.msra.mxu0 0
    %479 = vmatprep.subr.bf16.mxu0 0
    %480 = vmatpush1.bf16.msra.mxu0 0
    %481 = vmatprep.mubr.bf16.mxu0 0
    %482 = vmatmul.mubr.bf16.gmra.mrb[0].mxu0 %v440
    %v483 = vpop.f32.mrb[0].mxu0
    %v484 = vadd.f32 %v426, %v483
    %v485 = vpop.f32.mrb[0].mxu0
    %v486 = vadd.f32 %v430, %v485
    %v487 = vpop.f32.mrb[0].mxu0
    %v488 = vpop.f32.mrb[0].mxu0
    %489 = vdwg.mxu0
    %v490 = vpack.c.bf16 %v484, %v484
    %v491 = vpack.c.bf16 %v486, %v486
    %v494 = vcombine.low %v490, %v491
    %v496 = vunpack.c.l.s4 1966171168
    %v497 = vunpack.c.0.s8 %v496
    %v498 = vlaneseq
    %v499 = vshrl.u32 %v498, 7
    %v500 = vsub.s32 %v497, %v499
    %v501 = vrot.slane %v494, %v500
    %v503 = vunpack.c.l.s4 1966171168
    %v504 = vunpack.c.0.s8 %v503
    %v505 = vlaneseq
    %v506 = vshrl.u32 %v505, 7
    %v507 = vsub.s32 %v504, %v506
    %v508 = vrot.slane %v501, %v507
    %510 = vst [vmem:[%s10] sm:$0x3] %v508
    // Predicated region
    $region34: #{vae_forward.7} parent=1 // pred_check
      _
    $region35: #{vae_forward.7} parent=1 // pred_check_branch
      %512 = sbr.rel (0) target = $region37
    $region36: #{vae_forward.7} parent=1 // pred_region
      %s514 = ssub.s32 32, 32
      %515 = vsyncadd [#allocation3], %s514
      %s517 = sshll.u32 [#allocation2], 4
      %s518 = int_to_ptr.vmem [resolvable:$true] %s517
      %520 = dma.vmem_to_hbm [thread:$0]  %s518, 32, %s8, [#allocation3]
    $region37: #{vae_forward.7} parent=1 // pred_fallthru
      _
    // Predicated region
    $region38: #{vae_forward.7} parent=1 // pred_check
      _
    $region39: #{vae_forward.7} parent=1 // pred_check_branch
      %522 = sbr.rel (0) target = $region41
    $region40: #{vae_forward.7} parent=1 // pred_region
      %s524 = ssub.s32 32, 32
      %525 = vsyncadd [#allocation5], %s524
      %s527 = sshll.u32 [#allocation4], 4
      %s528 = int_to_ptr.vmem [resolvable:$true] %s527
      %530 = dma.vmem_to_hbm [thread:$0]  %s528, 32, %s9, [#allocation5]
    $region41: #{vae_forward.7} parent=1 // pred_fallthru
      _
    // Predicated region
    $region42: #{vae_forward.7} parent=1 // pred_check
      _
    $region43: #{vae_forward.7} parent=1 // pred_check_branch
      %532 = sbr.rel (0) target = $region45
    $region44: #{vae_forward.7} parent=1 // pred_region
      _
    $region45: #{vae_forward.7} parent=1 // pred_fallthru
      _
    // Predicated region
    $region46: #{vae_forward.7} parent=1 // pred_check
      _
    $region47: #{vae_forward.7} parent=1 // pred_check_branch
      %534 = sbr.rel (0) target = $region49
    $region48: #{vae_forward.7} parent=1 // pred_region
      %535 = dma.done [#allocation3], 32
    $region49: #{vae_forward.7} parent=1 // pred_fallthru
      _
    // Predicated region
    $region50: #{vae_forward.7} parent=1 // pred_check
      _
    $region51: #{vae_forward.7} parent=1 // pred_check_branch
      %537 = sbr.rel (0) target = $region53
    $region52: #{vae_forward.7} parent=1 // pred_region
      %538 = dma.done [#allocation5], 32
    $region53: #{vae_forward.7} parent=1 // pred_fallthru
      _
    // Predicated region
    $region54: #{vae_forward.7} parent=1 // pred_check
      _
    $region55: #{vae_forward.7} parent=1 // pred_check_branch
      %540 = sbr.rel (0) target = $region57
    $region56: #{vae_forward.7} parent=1 // pred_region
      _
    $region57: #{vae_forward.7} parent=1 // pred_fallthru
      _
    %541 = vsyncpa [#allocation3], 1
    %542 = vsyncpa [#allocation5], 1

// kernel: vae_forward.5
$region0: #{vae_forward.5}
  #allocation0 [shape = 'u32[]', space=smem, size = 0x4, offset = 0x4, fixed_abs, tag = 'smem constant byte address 0x4 - core index']
  #allocation1 [shape = 'u32[144,128]{1,0:T(1,128)}', space=vmem, size = 0x12000, scoped, tag = 'internal scratch']
  #allocation2 [shape = 'f32[4,8,64]{2,1,0:T(8,128)}', space=vmem, size = 0x4000, scoped, tag = 'scratch operand']
  %s0 = inlined_call_operand.vmem [shape: bf16[2,8,128], index: 0, kind: input, shape index: {}]
  %s1 = inlined_call_operand.vmem [shape: bf16[8,128,64], index: 1, kind: input, shape index: {}]
  %s2 = inlined_call_operand.vmem [shape: f32[1,64], index: 2, kind: input, shape index: {}]
  %s3 = inlined_call_operand.vmem [shape: bf16[2,8,64], index: 3, kind: output, shape index: {}]
  %s4 = sld [smem:[#allocation0]]
  $region45: #{vae_forward.5} parent=0
    _
  %s6 = ssub.s32 1, %s4
  %s7 = scalar_select 0, %s6, %s4
  loop: start=0, step=1, limit=4
  $region2: #{vae_forward.5} parent=0 // loop_pre_header
    _
  $region3: #{vae_forward.5} parent=0 // loop_header
    %s9 = sphi 0, %s13
    %p10 = scmp.ge.s32.totalorder %s9, 4
    %s19 = sphi 0, %s21
    %s22 = sphi 0, %s19
    %s23 = sphi 0, %s22
    %s39 = sphi 0, %s23
    %s43 = sphi 0, %s43
    %s45 = sphi 0, %s43
    %s46 = sphi 0, %s45
    %s60 = sphi 0, %s46
    %s64 = sphi 0, %s64
    %s66 = sphi 0, %s64
    %s67 = sphi 0, %s66
    %s81 = sphi 0, %s67
    %s87 = sphi 0, %s89
    %s90 = sphi 0, %s87
    %s91 = sphi 0, %s90
    %s107 = sphi 0, %s91
  $region4: #{vae_forward.5} parent=0 // loop_header_branch
    %12 = sbr.rel (%p10) target = $region8
  $region5: #{vae_forward.5} parent=0 // loop_body
    %s14 = ssub.s32 %s9, 1
    %s15 = ssub.s32 %s9, 2
    %s16 = sadd.s32 %s9, 1
    %s17 = ssub.s32 %s9, %s16
    %p18 = scmp.eq.s32.totalorder %s17, 0
    %s20 = sadd.s32 %s19, 1
    %s21 = scalar_select %p18, %s19, %s20
    %p24 = pneg %p18
    %p25 = scmp.eq.s32.totalorder %s9, 1
    %p26 = por %p24, %p25
    %p27 = scmp.ne.s32.totalorder %s19, %s22
    %p28 = scmp.eq.s32.totalorder %s9, 0
    %p29 = por %p27, %p28
    %p30 = scmp.ne.s32.totalorder %s19, %s22
    %p31 = scmp.eq.s32.totalorder %s14, 1
    %p32 = por %p30, %p31
    %p33 = scmp.ne.s32.totalorder %s22, %s23
    %p34 = scmp.eq.s32.totalorder %s14, 0
    %p35 = por %p33, %p34
    %p36 = scmp.ne.s32.totalorder %s22, %s23
    %p37 = scmp.eq.s32.totalorder %s15, 1
    %p38 = por %p36, %p37
    %p40 = scmp.ne.s32.totalorder %s23, %s39
    %p41 = scmp.eq.s32.totalorder %s15, 0
    %p42 = por %p40, %p41
    %s44 = sadd.s32 %s43, 1
    %p47 = scmp.eq.s32.totalorder %s9, 1
    %p48 = scmp.ne.s32.totalorder %s43, %s45
    %p49 = scmp.eq.s32.totalorder %s9, 0
    %p50 = por %p48, %p49
    %p51 = scmp.ne.s32.totalorder %s43, %s45
    %p52 = scmp.eq.s32.totalorder %s14, 1
    %p53 = por %p51, %p52
    %p54 = scmp.ne.s32.totalorder %s45, %s46
    %p55 = scmp.eq.s32.totalorder %s14, 0
    %p56 = por %p54, %p55
    %p57 = scmp.ne.s32.totalorder %s45, %s46
    %p58 = scmp.eq.s32.totalorder %s15, 1
    %p59 = por %p57, %p58
    %p61 = scmp.ne.s32.totalorder %s46, %s60
    %p62 = scmp.eq.s32.totalorder %s15, 0
    %p63 = por %p61, %p62
    %s65 = sadd.s32 %s64, 1
    %p68 = scmp.eq.s32.totalorder %s9, 1
    %p69 = scmp.ne.s32.totalorder %s64, %s66
    %p70 = scmp.eq.s32.totalorder %s9, 0
    %p71 = por %p69, %p70
    %p72 = scmp.ne.s32.totalorder %s64, %s66
    %p73 = scmp.eq.s32.totalorder %s14, 1
    %p74 = por %p72, %p73
    %p75 = scmp.ne.s32.totalorder %s66, %s67
    %p76 = scmp.eq.s32.totalorder %s14, 0
    %p77 = por %p75, %p76
    %p78 = scmp.ne.s32.totalorder %s66, %s67
    %p79 = scmp.eq.s32.totalorder %s15, 1
    %p80 = por %p78, %p79
    %p82 = scmp.ne.s32.totalorder %s67, %s81
    %p83 = scmp.eq.s32.totalorder %s15, 0
    %p84 = por %p82, %p83
    %s85 = ssub.s32 %s9, %s16
    %p86 = scmp.eq.s32.totalorder %s85, 0
    %s88 = sadd.s32 %s87, 1
    %s89 = scalar_select %p86, %s87, %s88
    %p92 = pneg %p86
    %p93 = scmp.eq.s32.totalorder %s9, 1
    %p94 = por %p92, %p93
    %p95 = scmp.ne.s32.totalorder %s87, %s90
    %p96 = scmp.eq.s32.totalorder %s9, 0
    %p97 = por %p95, %p96
    %p98 = scmp.ne.s32.totalorder %s87, %s90
    %p99 = scmp.eq.s32.totalorder %s14, 1
    %p100 = por %p98, %p99
    %p101 = scmp.ne.s32.totalorder %s90, %s91
    %p102 = scmp.eq.s32.totalorder %s14, 0
    %p103 = por %p101, %p102
    %p104 = scmp.ne.s32.totalorder %s90, %s91
    %p105 = scmp.eq.s32.totalorder %s15, 1
    %p106 = por %p104, %p105
    %p108 = scmp.ne.s32.totalorder %s91, %s107
    %p109 = scmp.eq.s32.totalorder %s15, 0
    %p110 = por %p108, %p109
    %p111 = scmp.le.s32.totalorder 1, %s9
    %p112 = scmp.lt.s32.totalorder %s9, 3
    %p113 = pnand %p111, %p112
    %p114 = pneg %p113
    // Predicated region
    $region9: #{vae_forward.5} parent=5 // pred_check
      _
    $region10: #{vae_forward.5} parent=5 // pred_check_branch
      %116 = sbr.rel (%p113) target = $region12
    $region11: #{vae_forward.5} parent=5 // pred_region
      %s117 = ssub.s32 %s9, 1
      // Predicated region
      $region13: #{vae_forward.5} parent=11 // pred_check
        %p118 = pneg %p56
      $region14: #{vae_forward.5} parent=11 // pred_check_branch
        %120 = sbr.rel (%p118) target = $region16
      $region15: #{vae_forward.5} parent=11 // pred_region
        _
      $region16: #{vae_forward.5} parent=11 // pred_fallthru
        _
      // Predicated region
      $region17: #{vae_forward.5} parent=11 // pred_check
        %p121 = pneg %p77
      $region18: #{vae_forward.5} parent=11 // pred_check_branch
        %123 = sbr.rel (%p121) target = $region20
      $region19: #{vae_forward.5} parent=11 // pred_region
        _
      $region20: #{vae_forward.5} parent=11 // pred_fallthru
        _
    $region12: #{vae_forward.5} parent=5 // pred_fallthru
      _
    %p124 = scmp.lt.s32.totalorder %s9, 2
    // Predicated region
    $region21: #{vae_forward.5} parent=5 // pred_check
      %p125 = pneg %p124
    $region22: #{vae_forward.5} parent=5 // pred_check_branch
      %127 = sbr.rel (%p125) target = $region24
    $region23: #{vae_forward.5} parent=5 // pred_region
      // Predicated region
      $region25: #{vae_forward.5} parent=23 // pred_check
        %p128 = pneg %p29
      $region26: #{vae_forward.5} parent=23 // pred_check_branch
        %130 = sbr.rel (%p128) target = $region28
      $region27: #{vae_forward.5} parent=23 // pred_region
        %p131 = scmp.lt.s32.totalorder %s9, 1
        %s132 = scalar_select %p131, %s9, 1
        %s133 = smul.addr %s132, 4
        %s134 = scalar_lea.vmem %s0, %s133
      $region28: #{vae_forward.5} parent=23 // pred_fallthru
        _
    $region24: #{vae_forward.5} parent=5 // pred_fallthru
      _
    %p135 = scmp.le.s32.totalorder 1, %s9
    %p136 = scmp.lt.s32.totalorder %s9, 3
    %p137 = pnand %p135, %p136
    %p138 = pneg %p137
    // Predicated region
    $region29: #{vae_forward.5} parent=5 // pred_check
      _
    $region30: #{vae_forward.5} parent=5 // pred_check_branch
      %140 = sbr.rel (%p137) target = $region32
    $region31: #{vae_forward.5} parent=5 // pred_region
      %s141 = ssub.s32 %s9, 1
      %p142 = scmp.lt.s32.totalorder %s14, 1
      %s143 = scalar_select %p142, %s14, 1
      %s144 = smul.addr %s143, 4
      %s145 = scalar_lea.vmem %s0, %s144
      %p146 = pneg %p35
      %p147 = pneg %p32
      %p148 = pneg %p56
      %p149 = pneg %p53
      %p150 = pneg %p77
      %p151 = pneg %p74
      %p152 = pneg %p103
      %p153 = pneg %p100
      %p154 = scmp.lt.s32.totalorder %s14, 1
      %s155 = scalar_select %p154, %s14, 1
      %s156 = smul.addr %s155, 4
      %s157 = scalar_lea.vmem %s3, %s156
      %p158 = scmp.lt.s32.totalorder %s14, 1
      %s159 = scalar_select %p158, %s14, 1
      %s160 = smul.addr %s159, 4
      %s161 = scalar_lea.vmem %s0, %s160
      %p162 = scmp.lt.s32.totalorder %s14, 1
      %s163 = scalar_select %p162, %s14, 1
      %s164 = smul.addr %s163, 4
      %s165 = scalar_lea.vmem %s3, %s164
      %v167 = vld [vmem:[%s161] sm:$0xf]
      %v168 = vld [vmem:[%s1] sm:$0xf]
      %v169 = vld [vmem:[%s1 + $0x4] sm:$0xf]
      %v170 = vld [vmem:[%s1 + $0x8] sm:$0xf]
      %v171 = vld [vmem:[%s1 + $0xc] sm:$0xf]
      %v172 = vld [vmem:[%s1 + $0x10] sm:$0xf]
      %v173 = vld [vmem:[%s1 + $0x14] sm:$0xf]
      %v174 = vld [vmem:[%s1 + $0x18] sm:$0xf]
      %v175 = vld [vmem:[%s1 + $0x1c] sm:$0xf]
      %v176 = vld [vmem:[%s1 + $0x20] sm:$0xf]
      %v177 = vld [vmem:[%s1 + $0x24] sm:$0xf]
      %v178 = vld [vmem:[%s1 + $0x28] sm:$0xf]
      %v179 = vld [vmem:[%s1 + $0x2c] sm:$0xf]
      %v180 = vld [vmem:[%s1 + $0x30] sm:$0xf]
      %v181 = vld [vmem:[%s1 + $0x34] sm:$0xf]
      %v182 = vld [vmem:[%s1 + $0x38] sm:$0xf]
      %v183 = vld [vmem:[%s1 + $0x3c] sm:$0xf]
      %v200 = vunpack.c.l.b16 %v168
      %v201 = vunpack.c.l.b16 %v169
      %v202 = vunpack.c.l.b16 %v170
      %v203 = vunpack.c.l.b16 %v171
      %v204 = vunpack.c.l.b16 %v172
      %v205 = vunpack.c.l.b16 %v173
      %v206 = vunpack.c.l.b16 %v174
      %v207 = vunpack.c.l.b16 %v175
      %v208 = vunpack.c.l.b16 %v176
      %v209 = vunpack.c.l.b16 %v177
      %v210 = vunpack.c.l.b16 %v178
      %v211 = vunpack.c.l.b16 %v179
      %v212 = vunpack.c.l.b16 %v180
      %v213 = vunpack.c.l.b16 %v181
      %v214 = vunpack.c.l.b16 %v182
      %v215 = vunpack.c.l.b16 %v183
      %v216 = vpack.c.b16 %v201, %v200
      %v217 = vpack.c.b16 %v203, %v202
      %v218 = vpack.c.b16 %v205, %v204
      %v219 = vpack.c.b16 %v207, %v206
      %v220 = vpack.c.b16 %v209, %v208
      %v221 = vpack.c.b16 %v211, %v210
      %v222 = vpack.c.b16 %v213, %v212
      %v223 = vpack.c.b16 %v215, %v214
      %232 = vmatprep.subr.bf16.mxu0 0
      %233 = vmatpush1.bf16.msra.mxu0 %v216
      %234 = vmatprep.subr.bf16.mxu0 0
      %235 = vmatpush1.bf16.msra.mxu0 %v217
      %236 = vmatprep.subr.bf16.mxu0 0
      %237 = vmatpush1.bf16.msra.mxu0 %v218
      %238 = vmatprep.subr.bf16.mxu0 0
      %239 = vmatpush1.bf16.msra.mxu0 %v219
      %240 = vmatprep.subr.bf16.mxu0 0
      %241 = vmatpush1.bf16.msra.mxu0 %v220
      %242 = vmatprep.subr.bf16.mxu0 0
      %243 = vmatpush1.bf16.msra.mxu0 %v221
      %244 = vmatprep.subr.bf16.mxu0 0
      %245 = vmatpush1.bf16.msra.mxu0 %v222
      %246 = vmatprep.subr.bf16.mxu0 0
      %247 = vmatpush1.bf16.msra.mxu0 %v223
      %248 = vmatprep.subr.bf16.mxu0 0
      %249 = vmatpush1.bf16.msra.mxu0 0
      %250 = vmatprep.subr.bf16.mxu0 0
      %251 = vmatpush1.bf16.msra.mxu0 0
      %252 = vmatprep.subr.bf16.mxu0 0
      %253 = vmatpush1.bf16.msra.mxu0 0
      %254 = vmatprep.subr.bf16.mxu0 0
      %255 = vmatpush1.bf16.msra.mxu0 0
      %256 = vmatprep.subr.bf16.mxu0 0
      %257 = vmatpush1.bf16.msra.mxu0 0
      %258 = vmatprep.subr.bf16.mxu0 0
      %259 = vmatpush1.bf16.msra.mxu0 0
      %260 = vmatprep.subr.bf16.mxu0 0
      %261 = vmatpush1.bf16.msra.mxu0 0
      %262 = vmatprep.subr.bf16.mxu0 0
      %263 = vmatpush1.bf16.msra.mxu0 0
      %264 = vmatprep.mubr.bf16.mxu0 0
      %265 = vmatmul.mubr.bf16.gmra.mrb[0].mxu0 %v167
      %v266 = vpop.f32.mrb[0].mxu0
      %v267 = vadd.f32 0.0, %v266
      %v268 = vpop.f32.mrb[0].mxu0
      %v269 = vpop.f32.mrb[0].mxu0
      %v270 = vpop.f32.mrb[0].mxu0
      %271 = vdwg.mxu0
      %vm272 = vcmask 523264
      %273 = vst.msk [vmem:[#allocation2] sm:$0xff] %vm272, %v267
      %v274 = vld [vmem:[#allocation2 + $0x1] sm:$0x7f]
      %s275 = scalar_lea.vmem %s1, 64
      %v276 = vld [vmem:[%s275] sm:$0xf]
      %v277 = vld [vmem:[%s275 + $0x4] sm:$0xf]
      %v278 = vld [vmem:[%s275 + $0x8] sm:$0xf]
      %v279 = vld [vmem:[%s275 + $0xc] sm:$0xf]
      %v280 = vld [vmem:[%s275 + $0x10] sm:$0xf]
      %v281 = vld [vmem:[%s275 + $0x14] sm:$0xf]
      %v282 = vld [vmem:[%s275 + $0x18] sm:$0xf]
      %v283 = vld [vmem:[%s275 + $0x1c] sm:$0xf]
      %v284 = vld [vmem:[%s275 + $0x20] sm:$0xf]
      %v285 = vld [vmem:[%s275 + $0x24] sm:$0xf]
      %v286 = vld [vmem:[%s275 + $0x28] sm:$0xf]
      %v287 = vld [vmem:[%s275 + $0x2c] sm:$0xf]
      %v288 = vld [vmem:[%s275 + $0x30] sm:$0xf]
      %v289 = vld [vmem:[%s275 + $0x34] sm:$0xf]
      %v290 = vld [vmem:[%s275 + $0x38] sm:$0xf]
      %v291 = vld [vmem:[%s275 + $0x3c] sm:$0xf]
      %v308 = vunpack.c.l.b16 %v276
      %v309 = vunpack.c.l.b16 %v277
      %v310 = vunpack.c.l.b16 %v278
      %v311 = vunpack.c.l.b16 %v279
      %v312 = vunpack.c.l.b16 %v280
      %v313 = vunpack.c.l.b16 %v281
      %v314 = vunpack.c.l.b16 %v282
      %v315 = vunpack.c.l.b16 %v283
      %v316 = vunpack.c.l.b16 %v284
      %v317 = vunpack.c.l.b16 %v285
      %v318 = vunpack.c.l.b16 %v286
      %v319 = vunpack.c.l.b16 %v287
      %v320 = vunpack.c.l.b16 %v288
      %v321 = vunpack.c.l.b16 %v289
      %v322 = vunpack.c.l.b16 %v290
      %v323 = vunpack.c.l.b16 %v291
      %v324 = vpack.c.b16 %v309, %v308
      %v325 = vpack.c.b16 %v311, %v310
      %v326 = vpack.c.b16 %v313, %v312
      %v327 = vpack.c.b16 %v315, %v314
      %v328 = vpack.c.b16 %v317, %v316
      %v329 = vpack.c.b16 %v319, %v318
      %v330 = vpack.c.b16 %v321, %v320
      %v331 = vpack.c.b16 %v323, %v322
      %340 = vmatprep.subr.bf16.mxu0 0
      %341 = vmatpush1.bf16.msra.mxu0 %v324
      %342 = vmatprep.subr.bf16.mxu0 0
      %343 = vmatpush1.bf16.msra.mxu0 %v325
      %344 = vmatprep.subr.bf16.mxu0 0
      %345 = vmatpush1.bf16.msra.mxu0 %v326
      %346 = vmatprep.subr.bf16.mxu0 0
      %347 = vmatpush1.bf16.msra.mxu0 %v327
      %348 = vmatprep.subr.bf16.mxu0 0
      %349 = vmatpush1.bf16.msra.mxu0 %v328
      %350 = vmatprep.subr.bf16.mxu0 0
      %351 = vmatpush1.bf16.msra.mxu0 %v329
      %352 = vmatprep.subr.bf16.mxu0 0
      %353 = vmatpush1.bf16.msra.mxu0 %v330
      %354 = vmatprep.subr.bf16.mxu0 0
      %355 = vmatpush1.bf16.msra.mxu0 %v331
      %356 = vmatprep.subr.bf16.mxu0 0
      %357 = vmatpush1.bf16.msra.mxu0 0
      %358 = vmatprep.subr.bf16.mxu0 0
      %359 = vmatpush1.bf16.msra.mxu0 0
      %360 = vmatprep.subr.bf16.mxu0 0
      %361 = vmatpush1.bf16.msra.mxu0 0
      %362 = vmatprep.subr.bf16.mxu0 0
      %363 = vmatpush1.bf16.msra.mxu0 0
      %364 = vmatprep.subr.bf16.mxu0 0
      %365 = vmatpush1.bf16.msra.mxu0 0
      %366 = vmatprep.subr.bf16.mxu0 0
      %367 = vmatpush1.bf16.msra.mxu0 0
      %368 = vmatprep.subr.bf16.mxu0 0
      %369 = vmatpush1.bf16.msra.mxu0 0
      %370 = vmatprep.subr.bf16.mxu0 0
      %371 = vmatpush1.bf16.msra.mxu0 0
      %372 = vmatprep.mubr.bf16.mxu0 0
      %373 = vmatmul.mubr.bf16.gmra.mrb[0].mxu0 %v167
      %v374 = vpop.f32.mrb[0].mxu0
      %v375 = vadd.f32 0.0, %v374
      %v376 = vpop.f32.mrb[0].mxu0
      %v377 = vpop.f32.mrb[0].mxu0
      %v378 = vpop.f32.mrb[0].mxu0
      %379 = vdwg.mxu0
      %v380 = vadd.f32 %v274, %v375
      %vm381 = vcmask 522240
      %382 = vst.msk [vmem:[#allocation2 + $0x1] sm:$0x7f] %vm381, %v380
      %s383 = scalar_lea.vmem %s1, 128
      %v384 = vld [vmem:[%s383] sm:$0xf]
      %v385 = vld [vmem:[%s383 + $0x4] sm:$0xf]
      %v386 = vld [vmem:[%s383 + $0x8] sm:$0xf]
      %v387 = vld [vmem:[%s383 + $0xc] sm:$0xf]
      %v388 = vld [vmem:[%s383 + $0x10] sm:$0xf]
      %v389 = vld [vmem:[%s383 + $0x14] sm:$0xf]
      %v390 = vld [vmem:[%s383 + $0x18] sm:$0xf]
      %v391 = vld [vmem:[%s383 + $0x1c] sm:$0xf]
      %v392 = vld [vmem:[%s383 + $0x20] sm:$0xf]
      %v393 = vld [vmem:[%s383 + $0x24] sm:$0xf]
      %v394 = vld [vmem:[%s383 + $0x28] sm:$0xf]
      %v395 = vld [vmem:[%s383 + $0x2c] sm:$0xf]
      %v396 = vld [vmem:[%s383 + $0x30] sm:$0xf]
      %v397 = vld [vmem:[%s383 + $0x34] sm:$0xf]
      %v398 = vld [vmem:[%s383 + $0x38] sm:$0xf]
      %v399 = vld [vmem:[%s383 + $0x3c] sm:$0xf]
      %v416 = vunpack.c.l.b16 %v384
      %v417 = vunpack.c.l.b16 %v385
      %v418 = vunpack.c.l.b16 %v386
      %v419 = vunpack.c.l.b16 %v387
      %v420 = vunpack.c.l.b16 %v388
      %v421 = vunpack.c.l.b16 %v389
      %v422 = vunpack.c.l.b16 %v390
      %v423 = vunpack.c.l.b16 %v391
      %v424 = vunpack.c.l.b16 %v392
      %v425 = vunpack.c.l.b16 %v393
      %v426 = vunpack.c.l.b16 %v394
      %v427 = vunpack.c.l.b16 %v395
      %v428 = vunpack.c.l.b16 %v396
      %v429 = vunpack.c.l.b16 %v397
      %v430 = vunpack.c.l.b16 %v398
      %v431 = vunpack.c.l.b16 %v399
      %v432 = vpack.c.b16 %v417, %v416
      %v433 = vpack.c.b16 %v419, %v418
      %v434 = vpack.c.b16 %v421, %v420
      %v435 = vpack.c.b16 %v423, %v422
      %v436 = vpack.c.b16 %v425, %v424
      %v437 = vpack.c.b16 %v427, %v426
      %v438 = vpack.c.b16 %v429, %v428
      %v439 = vpack.c.b16 %v431, %v430
      %448 = vmatprep.subr.bf16.mxu0 0
      %449 = vmatpush1.bf16.msra.mxu0 %v432
      %450 = vmatprep.subr.bf16.mxu0 0
      %451 = vmatpush1.bf16.msra.mxu0 %v433
      %452 = vmatprep.subr.bf16.mxu0 0
      %453 = vmatpush1.bf16.msra.mxu0 %v434
      %454 = vmatprep.subr.bf16.mxu0 0
      %455 = vmatpush1.bf16.msra.mxu0 %v435
      %456 = vmatprep.subr.bf16.mxu0 0
      %457 = vmatpush1.bf16.msra.mxu0 %v436
      %458 = vmatprep.subr.bf16.mxu0 0
      %459 = vmatpush1.bf16.msra.mxu0 %v437
      %460 = vmatprep.subr.bf16.mxu0 0
      %461 = vmatpush1.bf16.msra.mxu0 %v438
      %462 = vmatprep.subr.bf16.mxu0 0
      %463 = vmatpush1.bf16.msra.mxu0 %v439
      %464 = vmatprep.subr.bf16.mxu0 0
      %465 = vmatpush1.bf16.msra.mxu0 0
      %466 = vmatprep.subr.bf16.mxu0 0
      %467 = vmatpush1.bf16.msra.mxu0 0
      %468 = vmatprep.subr.bf16.mxu0 0
      %469 = vmatpush1.bf16.msra.mxu0 0
      %470 = vmatprep.subr.bf16.mxu0 0
      %471 = vmatpush1.bf16.msra.mxu0 0
      %472 = vmatprep.subr.bf16.mxu0 0
      %473 = vmatpush1.bf16.msra.mxu0 0
      %474 = vmatprep.subr.bf16.mxu0 0
      %475 = vmatpush1.bf16.msra.mxu0 0
      %476 = vmatprep.subr.bf16.mxu0 0
      %477 = vmatpush1.bf16.msra.mxu0 0
      %478 = vmatprep.subr.bf16.mxu0 0
      %479 = vmatpush1.bf16.msra.mxu0 0
      %480 = vmatprep.mubr.bf16.mxu0 0
      %481 = vmatmul.mubr.bf16.gmra.mrb[0].mxu0 %v167
      %v482 = vpop.f32.mrb[0].mxu0
      %v483 = vadd.f32 0.0, %v482
      %v484 = vpop.f32.mrb[0].mxu0
      %v485 = vpop.f32.mrb[0].mxu0
      %v486 = vpop.f32.mrb[0].mxu0
      %487 = vdwg.mxu0
      %s488 = scalar_lea.vmem [#allocation2], 8
      %489 = vst.msk [vmem:[%s488] sm:$0xff] %vm272, %v483
      %v490 = vld [vmem:[%s488 + $0x1] sm:$0x7f]
      %s491 = scalar_lea.vmem %s1, 192
      %v492 = vld [vmem:[%s491] sm:$0xf]
      %v493 = vld [vmem:[%s491 + $0x4] sm:$0xf]
      %v494 = vld [vmem:[%s491 + $0x8] sm:$0xf]
      %v495 = vld [vmem:[%s491 + $0xc] sm:$0xf]
      %v496 = vld [vmem:[%s491 + $0x10] sm:$0xf]
      %v497 = vld [vmem:[%s491 + $0x14] sm:$0xf]
      %v498 = vld [vmem:[%s491 + $0x18] sm:$0xf]
      %v499 = vld [vmem:[%s491 + $0x1c] sm:$0xf]
      %v500 = vld [vmem:[%s491 + $0x20] sm:$0xf]
      %v501 = vld [vmem:[%s491 + $0x24] sm:$0xf]
      %v502 = vld [vmem:[%s491 + $0x28] sm:$0xf]
      %v503 = vld [vmem:[%s491 + $0x2c] sm:$0xf]
      %v504 = vld [vmem:[%s491 + $0x30] sm:$0xf]
      %v505 = vld [vmem:[%s491 + $0x34] sm:$0xf]
      %v506 = vld [vmem:[%s491 + $0x38] sm:$0xf]
      %v507 = vld [vmem:[%s491 + $0x3c] sm:$0xf]
      %v524 = vunpack.c.l.b16 %v492
      %v525 = vunpack.c.l.b16 %v493
      %v526 = vunpack.c.l.b16 %v494
      %v527 = vunpack.c.l.b16 %v495
      %v528 = vunpack.c.l.b16 %v496
      %v529 = vunpack.c.l.b16 %v497
      %v530 = vunpack.c.l.b16 %v498
      %v531 = vunpack.c.l.b16 %v499
      %v532 = vunpack.c.l.b16 %v500
      %v533 = vunpack.c.l.b16 %v501
      %v534 = vunpack.c.l.b16 %v502
      %v535 = vunpack.c.l.b16 %v503
      %v536 = vunpack.c.l.b16 %v504
      %v537 = vunpack.c.l.b16 %v505
      %v538 = vunpack.c.l.b16 %v506
      %v539 = vunpack.c.l.b16 %v507
      %v540 = vpack.c.b16 %v525, %v524
      %v541 = vpack.c.b16 %v527, %v526
      %v542 = vpack.c.b16 %v529, %v528
      %v543 = vpack.c.b16 %v531, %v530
      %v544 = vpack.c.b16 %v533, %v532
      %v545 = vpack.c.b16 %v535, %v534
      %v546 = vpack.c.b16 %v537, %v536
      %v547 = vpack.c.b16 %v539, %v538
      %556 = vmatprep.subr.bf16.mxu0 0
      %557 = vmatpush1.bf16.msra.mxu0 %v540
      %558 = vmatprep.subr.bf16.mxu0 0
      %559 = vmatpush1.bf16.msra.mxu0 %v541
      %560 = vmatprep.subr.bf16.mxu0 0
      %561 = vmatpush1.bf16.msra.mxu0 %v542
      %562 = vmatprep.subr.bf16.mxu0 0
      %563 = vmatpush1.bf16.msra.mxu0 %v543
      %564 = vmatprep.subr.bf16.mxu0 0
      %565 = vmatpush1.bf16.msra.mxu0 %v544
      %566 = vmatprep.subr.bf16.mxu0 0
      %567 = vmatpush1.bf16.msra.mxu0 %v545
      %568 = vmatprep.subr.bf16.mxu0 0
      %569 = vmatpush1.bf16.msra.mxu0 %v546
      %570 = vmatprep.subr.bf16.mxu0 0
      %571 = vmatpush1.bf16.msra.mxu0 %v547
      %572 = vmatprep.subr.bf16.mxu0 0
      %573 = vmatpush1.bf16.msra.mxu0 0
      %574 = vmatprep.subr.bf16.mxu0 0
      %575 = vmatpush1.bf16.msra.mxu0 0
      %576 = vmatprep.subr.bf16.mxu0 0
      %577 = vmatpush1.bf16.msra.mxu0 0
      %578 = vmatprep.subr.bf16.mxu0 0
      %579 = vmatpush1.bf16.msra.mxu0 0
      %580 = vmatprep.subr.bf16.mxu0 0
      %581 = vmatpush1.bf16.msra.mxu0 0
      %582 = vmatprep.subr.bf16.mxu0 0
      %583 = vmatpush1.bf16.msra.mxu0 0
      %584 = vmatprep.subr.bf16.mxu0 0
      %585 = vmatpush1.bf16.msra.mxu0 0
      %586 = vmatprep.subr.bf16.mxu0 0
      %587 = vmatpush1.bf16.msra.mxu0 0
      %588 = vmatprep.mubr.bf16.mxu0 0
      %589 = vmatmul.mubr.bf16.gmra.mrb[0].mxu0 %v167
      %v590 = vpop.f32.mrb[0].mxu0
      %v591 = vadd.f32 0.0, %v590
      %v592 = vpop.f32.mrb[0].mxu0
      %v593 = vpop.f32.mrb[0].mxu0
      %v594 = vpop.f32.mrb[0].mxu0
      %595 = vdwg.mxu0
      %v596 = vadd.f32 %v490, %v591
      %597 = vst.msk [vmem:[%s488 + $0x1] sm:$0x7f] %vm381, %v596
      %s598 = scalar_lea.vmem %s1, 256
      %v599 = vld [vmem:[%s598] sm:$0xf]
      %v600 = vld [vmem:[%s598 + $0x4] sm:$0xf]
      %v601 = vld [vmem:[%s598 + $0x8] sm:$0xf]
      %v602 = vld [vmem:[%s598 + $0xc] sm:$0xf]
      %v603 = vld [vmem:[%s598 + $0x10] sm:$0xf]
      %v604 = vld [vmem:[%s598 + $0x14] sm:$0xf]
      %v605 = vld [vmem:[%s598 + $0x18] sm:$0xf]
      %v606 = vld [vmem:[%s598 + $0x1c] sm:$0xf]
      %v607 = vld [vmem:[%s598 + $0x20] sm:$0xf]
      %v608 = vld [vmem:[%s598 + $0x24] sm:$0xf]
      %v609 = vld [vmem:[%s598 + $0x28] sm:$0xf]
      %v610 = vld [vmem:[%s598 + $0x2c] sm:$0xf]
      %v611 = vld [vmem:[%s598 + $0x30] sm:$0xf]
      %v612 = vld [vmem:[%s598 + $0x34] sm:$0xf]
      %v613 = vld [vmem:[%s598 + $0x38] sm:$0xf]
      %v614 = vld [vmem:[%s598 + $0x3c] sm:$0xf]
      %v631 = vunpack.c.l.b16 %v599
      %v632 = vunpack.c.l.b16 %v600
      %v633 = vunpack.c.l.b16 %v601
      %v634 = vunpack.c.l.b16 %v602
      %v635 = vunpack.c.l.b16 %v603
      %v636 = vunpack.c.l.b16 %v604
      %v637 = vunpack.c.l.b16 %v605
      %v638 = vunpack.c.l.b16 %v606
      %v639 = vunpack.c.l.b16 %v607
      %v640 = vunpack.c.l.b16 %v608
      %v641 = vunpack.c.l.b16 %v609
      %v642 = vunpack.c.l.b16 %v610
      %v643 = vunpack.c.l.b16 %v611
      %v644 = vunpack.c.l.b16 %v612
      %v645 = vunpack.c.l.b16 %v613
      %v646 = vunpack.c.l.b16 %v614
      %v647 = vpack.c.b16 %v632, %v631
      %v648 = vpack.c.b16 %v634, %v633
      %v649 = vpack.c.b16 %v636, %v635
      %v650 = vpack.c.b16 %v638, %v637
      %v651 = vpack.c.b16 %v640, %v639
      %v652 = vpack.c.b16 %v642, %v641
      %v653 = vpack.c.b16 %v644, %v643
      %v654 = vpack.c.b16 %v646, %v645
      %663 = vmatprep.subr.bf16.mxu0 0
      %664 = vmatpush1.bf16.msra.mxu0 %v647
      %665 = vmatprep.subr.bf16.mxu0 0
      %666 = vmatpush1.bf16.msra.mxu0 %v648
      %667 = vmatprep.subr.bf16.mxu0 0
      %668 = vmatpush1.bf16.msra.mxu0 %v649
      %669 = vmatprep.subr.bf16.mxu0 0
      %670 = vmatpush1.bf16.msra.mxu0 %v650
      %671 = vmatprep.subr.bf16.mxu0 0
      %672 = vmatpush1.bf16.msra.mxu0 %v651
      %673 = vmatprep.subr.bf16.mxu0 0
      %674 = vmatpush1.bf16.msra.mxu0 %v652
      %675 = vmatprep.subr.bf16.mxu0 0
      %676 = vmatpush1.bf16.msra.mxu0 %v653
      %677 = vmatprep.subr.bf16.mxu0 0
      %678 = vmatpush1.bf16.msra.mxu0 %v654
      %679 = vmatprep.subr.bf16.mxu0 0
      %680 = vmatpush1.bf16.msra.mxu0 0
      %681 = vmatprep.subr.bf16.mxu0 0
      %682 = vmatpush1.bf16.msra.mxu0 0
      %683 = vmatprep.subr.bf16.mxu0 0
      %684 = vmatpush1.bf16.msra.mxu0 0
      %685 = vmatprep.subr.bf16.mxu0 0
      %686 = vmatpush1.bf16.msra.mxu0 0
      %687 = vmatprep.subr.bf16.mxu0 0
      %688 = vmatpush1.bf16.msra.mxu0 0
      %689 = vmatprep.subr.bf16.mxu0 0
      %690 = vmatpush1.bf16.msra.mxu0 0
      %691 = vmatprep.subr.bf16.mxu0 0
      %692 = vmatpush1.bf16.msra.mxu0 0
      %693 = vmatprep.subr.bf16.mxu0 0
      %694 = vmatpush1.bf16.msra.mxu0 0
      %695 = vmatprep.mubr.bf16.mxu0 0
      %696 = vmatmul.mubr.bf16.gmra.mrb[0].mxu0 %v167
      %v697 = vpop.f32.mrb[0].mxu0
      %v698 = vadd.f32 0.0, %v697
      %v699 = vpop.f32.mrb[0].mxu0
      %v700 = vpop.f32.mrb[0].mxu0
      %v701 = vpop.f32.mrb[0].mxu0
      %702 = vdwg.mxu0
      %s703 = scalar_lea.vmem [#allocation2], 16
      %704 = vst.msk [vmem:[%s703] sm:$0xff] %vm272, %v698
      %v705 = vld [vmem:[%s703] sm:$0x7f]
      %s706 = scalar_lea.vmem %s1, 320
      %v707 = vld [vmem:[%s706] sm:$0xf]
      %v708 = vld [vmem:[%s706 + $0x4] sm:$0xf]
      %v709 = vld [vmem:[%s706 + $0x8] sm:$0xf]
      %v710 = vld [vmem:[%s706 + $0xc] sm:$0xf]
      %v711 = vld [vmem:[%s706 + $0x10] sm:$0xf]
      %v712 = vld [vmem:[%s706 + $0x14] sm:$0xf]
      %v713 = vld [vmem:[%s706 + $0x18] sm:$0xf]
      %v714 = vld [vmem:[%s706 + $0x1c] sm:$0xf]
      %v715 = vld [vmem:[%s706 + $0x20] sm:$0xf]
      %v716 = vld [vmem:[%s706 + $0x24] sm:$0xf]
      %v717 = vld [vmem:[%s706 + $0x28] sm:$0xf]
      %v718 = vld [vmem:[%s706 + $0x2c] sm:$0xf]
      %v719 = vld [vmem:[%s706 + $0x30] sm:$0xf]
      %v720 = vld [vmem:[%s706 + $0x34] sm:$0xf]
      %v721 = vld [vmem:[%s706 + $0x38] sm:$0xf]
      %v722 = vld [vmem:[%s706 + $0x3c] sm:$0xf]
      %v724 = vunpack.c.l.b16 %v167
      %v725 = vpack.c.b16 %v724, %v724
      %v727 = vshrl.u32 %v725, 16
      %v729 = vshll.u32 %v725, 16
      %v731 = vrot.slane %v729, 1
      %v732 = vor.u32 %v727, %v731
      %v750 = vunpack.c.l.b16 %v707
      %v751 = vunpack.c.l.b16 %v708
      %v752 = vunpack.c.l.b16 %v709
      %v753 = vunpack.c.l.b16 %v710
      %v754 = vunpack.c.l.b16 %v711
      %v755 = vunpack.c.l.b16 %v712
      %v756 = vunpack.c.l.b16 %v713
      %v757 = vunpack.c.l.b16 %v714
      %v758 = vunpack.c.l.b16 %v715
      %v759 = vunpack.c.l.b16 %v716
      %v760 = vunpack.c.l.b16 %v717
      %v761 = vunpack.c.l.b16 %v718
      %v762 = vunpack.c.l.b16 %v719
      %v763 = vunpack.c.l.b16 %v720
      %v764 = vunpack.c.l.b16 %v721
      %v765 = vunpack.c.l.b16 %v722
      %v766 = vpack.c.b16 %v751, %v750
      %v767 = vpack.c.b16 %v753, %v752
      %v768 = vpack.c.b16 %v755, %v754
      %v769 = vpack.c.b16 %v757, %v756
      %v770 = vpack.c.b16 %v759, %v758
      %v771 = vpack.c.b16 %v761, %v760
      %v772 = vpack.c.b16 %v763, %v762
      %v773 = vpack.c.b16 %v765, %v764
      %782 = vmatprep.subr.bf16.mxu0 0
      %783 = vmatpush1.bf16.msra.mxu0 %v766
      %784 = vmatprep.subr.bf16.mxu0 0
      %785 = vmatpush1.bf16.msra.mxu0 %v767
      %786 = vmatprep.subr.bf16.mxu0 0
      %787 = vmatpush1.bf16.msra.mxu0 %v768
      %788 = vmatprep.subr.bf16.mxu0 0
      %789 = vmatpush1.bf16.msra.mxu0 %v769
      %790 = vmatprep.subr.bf16.mxu0 0
      %791 = vmatpush1.bf16.msra.mxu0 %v770
      %792 = vmatprep.subr.bf16.mxu0 0
      %793 = vmatpush1.bf16.msra.mxu0 %v771
      %794 = vmatprep.subr.bf16.mxu0 0
      %795 = vmatpush1.bf16.msra.mxu0 %v772
      %796 = vmatprep.subr.bf16.mxu0 0
      %797 = vmatpush1.bf16.msra.mxu0 %v773
      %798 = vmatprep.subr.bf16.mxu0 0
      %799 = vmatpush1.bf16.msra.mxu0 0
      %800 = vmatprep.subr.bf16.mxu0 0
      %801 = vmatpush1.bf16.msra.mxu0 0
      %802 = vmatprep.subr.bf16.mxu0 0
      %803 = vmatpush1.bf16.msra.mxu0 0
      %804 = vmatprep.subr.bf16.mxu0 0
      %805 = vmatpush1.bf16.msra.mxu0 0
      %806 = vmatprep.subr.bf16.mxu0 0
      %807 = vmatpush1.bf16.msra.mxu0 0
      %808 = vmatprep.subr.bf16.mxu0 0
      %809 = vmatpush1.bf16.msra.mxu0 0
      %810 = vmatprep.subr.bf16.mxu0 0
      %811 = vmatpush1.bf16.msra.mxu0 0
      %812 = vmatprep.subr.bf16.mxu0 0
      %813 = vmatpush1.bf16.msra.mxu0 0
      %814 = vmatprep.mubr.bf16.mxu0 0
      %815 = vmatmul.mubr.bf16.gmra.mrb[0].mxu0 %v732
      %v816 = vpop.f32.mrb[0].mxu0
      %v817 = vadd.f32 0.0, %v816
      %v818 = vpop.f32.mrb[0].mxu0
      %v819 = vpop.f32.mrb[0].mxu0
      %v820 = vpop.f32.mrb[0].mxu0
      %821 = vdwg.mxu0
      %v822 = vadd.f32 %v705, %v817
      %823 = vst.msk [vmem:[%s703] sm:$0x7f] %vm381, %v822
      %s824 = scalar_lea.vmem %s1, 384
      %v825 = vld [vmem:[%s824] sm:$0xf]
      %v826 = vld [vmem:[%s824 + $0x4] sm:$0xf]
      %v827 = vld [vmem:[%s824 + $0x8] sm:$0xf]
      %v828 = vld [vmem:[%s824 + $0xc] sm:$0xf]
      %v829 = vld [vmem:[%s824 + $0x10] sm:$0xf]
      %v830 = vld [vmem:[%s824 + $0x14] sm:$0xf]
      %v831 = vld [vmem:[%s824 + $0x18] sm:$0xf]
      %v832 = vld [vmem:[%s824 + $0x1c] sm:$0xf]
      %v833 = vld [vmem:[%s824 + $0x20] sm:$0xf]
      %v834 = vld [vmem:[%s824 + $0x24] sm:$0xf]
      %v835 = vld [vmem:[%s824 + $0x28] sm:$0xf]
      %v836 = vld [vmem:[%s824 + $0x2c] sm:$0xf]
      %v837 = vld [vmem:[%s824 + $0x30] sm:$0xf]
      %v838 = vld [vmem:[%s824 + $0x34] sm:$0xf]
      %v839 = vld [vmem:[%s824 + $0x38] sm:$0xf]
      %v840 = vld [vmem:[%s824 + $0x3c] sm:$0xf]
      %v857 = vunpack.c.l.b16 %v825
      %v858 = vunpack.c.l.b16 %v826
      %v859 = vunpack.c.l.b16 %v827
      %v860 = vunpack.c.l.b16 %v828
      %v861 = vunpack.c.l.b16 %v829
      %v862 = vunpack.c.l.b16 %v830
      %v863 = vunpack.c.l.b16 %v831
      %v864 = vunpack.c.l.b16 %v832
      %v865 = vunpack.c.l.b16 %v833
      %v866 = vunpack.c.l.b16 %v834
      %v867 = vunpack.c.l.b16 %v835
      %v868 = vunpack.c.l.b16 %v836
      %v869 = vunpack.c.l.b16 %v837
      %v870 = vunpack.c.l.b16 %v838
      %v871 = vunpack.c.l.b16 %v839
      %v872 = vunpack.c.l.b16 %v840
      %v873 = vpack.c.b16 %v858, %v857
      %v874 = vpack.c.b16 %v860, %v859
      %v875 = vpack.c.b16 %v862, %v861
      %v876 = vpack.c.b16 %v864, %v863
      %v877 = vpack.c.b16 %v866, %v865
      %v878 = vpack.c.b16 %v868, %v867
      %v879 = vpack.c.b16 %v870, %v869
      %v880 = vpack.c.b16 %v872, %v871
      %889 = vmatprep.subr.bf16.mxu0 0
      %890 = vmatpush1.bf16.msra.mxu0 %v873
      %891 = vmatprep.subr.bf16.mxu0 0
      %892 = vmatpush1.bf16.msra.mxu0 %v874
      %893 = vmatprep.subr.bf16.mxu0 0
      %894 = vmatpush1.bf16.msra.mxu0 %v875
      %895 = vmatprep.subr.bf16.mxu0 0
      %896 = vmatpush1.bf16.msra.mxu0 %v876
      %897 = vmatprep.subr.bf16.mxu0 0
      %898 = vmatpush1.bf16.msra.mxu0 %v877
      %899 = vmatprep.subr.bf16.mxu0 0
      %900 = vmatpush1.bf16.msra.mxu0 %v878
      %901 = vmatprep.subr.bf16.mxu0 0
      %902 = vmatpush1.bf16.msra.mxu0 %v879
      %903 = vmatprep.subr.bf16.mxu0 0
      %904 = vmatpush1.bf16.msra.mxu0 %v880
      %905 = vmatprep.subr.bf16.mxu0 0
      %906 = vmatpush1.bf16.msra.mxu0 0
      %907 = vmatprep.subr.bf16.mxu0 0
      %908 = vmatpush1.bf16.msra.mxu0 0
      %909 = vmatprep.subr.bf16.mxu0 0
      %910 = vmatpush1.bf16.msra.mxu0 0
      %911 = vmatprep.subr.bf16.mxu0 0
      %912 = vmatpush1.bf16.msra.mxu0 0
      %913 = vmatprep.subr.bf16.mxu0 0
      %914 = vmatpush1.bf16.msra.mxu0 0
      %915 = vmatprep.subr.bf16.mxu0 0
      %916 = vmatpush1.bf16.msra.mxu0 0
      %917 = vmatprep.subr.bf16.mxu0 0
      %918 = vmatpush1.bf16.msra.mxu0 0
      %919 = vmatprep.subr.bf16.mxu0 0
      %920 = vmatpush1.bf16.msra.mxu0 0
      %921 = vmatprep.mubr.bf16.mxu0 0
      %922 = vmatmul.mubr.bf16.gmra.mrb[0].mxu0 %v167
      %v923 = vpop.f32.mrb[0].mxu0
      %v924 = vadd.f32 0.0, %v923
      %v925 = vpop.f32.mrb[0].mxu0
      %v926 = vpop.f32.mrb[0].mxu0
      %v927 = vpop.f32.mrb[0].mxu0
      %928 = vdwg.mxu0
      %s929 = scalar_lea.vmem [#allocation2], 24
      %930 = vst.msk [vmem:[%s929] sm:$0xff] %vm272, %v924
      %v931 = vld [vmem:[%s929] sm:$0x7f]
      %s932 = scalar_lea.vmem %s1, 448
      %v933 = vld [vmem:[%s932] sm:$0xf]
      %v934 = vld [vmem:[%s932 + $0x4] sm:$0xf]
      %v935 = vld [vmem:[%s932 + $0x8] sm:$0xf]
      %v936 = vld [vmem:[%s932 + $0xc] sm:$0xf]
      %v937 = vld [vmem:[%s932 + $0x10] sm:$0xf]
      %v938 = vld [vmem:[%s932 + $0x14] sm:$0xf]
      %v939 = vld [vmem:[%s932 + $0x18] sm:$0xf]
      %v940 = vld [vmem:[%s932 + $0x1c] sm:$0xf]
      %v941 = vld [vmem:[%s932 + $0x20] sm:$0xf]
      %v942 = vld [vmem:[%s932 + $0x24] sm:$0xf]
      %v943 = vld [vmem:[%s932 + $0x28] sm:$0xf]
      %v944 = vld [vmem:[%s932 + $0x2c] sm:$0xf]
      %v945 = vld [vmem:[%s932 + $0x30] sm:$0xf]
      %v946 = vld [vmem:[%s932 + $0x34] sm:$0xf]
      %v947 = vld [vmem:[%s932 + $0x38] sm:$0xf]
      %v948 = vld [vmem:[%s932 + $0x3c] sm:$0xf]
      %v965 = vunpack.c.l.b16 %v933
      %v966 = vunpack.c.l.b16 %v934
      %v967 = vunpack.c.l.b16 %v935
      %v968 = vunpack.c.l.b16 %v936
      %v969 = vunpack.c.l.b16 %v937
      %v970 = vunpack.c.l.b16 %v938
      %v971 = vunpack.c.l.b16 %v939
      %v972 = vunpack.c.l.b16 %v940
      %v973 = vunpack.c.l.b16 %v941
      %v974 = vunpack.c.l.b16 %v942
      %v975 = vunpack.c.l.b16 %v943
      %v976 = vunpack.c.l.b16 %v944
      %v977 = vunpack.c.l.b16 %v945
      %v978 = vunpack.c.l.b16 %v946
      %v979 = vunpack.c.l.b16 %v947
      %v980 = vunpack.c.l.b16 %v948
      %v981 = vpack.c.b16 %v966, %v965
      %v982 = vpack.c.b16 %v968, %v967
      %v983 = vpack.c.b16 %v970, %v969
      %v984 = vpack.c.b16 %v972, %v971
      %v985 = vpack.c.b16 %v974, %v973
      %v986 = vpack.c.b16 %v976, %v975
      %v987 = vpack.c.b16 %v978, %v977
      %v988 = vpack.c.b16 %v980, %v979
      %997 = vmatprep.subr.bf16.mxu0 0
      %998 = vmatpush1.bf16.msra.mxu0 %v981
      %999 = vmatprep.subr.bf16.mxu0 0
      %1000 = vmatpush1.bf16.msra.mxu0 %v982
      %1001 = vmatprep.subr.bf16.mxu0 0
      %1002 = vmatpush1.bf16.msra.mxu0 %v983
      %1003 = vmatprep.subr.bf16.mxu0 0
      %1004 = vmatpush1.bf16.msra.mxu0 %v984
      %1005 = vmatprep.subr.bf16.mxu0 0
      %1006 = vmatpush1.bf16.msra.mxu0 %v985
      %1007 = vmatprep.subr.bf16.mxu0 0
      %1008 = vmatpush1.bf16.msra.mxu0 %v986
      %1009 = vmatprep.subr.bf16.mxu0 0
      %1010 = vmatpush1.bf16.msra.mxu0 %v987
      %1011 = vmatprep.subr.bf16.mxu0 0
      %1012 = vmatpush1.bf16.msra.mxu0 %v988
      %1013 = vmatprep.subr.bf16.mxu0 0
      %1014 = vmatpush1.bf16.msra.mxu0 0
      %1015 = vmatprep.subr.bf16.mxu0 0
      %1016 = vmatpush1.bf16.msra.mxu0 0
      %1017 = vmatprep.subr.bf16.mxu0 0
      %1018 = vmatpush1.bf16.msra.mxu0 0
      %1019 = vmatprep.subr.bf16.mxu0 0
      %1020 = vmatpush1.bf16.msra.mxu0 0
      %1021 = vmatprep.subr.bf16.mxu0 0
      %1022 = vmatpush1.bf16.msra.mxu0 0
      %1023 = vmatprep.subr.bf16.mxu0 0
      %1024 = vmatpush1.bf16.msra.mxu0 0
      %1025 = vmatprep.subr.bf16.mxu0 0
      %1026 = vmatpush1.bf16.msra.mxu0 0
      %1027 = vmatprep.subr.bf16.mxu0 0
      %1028 = vmatpush1.bf16.msra.mxu0 0
      %1029 = vmatprep.mubr.bf16.mxu0 0
      %1030 = vmatmul.mubr.bf16.gmra.mrb[0].mxu0 %v732
      %v1031 = vpop.f32.mrb[0].mxu0
      %v1032 = vadd.f32 0.0, %v1031
      %v1033 = vpop.f32.mrb[0].mxu0
      %v1034 = vpop.f32.mrb[0].mxu0
      %v1035 = vpop.f32.mrb[0].mxu0
      %1036 = vdwg.mxu0
      %v1037 = vadd.f32 %v931, %v1032
      %1038 = vst.msk [vmem:[%s929] sm:$0x7f] %vm381, %v1037
      %v1039 = vld [vmem:[#allocation2] sm:$0xff]
      %v1040 = vld [vmem:[%s488] sm:$0xff]
      %v1041 = vmax.f32 %v1039, %v1040
      %v1042 = vld [vmem:[%s703] sm:$0xff]
      %v1043 = vld [vmem:[%s929] sm:$0xff]
      %v1044 = vmax.f32 %v1042, %v1043
      %v1045 = vmax.f32 %v1041, %v1044
      %v1046 = vld [vmem:[%s2] sm:$0x1]
      %v1048 = vlaneseq
      %v1049 = vshrl.u32 %v1048, 7
      %v1050 = vsub.s32 0, %v1049
      %v1051 = vrot.slane %v1046, %v1050
      %v1053 = vadd.f32 %v1045, %v1051
      %v1054 = vmax.f32 %v1053, 0.0
      %v1055 = vpack.c.bf16 %v1054, %v1054
      %vm1056 = vcmask 519168
      %1057 = vst.msk [vmem:[%s165] sm:$0xf] %vm1056, %v1055
      %p1058 = scmp.lt.s32.totalorder %s14, 1
      %s1059 = scalar_select %p1058, %s14, 1
      %s1060 = smul.addr %s1059, 4
      %s1061 = scalar_lea.vmem %s3, %s1060
      // Predicated region
      $region33: #{vae_forward.5} parent=31 // pred_check
        %p1062 = pneg %p100
      $region34: #{vae_forward.5} parent=31 // pred_check_branch
        %1064 = sbr.rel (%p1062) target = $region36
      $region35: #{vae_forward.5} parent=31 // pred_region
        _
      $region36: #{vae_forward.5} parent=31 // pred_fallthru
        _
    $region32: #{vae_forward.5} parent=5 // pred_fallthru
      _
    %p1065 = scmp.le.s32.totalorder 2, %s9
    // Predicated region
    $region37: #{vae_forward.5} parent=5 // pred_check
      %p1066 = pneg %p1065
    $region38: #{vae_forward.5} parent=5 // pred_check_branch
      %1068 = sbr.rel (%p1066) target = $region40
    $region39: #{vae_forward.5} parent=5 // pred_region
      %s1069 = ssub.s32 %s9, 2
      // Predicated region
      $region41: #{vae_forward.5} parent=39 // pred_check
        %p1070 = pneg %p106
      $region42: #{vae_forward.5} parent=39 // pred_check_branch
        %1072 = sbr.rel (%p1070) target = $region44
      $region43: #{vae_forward.5} parent=39 // pred_region
        %p1073 = scmp.lt.s32.totalorder %s15, 1
        %s1074 = scalar_select %p1073, %s15, 1
        %s1075 = smul.addr %s1074, 4
        %s1076 = scalar_lea.vmem %s3, %s1075
      $region44: #{vae_forward.5} parent=39 // pred_fallthru
        _
    $region40: #{vae_forward.5} parent=5 // pred_fallthru
      _
  $region6: #{vae_forward.5} parent=0 // loop_footer
    %s13 = sadd.s32 1, %s9
  $region7: #{vae_forward.5} parent=0 // loop_footer_branch
    %8 = sbr.rel target = $region3
  $region8: #{vae_forward.5} parent=0 // loop_exit
    _

// kernel: vae_forward.8
$region0: #{vae_forward.8}
  #allocation0 [shape = 'u32[]', space=smem, size = 0x4, offset = 0x4, fixed_abs, tag = 'smem constant byte address 0x4 - core index']
  #allocation1 [shape = 'u32[144,128]{1,0:T(1,128)}', space=vmem, size = 0x12000, scoped, tag = 'internal scratch']
  #allocation2 [shape = 'f32[4,64]{1,0:T(4,128)}', space=vmem, size = 0x800, scoped, tag = 'scratch operand']
  %s0 = inlined_call_operand.vmem [shape: bf16[2,4,64], index: 0, kind: input, shape index: {}]
  %s1 = inlined_call_operand.vmem [shape: bf16[3,64,64], index: 1, kind: input, shape index: {}]
  %s2 = inlined_call_operand.vmem [shape: f32[1,64], index: 2, kind: input, shape index: {}]
  %s3 = inlined_call_operand.vmem [shape: bf16[2,2,4,64], index: 3, kind: output, shape index: {}]
  %s4 = sld [smem:[#allocation0]]
  $region45: #{vae_forward.8} parent=0
    _
  %s6 = ssub.s32 1, %s4
  %s7 = scalar_select 0, %s6, %s4
  loop: start=0, step=1, limit=4
  $region2: #{vae_forward.8} parent=0 // loop_pre_header
    _
  $region3: #{vae_forward.8} parent=0 // loop_header
    %s9 = sphi 0, %s13
    %p10 = scmp.ge.s32.totalorder %s9, 4
    %s19 = sphi 0, %s21
    %s22 = sphi 0, %s19
    %s23 = sphi 0, %s22
    %s39 = sphi 0, %s23
    %s43 = sphi 0, %s43
    %s45 = sphi 0, %s43
    %s46 = sphi 0, %s45
    %s60 = sphi 0, %s46
    %s64 = sphi 0, %s64
    %s66 = sphi 0, %s64
    %s67 = sphi 0, %s66
    %s81 = sphi 0, %s67
    %s87 = sphi 0, %s89
    %s90 = sphi 0, %s87
    %s91 = sphi 0, %s90
    %s107 = sphi 0, %s91
  $region4: #{vae_forward.8} parent=0 // loop_header_branch
    %12 = sbr.rel (%p10) target = $region8
  $region5: #{vae_forward.8} parent=0 // loop_body
    %s14 = ssub.s32 %s9, 1
    %s15 = ssub.s32 %s9, 2
    %s16 = sadd.s32 %s9, 1
    %s17 = ssub.s32 %s9, %s16
    %p18 = scmp.eq.s32.totalorder %s17, 0
    %s20 = sadd.s32 %s19, 1
    %s21 = scalar_select %p18, %s19, %s20
    %p24 = pneg %p18
    %p25 = scmp.eq.s32.totalorder %s9, 1
    %p26 = por %p24, %p25
    %p27 = scmp.ne.s32.totalorder %s19, %s22
    %p28 = scmp.eq.s32.totalorder %s9, 0
    %p29 = por %p27, %p28
    %p30 = scmp.ne.s32.totalorder %s19, %s22
    %p31 = scmp.eq.s32.totalorder %s14, 1
    %p32 = por %p30, %p31
    %p33 = scmp.ne.s32.totalorder %s22, %s23
    %p34 = scmp.eq.s32.totalorder %s14, 0
    %p35 = por %p33, %p34
    %p36 = scmp.ne.s32.totalorder %s22, %s23
    %p37 = scmp.eq.s32.totalorder %s15, 1
    %p38 = por %p36, %p37
    %p40 = scmp.ne.s32.totalorder %s23, %s39
    %p41 = scmp.eq.s32.totalorder %s15, 0
    %p42 = por %p40, %p41
    %s44 = sadd.s32 %s43, 1
    %p47 = scmp.eq.s32.totalorder %s9, 1
    %p48 = scmp.ne.s32.totalorder %s43, %s45
    %p49 = scmp.eq.s32.totalorder %s9, 0
    %p50 = por %p48, %p49
    %p51 = scmp.ne.s32.totalorder %s43, %s45
    %p52 = scmp.eq.s32.totalorder %s14, 1
    %p53 = por %p51, %p52
    %p54 = scmp.ne.s32.totalorder %s45, %s46
    %p55 = scmp.eq.s32.totalorder %s14, 0
    %p56 = por %p54, %p55
    %p57 = scmp.ne.s32.totalorder %s45, %s46
    %p58 = scmp.eq.s32.totalorder %s15, 1
    %p59 = por %p57, %p58
    %p61 = scmp.ne.s32.totalorder %s46, %s60
    %p62 = scmp.eq.s32.totalorder %s15, 0
    %p63 = por %p61, %p62
    %s65 = sadd.s32 %s64, 1
    %p68 = scmp.eq.s32.totalorder %s9, 1
    %p69 = scmp.ne.s32.totalorder %s64, %s66
    %p70 = scmp.eq.s32.totalorder %s9, 0
    %p71 = por %p69, %p70
    %p72 = scmp.ne.s32.totalorder %s64, %s66
    %p73 = scmp.eq.s32.totalorder %s14, 1
    %p74 = por %p72, %p73
    %p75 = scmp.ne.s32.totalorder %s66, %s67
    %p76 = scmp.eq.s32.totalorder %s14, 0
    %p77 = por %p75, %p76
    %p78 = scmp.ne.s32.totalorder %s66, %s67
    %p79 = scmp.eq.s32.totalorder %s15, 1
    %p80 = por %p78, %p79
    %p82 = scmp.ne.s32.totalorder %s67, %s81
    %p83 = scmp.eq.s32.totalorder %s15, 0
    %p84 = por %p82, %p83
    %s85 = ssub.s32 %s9, %s16
    %p86 = scmp.eq.s32.totalorder %s85, 0
    %s88 = sadd.s32 %s87, 1
    %s89 = scalar_select %p86, %s87, %s88
    %p92 = pneg %p86
    %p93 = scmp.eq.s32.totalorder %s9, 1
    %p94 = por %p92, %p93
    %p95 = scmp.ne.s32.totalorder %s87, %s90
    %p96 = scmp.eq.s32.totalorder %s9, 0
    %p97 = por %p95, %p96
    %p98 = scmp.ne.s32.totalorder %s87, %s90
    %p99 = scmp.eq.s32.totalorder %s14, 1
    %p100 = por %p98, %p99
    %p101 = scmp.ne.s32.totalorder %s90, %s91
    %p102 = scmp.eq.s32.totalorder %s14, 0
    %p103 = por %p101, %p102
    %p104 = scmp.ne.s32.totalorder %s90, %s91
    %p105 = scmp.eq.s32.totalorder %s15, 1
    %p106 = por %p104, %p105
    %p108 = scmp.ne.s32.totalorder %s91, %s107
    %p109 = scmp.eq.s32.totalorder %s15, 0
    %p110 = por %p108, %p109
    %p111 = scmp.le.s32.totalorder 1, %s9
    %p112 = scmp.lt.s32.totalorder %s9, 3
    %p113 = pnand %p111, %p112
    %p114 = pneg %p113
    // Predicated region
    $region9: #{vae_forward.8} parent=5 // pred_check
      _
    $region10: #{vae_forward.8} parent=5 // pred_check_branch
      %116 = sbr.rel (%p113) target = $region12
    $region11: #{vae_forward.8} parent=5 // pred_region
      %s117 = ssub.s32 %s9, 1
      // Predicated region
      $region13: #{vae_forward.8} parent=11 // pred_check
        %p118 = pneg %p56
      $region14: #{vae_forward.8} parent=11 // pred_check_branch
        %120 = sbr.rel (%p118) target = $region16
      $region15: #{vae_forward.8} parent=11 // pred_region
        _
      $region16: #{vae_forward.8} parent=11 // pred_fallthru
        _
      // Predicated region
      $region17: #{vae_forward.8} parent=11 // pred_check
        %p121 = pneg %p77
      $region18: #{vae_forward.8} parent=11 // pred_check_branch
        %123 = sbr.rel (%p121) target = $region20
      $region19: #{vae_forward.8} parent=11 // pred_region
        _
      $region20: #{vae_forward.8} parent=11 // pred_fallthru
        _
    $region12: #{vae_forward.8} parent=5 // pred_fallthru
      _
    %p124 = scmp.lt.s32.totalorder %s9, 2
    // Predicated region
    $region21: #{vae_forward.8} parent=5 // pred_check
      %p125 = pneg %p124
    $region22: #{vae_forward.8} parent=5 // pred_check_branch
      %127 = sbr.rel (%p125) target = $region24
    $region23: #{vae_forward.8} parent=5 // pred_region
      // Predicated region
      $region25: #{vae_forward.8} parent=23 // pred_check
        %p128 = pneg %p29
      $region26: #{vae_forward.8} parent=23 // pred_check_branch
        %130 = sbr.rel (%p128) target = $region28
      $region27: #{vae_forward.8} parent=23 // pred_region
        %p131 = scmp.lt.s32.totalorder %s9, 1
        %s132 = scalar_select %p131, %s9, 1
        %s133 = smul.addr %s132, 2
        %s134 = scalar_lea.vmem %s0, %s133
      $region28: #{vae_forward.8} parent=23 // pred_fallthru
        _
    $region24: #{vae_forward.8} parent=5 // pred_fallthru
      _
    %p135 = scmp.le.s32.totalorder 1, %s9
    %p136 = scmp.lt.s32.totalorder %s9, 3
    %p137 = pnand %p135, %p136
    %p138 = pneg %p137
    // Predicated region
    $region29: #{vae_forward.8} parent=5 // pred_check
      _
    $region30: #{vae_forward.8} parent=5 // pred_check_branch
      %140 = sbr.rel (%p137) target = $region32
    $region31: #{vae_forward.8} parent=5 // pred_region
      %s141 = ssub.s32 %s9, 1
      %p142 = scmp.lt.s32.totalorder %s14, 1
      %s143 = scalar_select %p142, %s14, 1
      %s144 = smul.addr %s143, 2
      %s145 = scalar_lea.vmem %s0, %s144
      %p146 = pneg %p35
      %p147 = pneg %p32
      %p148 = pneg %p56
      %p149 = pneg %p53
      %p150 = pneg %p77
      %p151 = pneg %p74
      %p152 = pneg %p103
      %p153 = pneg %p100
      %p154 = scmp.lt.s32.totalorder %s14, 1
      %s155 = scalar_select %p154, %s14, 1
      %s156 = smul.addr %s155, 2
      %s157 = smul.addr %s156, 2
      %s158 = scalar_lea.vmem %s3, %s157
      %p159 = scmp.lt.s32.totalorder %s14, 1
      %s160 = scalar_select %p159, %s14, 1
      %s161 = smul.addr %s160, 2
      %s162 = scalar_lea.vmem %s0, %s161
      %p163 = scmp.lt.s32.totalorder %s14, 1
      %s164 = scalar_select %p163, %s14, 1
      %s165 = smul.addr %s164, 2
      %s166 = smul.addr %s165, 2
      %s167 = scalar_lea.vmem %s3, %s166
      %v169 = vld [vmem:[%s162] sm:$0x3]
      %v170 = vld [vmem:[%s1] sm:$0xf]
      %v171 = vld [vmem:[%s1 + $0x4] sm:$0xf]
      %v172 = vld [vmem:[%s1 + $0x8] sm:$0xf]
      %v173 = vld [vmem:[%s1 + $0xc] sm:$0xf]
      %v174 = vld [vmem:[%s1 + $0x10] sm:$0xf]
      %v175 = vld [vmem:[%s1 + $0x14] sm:$0xf]
      %v176 = vld [vmem:[%s1 + $0x18] sm:$0xf]
      %v177 = vld [vmem:[%s1 + $0x1c] sm:$0xf]
      %v178 = vld [vmem:[%s2] sm:$0x1]
      %v180 = vlaneseq
      %v181 = vshrl.u32 %v180, 7
      %v182 = vsub.s32 0, %v181
      %v183 = vrot.slane %v178, %v182
      %v193 = vunpack.c.l.b16 %v170
      %v194 = vunpack.c.l.b16 %v171
      %v195 = vunpack.c.l.b16 %v172
      %v196 = vunpack.c.l.b16 %v173
      %v197 = vunpack.c.l.b16 %v174
      %v198 = vunpack.c.l.b16 %v175
      %v199 = vunpack.c.l.b16 %v176
      %v200 = vunpack.c.l.b16 %v177
      %v201 = vpack.c.b16 %v194, %v193
      %v202 = vpack.c.b16 %v196, %v195
      %v203 = vpack.c.b16 %v198, %v197
      %v204 = vpack.c.b16 %v200, %v199
      %vm209 = vcmask 523264
      %v211 = vsel %vm209, %v169, 0
      %213 = vmatprep.subr.bf16.mxu0 0
      %214 = vmatpush1.bf16.msra.mxu0 %v201
      %215 = vmatprep.subr.bf16.mxu0 0
      %216 = vmatpush1.bf16.msra.mxu0 %v202
      %217 = vmatprep.subr.bf16.mxu0 0
      %218 = vmatpush1.bf16.msra.mxu0 %v203
      %219 = vmatprep.subr.bf16.mxu0 0
      %220 = vmatpush1.bf16.msra.mxu0 %v204
      %221 = vmatprep.subr.bf16.mxu0 0
      %222 = vmatpush1.bf16.msra.mxu0 0
      %223 = vmatprep.subr.bf16.mxu0 0
      %224 = vmatpush1.bf16.msra.mxu0 0
      %225 = vmatprep.subr.bf16.mxu0 0
      %226 = vmatpush1.bf16.msra.mxu0 0
      %227 = vmatprep.subr.bf16.mxu0 0
      %228 = vmatpush1.bf16.msra.mxu0 0
      %229 = vmatprep.subr.bf16.mxu0 0
      %230 = vmatpush1.bf16.msra.mxu0 0
      %231 = vmatprep.subr.bf16.mxu0 0
      %232 = vmatpush1.bf16.msra.mxu0 0
      %233 = vmatprep.subr.bf16.mxu0 0
      %234 = vmatpush1.bf16.msra.mxu0 0
      %235 = vmatprep.subr.bf16.mxu0 0
      %236 = vmatpush1.bf16.msra.mxu0 0
      %237 = vmatprep.subr.bf16.mxu0 0
      %238 = vmatpush1.bf16.msra.mxu0 0
      %239 = vmatprep.subr.bf16.mxu0 0
      %240 = vmatpush1.bf16.msra.mxu0 0
      %241 = vmatprep.subr.bf16.mxu0 0
      %242 = vmatpush1.bf16.msra.mxu0 0
      %243 = vmatprep.subr.bf16.mxu0 0
      %244 = vmatpush1.bf16.msra.mxu0 0
      %245 = vmatprep.mubr.bf16.mxu0 0
      %246 = vmatmul.mubr.bf16.gmra.mrb[0].mxu0 %v211
      %v247 = vpop.f32.mrb[0].mxu0
      %v248 = vadd.f32 %v183, %v247
      %v249 = vpop.f32.mrb[0].mxu0
      %v250 = vpop.f32.mrb[0].mxu0
      %v251 = vpop.f32.mrb[0].mxu0
      %252 = vdwg.mxu0
      %s253 = scalar_lea.vmem %s1, 32
      %v254 = vld [vmem:[%s253] sm:$0xf]
      %v255 = vld [vmem:[%s253 + $0x4] sm:$0xf]
      %v256 = vld [vmem:[%s253 + $0x8] sm:$0xf]
      %v257 = vld [vmem:[%s253 + $0xc] sm:$0xf]
      %v258 = vld [vmem:[%s253 + $0x10] sm:$0xf]
      %v259 = vld [vmem:[%s253 + $0x14] sm:$0xf]
      %v260 = vld [vmem:[%s253 + $0x18] sm:$0xf]
      %v261 = vld [vmem:[%s253 + $0x1c] sm:$0xf]
      %v270 = vunpack.c.l.b16 %v254
      %v271 = vunpack.c.l.b16 %v255
      %v272 = vunpack.c.l.b16 %v256
      %v273 = vunpack.c.l.b16 %v257
      %v274 = vunpack.c.l.b16 %v258
      %v275 = vunpack.c.l.b16 %v259
      %v276 = vunpack.c.l.b16 %v260
      %v277 = vunpack.c.l.b16 %v261
      %v278 = vpack.c.b16 %v271, %v270
      %v279 = vpack.c.b16 %v273, %v272
      %v280 = vpack.c.b16 %v275, %v274
      %v281 = vpack.c.b16 %v277, %v276
      %286 = vmatprep.subr.bf16.mxu0 0
      %287 = vmatpush1.bf16.msra.mxu0 %v278
      %288 = vmatprep.subr.bf16.mxu0 0
      %289 = vmatpush1.bf16.msra.mxu0 %v279
      %290 = vmatprep.subr.bf16.mxu0 0
      %291 = vmatpush1.bf16.msra.mxu0 %v280
      %292 = vmatprep.subr.bf16.mxu0 0
      %293 = vmatpush1.bf16.msra.mxu0 %v281
      %294 = vmatprep.subr.bf16.mxu0 0
      %295 = vmatpush1.bf16.msra.mxu0 0
      %296 = vmatprep.subr.bf16.mxu0 0
      %297 = vmatpush1.bf16.msra.mxu0 0
      %298 = vmatprep.subr.bf16.mxu0 0
      %299 = vmatpush1.bf16.msra.mxu0 0
      %300 = vmatprep.subr.bf16.mxu0 0
      %301 = vmatpush1.bf16.msra.mxu0 0
      %302 = vmatprep.subr.bf16.mxu0 0
      %303 = vmatpush1.bf16.msra.mxu0 0
      %304 = vmatprep.subr.bf16.mxu0 0
      %305 = vmatpush1.bf16.msra.mxu0 0
      %306 = vmatprep.subr.bf16.mxu0 0
      %307 = vmatpush1.bf16.msra.mxu0 0
      %308 = vmatprep.subr.bf16.mxu0 0
      %309 = vmatpush1.bf16.msra.mxu0 0
      %310 = vmatprep.subr.bf16.mxu0 0
      %311 = vmatpush1.bf16.msra.mxu0 0
      %312 = vmatprep.subr.bf16.mxu0 0
      %313 = vmatpush1.bf16.msra.mxu0 0
      %314 = vmatprep.subr.bf16.mxu0 0
      %315 = vmatpush1.bf16.msra.mxu0 0
      %316 = vmatprep.subr.bf16.mxu0 0
      %317 = vmatpush1.bf16.msra.mxu0 0
      %318 = vmatprep.mubr.bf16.mxu0 0
      %319 = vmatmul.mubr.bf16.gmra.mrb[0].mxu0 %v211
      %v320 = vpop.f32.mrb[0].mxu0
      %v321 = vadd.f32 0.0, %v320
      %v322 = vpop.f32.mrb[0].mxu0
      %v323 = vpop.f32.mrb[0].mxu0
      %v324 = vpop.f32.mrb[0].mxu0
      %325 = vdwg.mxu0
      %vm326 = vcmask 519168
      %327 = vst.msk [vmem:[#allocation2] sm:$0xf] %vm326, %v321
      %v328 = vld [vmem:[#allocation2] sm:$0x7]
      %s329 = scalar_lea.vmem %s1, 64
      %v330 = vld [vmem:[%s329] sm:$0xf]
      %v331 = vld [vmem:[%s329 + $0x4] sm:$0xf]
      %v332 = vld [vmem:[%s329 + $0x8] sm:$0xf]
      %v333 = vld [vmem:[%s329 + $0xc] sm:$0xf]
      %v334 = vld [vmem:[%s329 + $0x10] sm:$0xf]
      %v335 = vld [vmem:[%s329 + $0x14] sm:$0xf]
      %v336 = vld [vmem:[%s329 + $0x18] sm:$0xf]
      %v337 = vld [vmem:[%s329 + $0x1c] sm:$0xf]
      %v340 = vunpack.c.l.s4 1983009808
      %v341 = vunpack.c.0.s8 %v340
      %v342 = vlaneseq
      %v343 = vshrl.u32 %v342, 7
      %v344 = vsub.s32 %v341, %v343
      %v345 = vrot.slane %v169, %v344
      %v347 = vshrl.u32 %v345, 16
      %v349 = vshll.u32 %v345, 16
      %v351 = vrot.slane %v349, 1
      %v352 = vor.u32 %v347, %v351
      %v361 = vunpack.c.l.b16 %v330
      %v362 = vunpack.c.l.b16 %v331
      %v363 = vunpack.c.l.b16 %v332
      %v364 = vunpack.c.l.b16 %v333
      %v365 = vunpack.c.l.b16 %v334
      %v366 = vunpack.c.l.b16 %v335
      %v367 = vunpack.c.l.b16 %v336
      %v368 = vunpack.c.l.b16 %v337
      %v369 = vpack.c.b16 %v362, %v361
      %v370 = vpack.c.b16 %v364, %v363
      %v371 = vpack.c.b16 %v366, %v365
      %v372 = vpack.c.b16 %v368, %v367
      %v378 = vsel %vm209, %v352, 0
      %380 = vmatprep.subr.bf16.mxu0 0
      %381 = vmatpush1.bf16.msra.mxu0 %v369
      %382 = vmatprep.subr.bf16.mxu0 0
      %383 = vmatpush1.bf16.msra.mxu0 %v370
      %384 = vmatprep.subr.bf16.mxu0 0
      %385 = vmatpush1.bf16.msra.mxu0 %v371
      %386 = vmatprep.subr.bf16.mxu0 0
      %387 = vmatpush1.bf16.msra.mxu0 %v372
      %388 = vmatprep.subr.bf16.mxu0 0
      %389 = vmatpush1.bf16.msra.mxu0 0
      %390 = vmatprep.subr.bf16.mxu0 0
      %391 = vmatpush1.bf16.msra.mxu0 0
      %392 = vmatprep.subr.bf16.mxu0 0
      %393 = vmatpush1.bf16.msra.mxu0 0
      %394 = vmatprep.subr.bf16.mxu0 0
      %395 = vmatpush1.bf16.msra.mxu0 0
      %396 = vmatprep.subr.bf16.mxu0 0
      %397 = vmatpush1.bf16.msra.mxu0 0
      %398 = vmatprep.subr.bf16.mxu0 0
      %399 = vmatpush1.bf16.msra.mxu0 0
      %400 = vmatprep.subr.bf16.mxu0 0
      %401 = vmatpush1.bf16.msra.mxu0 0
      %402 = vmatprep.subr.bf16.mxu0 0
      %403 = vmatpush1.bf16.msra.mxu0 0
      %404 = vmatprep.subr.bf16.mxu0 0
      %405 = vmatpush1.bf16.msra.mxu0 0
      %406 = vmatprep.subr.bf16.mxu0 0
      %407 = vmatpush1.bf16.msra.mxu0 0
      %408 = vmatprep.subr.bf16.mxu0 0
      %409 = vmatpush1.bf16.msra.mxu0 0
      %410 = vmatprep.subr.bf16.mxu0 0
      %411 = vmatpush1.bf16.msra.mxu0 0
      %412 = vmatprep.mubr.bf16.mxu0 0
      %413 = vmatmul.mubr.bf16.gmra.mrb[0].mxu0 %v378
      %v414 = vpop.f32.mrb[0].mxu0
      %v415 = vadd.f32 0.0, %v414
      %v416 = vpop.f32.mrb[0].mxu0
      %v417 = vpop.f32.mrb[0].mxu0
      %v418 = vpop.f32.mrb[0].mxu0
      %419 = vdwg.mxu0
      %v420 = vadd.f32 %v328, %v415
      %vm421 = vcmask 518144
      %422 = vst.msk [vmem:[#allocation2] sm:$0x7] %vm421, %v420
      %v423 = vld [vmem:[#allocation2] sm:$0xf]
      %v424 = vld [vmem:[%s2] sm:$0x1]
      %v426 = vlaneseq
      %v427 = vshrl.u32 %v426, 7
      %v428 = vsub.s32 0, %v427
      %v429 = vrot.slane %v424, %v428
      %v431 = vadd.f32 %v423, %v429
      %v432 = vmax.f32 %v248, 0.0
      %v433 = vmax.f32 %v431, 0.0
      %v434 = vpack.c.bf16 %v432, %v432
      %vm435 = vcmask 517120
      %436 = vst.msk [vmem:[%s167] sm:$0x3] %vm435, %v434
      %v437 = vpack.c.bf16 %v433, %v433
      %s438 = scalar_lea.vmem %s167, 2
      %439 = vst.msk [vmem:[%s438] sm:$0x3] %vm435, %v437
      %p440 = scmp.lt.s32.totalorder %s14, 1
      %s441 = scalar_select %p440, %s14, 1
      %s442 = smul.addr %s441, 2
      %s443 = smul.addr %s442, 2
      %s444 = scalar_lea.vmem %s3, %s443
      // Predicated region
      $region33: #{vae_forward.8} parent=31 // pred_check
        %p445 = pneg %p100
      $region34: #{vae_forward.8} parent=31 // pred_check_branch
        %447 = sbr.rel (%p445) target = $region36
      $region35: #{vae_forward.8} parent=31 // pred_region
        _
      $region36: #{vae_forward.8} parent=31 // pred_fallthru
        _
    $region32: #{vae_forward.8} parent=5 // pred_fallthru
      _
    %p448 = scmp.le.s32.totalorder 2, %s9
    // Predicated region
    $region37: #{vae_forward.8} parent=5 // pred_check
      %p449 = pneg %p448
    $region38: #{vae_forward.8} parent=5 // pred_check_branch
      %451 = sbr.rel (%p449) target = $region40
    $region39: #{vae_forward.8} parent=5 // pred_region
      %s452 = ssub.s32 %s9, 2
      // Predicated region
      $region41: #{vae_forward.8} parent=39 // pred_check
        %p453 = pneg %p106
      $region42: #{vae_forward.8} parent=39 // pred_check_branch
        %455 = sbr.rel (%p453) target = $region44
      $region43: #{vae_forward.8} parent=39 // pred_region
        %p456 = scmp.lt.s32.totalorder %s15, 1
        %s457 = scalar_select %p456, %s15, 1
        %s458 = smul.addr %s457, 2
        %s459 = smul.addr %s458, 2
        %s460 = scalar_lea.vmem %s3, %s459
      $region44: #{vae_forward.8} parent=39 // pred_fallthru
        _
    $region40: #{vae_forward.8} parent=5 // pred_fallthru
      _
  $region6: #{vae_forward.8} parent=0 // loop_footer
    %s13 = sadd.s32 1, %s9
  $region7: #{vae_forward.8} parent=0 // loop_footer_branch
    %8 = sbr.rel target = $region3
  $region8: #{vae_forward.8} parent=0 // loop_exit
    _

// kernel: vae_forward.6
$region0: #{vae_forward.6}
  #allocation0 [shape = 'u32[]', space=smem, size = 0x4, offset = 0x4, fixed_abs, tag = 'smem constant byte address 0x4 - core index']
  #allocation1 [shape = 'u32[144,128]{1,0:T(1,128)}', space=vmem, size = 0x12000, scoped, tag = 'internal scratch']
  #allocation2 [shape = 'f32[4,4,64]{2,1,0:T(4,128)}', space=vmem, size = 0x2000, scoped, tag = 'scratch operand']
  %s0 = inlined_call_operand.vmem [shape: bf16[2,4,128], index: 0, kind: input, shape index: {}]
  %s1 = inlined_call_operand.vmem [shape: bf16[8,128,64], index: 1, kind: input, shape index: {}]
  %s2 = inlined_call_operand.vmem [shape: f32[1,64], index: 2, kind: input, shape index: {}]
  %s3 = inlined_call_operand.vmem [shape: bf16[2,4,64], index: 3, kind: output, shape index: {}]
  %s4 = sld [smem:[#allocation0]]
  $region45: #{vae_forward.6} parent=0
    _
  %s6 = ssub.s32 1, %s4
  %s7 = scalar_select 0, %s6, %s4
  loop: start=0, step=1, limit=4
  $region2: #{vae_forward.6} parent=0 // loop_pre_header
    _
  $region3: #{vae_forward.6} parent=0 // loop_header
    %s9 = sphi 0, %s13
    %p10 = scmp.ge.s32.totalorder %s9, 4
    %s19 = sphi 0, %s21
    %s22 = sphi 0, %s19
    %s23 = sphi 0, %s22
    %s39 = sphi 0, %s23
    %s43 = sphi 0, %s43
    %s45 = sphi 0, %s43
    %s46 = sphi 0, %s45
    %s60 = sphi 0, %s46
    %s64 = sphi 0, %s64
    %s66 = sphi 0, %s64
    %s67 = sphi 0, %s66
    %s81 = sphi 0, %s67
    %s87 = sphi 0, %s89
    %s90 = sphi 0, %s87
    %s91 = sphi 0, %s90
    %s107 = sphi 0, %s91
  $region4: #{vae_forward.6} parent=0 // loop_header_branch
    %12 = sbr.rel (%p10) target = $region8
  $region5: #{vae_forward.6} parent=0 // loop_body
    %s14 = ssub.s32 %s9, 1
    %s15 = ssub.s32 %s9, 2
    %s16 = sadd.s32 %s9, 1
    %s17 = ssub.s32 %s9, %s16
    %p18 = scmp.eq.s32.totalorder %s17, 0
    %s20 = sadd.s32 %s19, 1
    %s21 = scalar_select %p18, %s19, %s20
    %p24 = pneg %p18
    %p25 = scmp.eq.s32.totalorder %s9, 1
    %p26 = por %p24, %p25
    %p27 = scmp.ne.s32.totalorder %s19, %s22
    %p28 = scmp.eq.s32.totalorder %s9, 0
    %p29 = por %p27, %p28
    %p30 = scmp.ne.s32.totalorder %s19, %s22
    %p31 = scmp.eq.s32.totalorder %s14, 1
    %p32 = por %p30, %p31
    %p33 = scmp.ne.s32.totalorder %s22, %s23
    %p34 = scmp.eq.s32.totalorder %s14, 0
    %p35 = por %p33, %p34
    %p36 = scmp.ne.s32.totalorder %s22, %s23
    %p37 = scmp.eq.s32.totalorder %s15, 1
    %p38 = por %p36, %p37
    %p40 = scmp.ne.s32.totalorder %s23, %s39
    %p41 = scmp.eq.s32.totalorder %s15, 0
    %p42 = por %p40, %p41
    %s44 = sadd.s32 %s43, 1
    %p47 = scmp.eq.s32.totalorder %s9, 1
    %p48 = scmp.ne.s32.totalorder %s43, %s45
    %p49 = scmp.eq.s32.totalorder %s9, 0
    %p50 = por %p48, %p49
    %p51 = scmp.ne.s32.totalorder %s43, %s45
    %p52 = scmp.eq.s32.totalorder %s14, 1
    %p53 = por %p51, %p52
    %p54 = scmp.ne.s32.totalorder %s45, %s46
    %p55 = scmp.eq.s32.totalorder %s14, 0
    %p56 = por %p54, %p55
    %p57 = scmp.ne.s32.totalorder %s45, %s46
    %p58 = scmp.eq.s32.totalorder %s15, 1
    %p59 = por %p57, %p58
    %p61 = scmp.ne.s32.totalorder %s46, %s60
    %p62 = scmp.eq.s32.totalorder %s15, 0
    %p63 = por %p61, %p62
    %s65 = sadd.s32 %s64, 1
    %p68 = scmp.eq.s32.totalorder %s9, 1
    %p69 = scmp.ne.s32.totalorder %s64, %s66
    %p70 = scmp.eq.s32.totalorder %s9, 0
    %p71 = por %p69, %p70
    %p72 = scmp.ne.s32.totalorder %s64, %s66
    %p73 = scmp.eq.s32.totalorder %s14, 1
    %p74 = por %p72, %p73
    %p75 = scmp.ne.s32.totalorder %s66, %s67
    %p76 = scmp.eq.s32.totalorder %s14, 0
    %p77 = por %p75, %p76
    %p78 = scmp.ne.s32.totalorder %s66, %s67
    %p79 = scmp.eq.s32.totalorder %s15, 1
    %p80 = por %p78, %p79
    %p82 = scmp.ne.s32.totalorder %s67, %s81
    %p83 = scmp.eq.s32.totalorder %s15, 0
    %p84 = por %p82, %p83
    %s85 = ssub.s32 %s9, %s16
    %p86 = scmp.eq.s32.totalorder %s85, 0
    %s88 = sadd.s32 %s87, 1
    %s89 = scalar_select %p86, %s87, %s88
    %p92 = pneg %p86
    %p93 = scmp.eq.s32.totalorder %s9, 1
    %p94 = por %p92, %p93
    %p95 = scmp.ne.s32.totalorder %s87, %s90
    %p96 = scmp.eq.s32.totalorder %s9, 0
    %p97 = por %p95, %p96
    %p98 = scmp.ne.s32.totalorder %s87, %s90
    %p99 = scmp.eq.s32.totalorder %s14, 1
    %p100 = por %p98, %p99
    %p101 = scmp.ne.s32.totalorder %s90, %s91
    %p102 = scmp.eq.s32.totalorder %s14, 0
    %p103 = por %p101, %p102
    %p104 = scmp.ne.s32.totalorder %s90, %s91
    %p105 = scmp.eq.s32.totalorder %s15, 1
    %p106 = por %p104, %p105
    %p108 = scmp.ne.s32.totalorder %s91, %s107
    %p109 = scmp.eq.s32.totalorder %s15, 0
    %p110 = por %p108, %p109
    %p111 = scmp.le.s32.totalorder 1, %s9
    %p112 = scmp.lt.s32.totalorder %s9, 3
    %p113 = pnand %p111, %p112
    %p114 = pneg %p113
    // Predicated region
    $region9: #{vae_forward.6} parent=5 // pred_check
      _
    $region10: #{vae_forward.6} parent=5 // pred_check_branch
      %116 = sbr.rel (%p113) target = $region12
    $region11: #{vae_forward.6} parent=5 // pred_region
      %s117 = ssub.s32 %s9, 1
      // Predicated region
      $region13: #{vae_forward.6} parent=11 // pred_check
        %p118 = pneg %p56
      $region14: #{vae_forward.6} parent=11 // pred_check_branch
        %120 = sbr.rel (%p118) target = $region16
      $region15: #{vae_forward.6} parent=11 // pred_region
        _
      $region16: #{vae_forward.6} parent=11 // pred_fallthru
        _
      // Predicated region
      $region17: #{vae_forward.6} parent=11 // pred_check
        %p121 = pneg %p77
      $region18: #{vae_forward.6} parent=11 // pred_check_branch
        %123 = sbr.rel (%p121) target = $region20
      $region19: #{vae_forward.6} parent=11 // pred_region
        _
      $region20: #{vae_forward.6} parent=11 // pred_fallthru
        _
    $region12: #{vae_forward.6} parent=5 // pred_fallthru
      _
    %p124 = scmp.lt.s32.totalorder %s9, 2
    // Predicated region
    $region21: #{vae_forward.6} parent=5 // pred_check
      %p125 = pneg %p124
    $region22: #{vae_forward.6} parent=5 // pred_check_branch
      %127 = sbr.rel (%p125) target = $region24
    $region23: #{vae_forward.6} parent=5 // pred_region
      // Predicated region
      $region25: #{vae_forward.6} parent=23 // pred_check
        %p128 = pneg %p29
      $region26: #{vae_forward.6} parent=23 // pred_check_branch
        %130 = sbr.rel (%p128) target = $region28
      $region27: #{vae_forward.6} parent=23 // pred_region
        %p131 = scmp.lt.s32.totalorder %s9, 1
        %s132 = scalar_select %p131, %s9, 1
        %s133 = smul.addr %s132, 2
        %s134 = scalar_lea.vmem %s0, %s133
      $region28: #{vae_forward.6} parent=23 // pred_fallthru
        _
    $region24: #{vae_forward.6} parent=5 // pred_fallthru
      _
    %p135 = scmp.le.s32.totalorder 1, %s9
    %p136 = scmp.lt.s32.totalorder %s9, 3
    %p137 = pnand %p135, %p136
    %p138 = pneg %p137
    // Predicated region
    $region29: #{vae_forward.6} parent=5 // pred_check
      _
    $region30: #{vae_forward.6} parent=5 // pred_check_branch
      %140 = sbr.rel (%p137) target = $region32
    $region31: #{vae_forward.6} parent=5 // pred_region
      %s141 = ssub.s32 %s9, 1
      %p142 = scmp.lt.s32.totalorder %s14, 1
      %s143 = scalar_select %p142, %s14, 1
      %s144 = smul.addr %s143, 2
      %s145 = scalar_lea.vmem %s0, %s144
      %p146 = pneg %p35
      %p147 = pneg %p32
      %p148 = pneg %p56
      %p149 = pneg %p53
      %p150 = pneg %p77
      %p151 = pneg %p74
      %p152 = pneg %p103
      %p153 = pneg %p100
      %p154 = scmp.lt.s32.totalorder %s14, 1
      %s155 = scalar_select %p154, %s14, 1
      %s156 = smul.addr %s155, 2
      %s157 = scalar_lea.vmem %s3, %s156
      %p158 = scmp.lt.s32.totalorder %s14, 1
      %s159 = scalar_select %p158, %s14, 1
      %s160 = smul.addr %s159, 2
      %s161 = scalar_lea.vmem %s0, %s160
      %p162 = scmp.lt.s32.totalorder %s14, 1
      %s163 = scalar_select %p162, %s14, 1
      %s164 = smul.addr %s163, 2
      %s165 = scalar_lea.vmem %s3, %s164
      %v167 = vld [vmem:[%s161] sm:$0x3]
      %v168 = vld [vmem:[%s1] sm:$0xf]
      %v169 = vld [vmem:[%s1 + $0x4] sm:$0xf]
      %v170 = vld [vmem:[%s1 + $0x8] sm:$0xf]
      %v171 = vld [vmem:[%s1 + $0xc] sm:$0xf]
      %v172 = vld [vmem:[%s1 + $0x10] sm:$0xf]
      %v173 = vld [vmem:[%s1 + $0x14] sm:$0xf]
      %v174 = vld [vmem:[%s1 + $0x18] sm:$0xf]
      %v175 = vld [vmem:[%s1 + $0x1c] sm:$0xf]
      %v176 = vld [vmem:[%s1 + $0x20] sm:$0xf]
      %v177 = vld [vmem:[%s1 + $0x24] sm:$0xf]
      %v178 = vld [vmem:[%s1 + $0x28] sm:$0xf]
      %v179 = vld [vmem:[%s1 + $0x2c] sm:$0xf]
      %v180 = vld [vmem:[%s1 + $0x30] sm:$0xf]
      %v181 = vld [vmem:[%s1 + $0x34] sm:$0xf]
      %v182 = vld [vmem:[%s1 + $0x38] sm:$0xf]
      %v183 = vld [vmem:[%s1 + $0x3c] sm:$0xf]
      %v200 = vunpack.c.l.b16 %v168
      %v201 = vunpack.c.l.b16 %v169
      %v202 = vunpack.c.l.b16 %v170
      %v203 = vunpack.c.l.b16 %v171
      %v204 = vunpack.c.l.b16 %v172
      %v205 = vunpack.c.l.b16 %v173
      %v206 = vunpack.c.l.b16 %v174
      %v207 = vunpack.c.l.b16 %v175
      %v208 = vunpack.c.l.b16 %v176
      %v209 = vunpack.c.l.b16 %v177
      %v210 = vunpack.c.l.b16 %v178
      %v211 = vunpack.c.l.b16 %v179
      %v212 = vunpack.c.l.b16 %v180
      %v213 = vunpack.c.l.b16 %v181
      %v214 = vunpack.c.l.b16 %v182
      %v215 = vunpack.c.l.b16 %v183
      %v216 = vpack.c.b16 %v201, %v200
      %v217 = vpack.c.b16 %v203, %v202
      %v218 = vpack.c.b16 %v205, %v204
      %v219 = vpack.c.b16 %v207, %v206
      %v220 = vpack.c.b16 %v209, %v208
      %v221 = vpack.c.b16 %v211, %v210
      %v222 = vpack.c.b16 %v213, %v212
      %v223 = vpack.c.b16 %v215, %v214
      %232 = vmatprep.subr.bf16.mxu0 0
      %233 = vmatpush1.bf16.msra.mxu0 %v216
      %234 = vmatprep.subr.bf16.mxu0 0
      %235 = vmatpush1.bf16.msra.mxu0 %v217
      %236 = vmatprep.subr.bf16.mxu0 0
      %237 = vmatpush1.bf16.msra.mxu0 %v218
      %238 = vmatprep.subr.bf16.mxu0 0
      %239 = vmatpush1.bf16.msra.mxu0 %v219
      %240 = vmatprep.subr.bf16.mxu0 0
      %241 = vmatpush1.bf16.msra.mxu0 %v220
      %242 = vmatprep.subr.bf16.mxu0 0
      %243 = vmatpush1.bf16.msra.mxu0 %v221
      %244 = vmatprep.subr.bf16.mxu0 0
      %245 = vmatpush1.bf16.msra.mxu0 %v222
      %246 = vmatprep.subr.bf16.mxu0 0
      %247 = vmatpush1.bf16.msra.mxu0 %v223
      %248 = vmatprep.subr.bf16.mxu0 0
      %249 = vmatpush1.bf16.msra.mxu0 0
      %250 = vmatprep.subr.bf16.mxu0 0
      %251 = vmatpush1.bf16.msra.mxu0 0
      %252 = vmatprep.subr.bf16.mxu0 0
      %253 = vmatpush1.bf16.msra.mxu0 0
      %254 = vmatprep.subr.bf16.mxu0 0
      %255 = vmatpush1.bf16.msra.mxu0 0
      %256 = vmatprep.subr.bf16.mxu0 0
      %257 = vmatpush1.bf16.msra.mxu0 0
      %258 = vmatprep.subr.bf16.mxu0 0
      %259 = vmatpush1.bf16.msra.mxu0 0
      %260 = vmatprep.subr.bf16.mxu0 0
      %261 = vmatpush1.bf16.msra.mxu0 0
      %262 = vmatprep.subr.bf16.mxu0 0
      %263 = vmatpush1.bf16.msra.mxu0 0
      %264 = vmatprep.mubr.bf16.mxu0 0
      %265 = vmatmul.mubr.bf16.gmra.mrb[0].mxu0 %v167
      %v266 = vpop.f32.mrb[0].mxu0
      %v267 = vadd.f32 0.0, %v266
      %v268 = vpop.f32.mrb[0].mxu0
      %v269 = vpop.f32.mrb[0].mxu0
      %v270 = vpop.f32.mrb[0].mxu0
      %271 = vdwg.mxu0
      %vm272 = vcmask 519168
      %273 = vst.msk [vmem:[#allocation2] sm:$0xf] %vm272, %v267
      %v274 = vld [vmem:[#allocation2 + $0x1] sm:$0x7]
      %s275 = scalar_lea.vmem %s1, 64
      %v276 = vld [vmem:[%s275] sm:$0xf]
      %v277 = vld [vmem:[%s275 + $0x4] sm:$0xf]
      %v278 = vld [vmem:[%s275 + $0x8] sm:$0xf]
      %v279 = vld [vmem:[%s275 + $0xc] sm:$0xf]
      %v280 = vld [vmem:[%s275 + $0x10] sm:$0xf]
      %v281 = vld [vmem:[%s275 + $0x14] sm:$0xf]
      %v282 = vld [vmem:[%s275 + $0x18] sm:$0xf]
      %v283 = vld [vmem:[%s275 + $0x1c] sm:$0xf]
      %v284 = vld [vmem:[%s275 + $0x20] sm:$0xf]
      %v285 = vld [vmem:[%s275 + $0x24] sm:$0xf]
      %v286 = vld [vmem:[%s275 + $0x28] sm:$0xf]
      %v287 = vld [vmem:[%s275 + $0x2c] sm:$0xf]
      %v288 = vld [vmem:[%s275 + $0x30] sm:$0xf]
      %v289 = vld [vmem:[%s275 + $0x34] sm:$0xf]
      %v290 = vld [vmem:[%s275 + $0x38] sm:$0xf]
      %v291 = vld [vmem:[%s275 + $0x3c] sm:$0xf]
      %v308 = vunpack.c.l.b16 %v276
      %v309 = vunpack.c.l.b16 %v277
      %v310 = vunpack.c.l.b16 %v278
      %v311 = vunpack.c.l.b16 %v279
      %v312 = vunpack.c.l.b16 %v280
      %v313 = vunpack.c.l.b16 %v281
      %v314 = vunpack.c.l.b16 %v282
      %v315 = vunpack.c.l.b16 %v283
      %v316 = vunpack.c.l.b16 %v284
      %v317 = vunpack.c.l.b16 %v285
      %v318 = vunpack.c.l.b16 %v286
      %v319 = vunpack.c.l.b16 %v287
      %v320 = vunpack.c.l.b16 %v288
      %v321 = vunpack.c.l.b16 %v289
      %v322 = vunpack.c.l.b16 %v290
      %v323 = vunpack.c.l.b16 %v291
      %v324 = vpack.c.b16 %v309, %v308
      %v325 = vpack.c.b16 %v311, %v310
      %v326 = vpack.c.b16 %v313, %v312
      %v327 = vpack.c.b16 %v315, %v314
      %v328 = vpack.c.b16 %v317, %v316
      %v329 = vpack.c.b16 %v319, %v318
      %v330 = vpack.c.b16 %v321, %v320
      %v331 = vpack.c.b16 %v323, %v322
      %340 = vmatprep.subr.bf16.mxu0 0
      %341 = vmatpush1.bf16.msra.mxu0 %v324
      %342 = vmatprep.subr.bf16.mxu0 0
      %343 = vmatpush1.bf16.msra.mxu0 %v325
      %344 = vmatprep.subr.bf16.mxu0 0
      %345 = vmatpush1.bf16.msra.mxu0 %v326
      %346 = vmatprep.subr.bf16.mxu0 0
      %347 = vmatpush1.bf16.msra.mxu0 %v327
      %348 = vmatprep.subr.bf16.mxu0 0
      %349 = vmatpush1.bf16.msra.mxu0 %v328
      %350 = vmatprep.subr.bf16.mxu0 0
      %351 = vmatpush1.bf16.msra.mxu0 %v329
      %352 = vmatprep.subr.bf16.mxu0 0
      %353 = vmatpush1.bf16.msra.mxu0 %v330
      %354 = vmatprep.subr.bf16.mxu0 0
      %355 = vmatpush1.bf16.msra.mxu0 %v331
      %356 = vmatprep.subr.bf16.mxu0 0
      %357 = vmatpush1.bf16.msra.mxu0 0
      %358 = vmatprep.subr.bf16.mxu0 0
      %359 = vmatpush1.bf16.msra.mxu0 0
      %360 = vmatprep.subr.bf16.mxu0 0
      %361 = vmatpush1.bf16.msra.mxu0 0
      %362 = vmatprep.subr.bf16.mxu0 0
      %363 = vmatpush1.bf16.msra.mxu0 0
      %364 = vmatprep.subr.bf16.mxu0 0
      %365 = vmatpush1.bf16.msra.mxu0 0
      %366 = vmatprep.subr.bf16.mxu0 0
      %367 = vmatpush1.bf16.msra.mxu0 0
      %368 = vmatprep.subr.bf16.mxu0 0
      %369 = vmatpush1.bf16.msra.mxu0 0
      %370 = vmatprep.subr.bf16.mxu0 0
      %371 = vmatpush1.bf16.msra.mxu0 0
      %372 = vmatprep.mubr.bf16.mxu0 0
      %373 = vmatmul.mubr.bf16.gmra.mrb[0].mxu0 %v167
      %v374 = vpop.f32.mrb[0].mxu0
      %v375 = vadd.f32 0.0, %v374
      %v376 = vpop.f32.mrb[0].mxu0
      %v377 = vpop.f32.mrb[0].mxu0
      %v378 = vpop.f32.mrb[0].mxu0
      %379 = vdwg.mxu0
      %v380 = vadd.f32 %v274, %v375
      %vm381 = vcmask 518144
      %382 = vst.msk [vmem:[#allocation2 + $0x1] sm:$0x7] %vm381, %v380
      %s383 = scalar_lea.vmem %s1, 128
      %v384 = vld [vmem:[%s383] sm:$0xf]
      %v385 = vld [vmem:[%s383 + $0x4] sm:$0xf]
      %v386 = vld [vmem:[%s383 + $0x8] sm:$0xf]
      %v387 = vld [vmem:[%s383 + $0xc] sm:$0xf]
      %v388 = vld [vmem:[%s383 + $0x10] sm:$0xf]
      %v389 = vld [vmem:[%s383 + $0x14] sm:$0xf]
      %v390 = vld [vmem:[%s383 + $0x18] sm:$0xf]
      %v391 = vld [vmem:[%s383 + $0x1c] sm:$0xf]
      %v392 = vld [vmem:[%s383 + $0x20] sm:$0xf]
      %v393 = vld [vmem:[%s383 + $0x24] sm:$0xf]
      %v394 = vld [vmem:[%s383 + $0x28] sm:$0xf]
      %v395 = vld [vmem:[%s383 + $0x2c] sm:$0xf]
      %v396 = vld [vmem:[%s383 + $0x30] sm:$0xf]
      %v397 = vld [vmem:[%s383 + $0x34] sm:$0xf]
      %v398 = vld [vmem:[%s383 + $0x38] sm:$0xf]
      %v399 = vld [vmem:[%s383 + $0x3c] sm:$0xf]
      %v416 = vunpack.c.l.b16 %v384
      %v417 = vunpack.c.l.b16 %v385
      %v418 = vunpack.c.l.b16 %v386
      %v419 = vunpack.c.l.b16 %v387
      %v420 = vunpack.c.l.b16 %v388
      %v421 = vunpack.c.l.b16 %v389
      %v422 = vunpack.c.l.b16 %v390
      %v423 = vunpack.c.l.b16 %v391
      %v424 = vunpack.c.l.b16 %v392
      %v425 = vunpack.c.l.b16 %v393
      %v426 = vunpack.c.l.b16 %v394
      %v427 = vunpack.c.l.b16 %v395
      %v428 = vunpack.c.l.b16 %v396
      %v429 = vunpack.c.l.b16 %v397
      %v430 = vunpack.c.l.b16 %v398
      %v431 = vunpack.c.l.b16 %v399
      %v432 = vpack.c.b16 %v417, %v416
      %v433 = vpack.c.b16 %v419, %v418
      %v434 = vpack.c.b16 %v421, %v420
      %v435 = vpack.c.b16 %v423, %v422
      %v436 = vpack.c.b16 %v425, %v424
      %v437 = vpack.c.b16 %v427, %v426
      %v438 = vpack.c.b16 %v429, %v428
      %v439 = vpack.c.b16 %v431, %v430
      %448 = vmatprep.subr.bf16.mxu0 0
      %449 = vmatpush1.bf16.msra.mxu0 %v432
      %450 = vmatprep.subr.bf16.mxu0 0
      %451 = vmatpush1.bf16.msra.mxu0 %v433
      %452 = vmatprep.subr.bf16.mxu0 0
      %453 = vmatpush1.bf16.msra.mxu0 %v434
      %454 = vmatprep.subr.bf16.mxu0 0
      %455 = vmatpush1.bf16.msra.mxu0 %v435
      %456 = vmatprep.subr.bf16.mxu0 0
      %457 = vmatpush1.bf16.msra.mxu0 %v436
      %458 = vmatprep.subr.bf16.mxu0 0
      %459 = vmatpush1.bf16.msra.mxu0 %v437
      %460 = vmatprep.subr.bf16.mxu0 0
      %461 = vmatpush1.bf16.msra.mxu0 %v438
      %462 = vmatprep.subr.bf16.mxu0 0
      %463 = vmatpush1.bf16.msra.mxu0 %v439
      %464 = vmatprep.subr.bf16.mxu0 0
      %465 = vmatpush1.bf16.msra.mxu0 0
      %466 = vmatprep.subr.bf16.mxu0 0
      %467 = vmatpush1.bf16.msra.mxu0 0
      %468 = vmatprep.subr.bf16.mxu0 0
      %469 = vmatpush1.bf16.msra.mxu0 0
      %470 = vmatprep.subr.bf16.mxu0 0
      %471 = vmatpush1.bf16.msra.mxu0 0
      %472 = vmatprep.subr.bf16.mxu0 0
      %473 = vmatpush1.bf16.msra.mxu0 0
      %474 = vmatprep.subr.bf16.mxu0 0
      %475 = vmatpush1.bf16.msra.mxu0 0
      %476 = vmatprep.subr.bf16.mxu0 0
      %477 = vmatpush1.bf16.msra.mxu0 0
      %478 = vmatprep.subr.bf16.mxu0 0
      %479 = vmatpush1.bf16.msra.mxu0 0
      %480 = vmatprep.mubr.bf16.mxu0 0
      %481 = vmatmul.mubr.bf16.gmra.mrb[0].mxu0 %v167
      %v482 = vpop.f32.mrb[0].mxu0
      %v483 = vadd.f32 0.0, %v482
      %v484 = vpop.f32.mrb[0].mxu0
      %v485 = vpop.f32.mrb[0].mxu0
      %v486 = vpop.f32.mrb[0].mxu0
      %487 = vdwg.mxu0
      %s488 = scalar_lea.vmem [#allocation2], 4
      %489 = vst.msk [vmem:[%s488] sm:$0xf] %vm272, %v483
      %v490 = vld [vmem:[%s488 + $0x1] sm:$0x7]
      %s491 = scalar_lea.vmem %s1, 192
      %v492 = vld [vmem:[%s491] sm:$0xf]
      %v493 = vld [vmem:[%s491 + $0x4] sm:$0xf]
      %v494 = vld [vmem:[%s491 + $0x8] sm:$0xf]
      %v495 = vld [vmem:[%s491 + $0xc] sm:$0xf]
      %v496 = vld [vmem:[%s491 + $0x10] sm:$0xf]
      %v497 = vld [vmem:[%s491 + $0x14] sm:$0xf]
      %v498 = vld [vmem:[%s491 + $0x18] sm:$0xf]
      %v499 = vld [vmem:[%s491 + $0x1c] sm:$0xf]
      %v500 = vld [vmem:[%s491 + $0x20] sm:$0xf]
      %v501 = vld [vmem:[%s491 + $0x24] sm:$0xf]
      %v502 = vld [vmem:[%s491 + $0x28] sm:$0xf]
      %v503 = vld [vmem:[%s491 + $0x2c] sm:$0xf]
      %v504 = vld [vmem:[%s491 + $0x30] sm:$0xf]
      %v505 = vld [vmem:[%s491 + $0x34] sm:$0xf]
      %v506 = vld [vmem:[%s491 + $0x38] sm:$0xf]
      %v507 = vld [vmem:[%s491 + $0x3c] sm:$0xf]
      %v524 = vunpack.c.l.b16 %v492
      %v525 = vunpack.c.l.b16 %v493
      %v526 = vunpack.c.l.b16 %v494
      %v527 = vunpack.c.l.b16 %v495
      %v528 = vunpack.c.l.b16 %v496
      %v529 = vunpack.c.l.b16 %v497
      %v530 = vunpack.c.l.b16 %v498
      %v531 = vunpack.c.l.b16 %v499
      %v532 = vunpack.c.l.b16 %v500
      %v533 = vunpack.c.l.b16 %v501
      %v534 = vunpack.c.l.b16 %v502
      %v535 = vunpack.c.l.b16 %v503
      %v536 = vunpack.c.l.b16 %v504
      %v537 = vunpack.c.l.b16 %v505
      %v538 = vunpack.c.l.b16 %v506
      %v539 = vunpack.c.l.b16 %v507
      %v540 = vpack.c.b16 %v525, %v524
      %v541 = vpack.c.b16 %v527, %v526
      %v542 = vpack.c.b16 %v529, %v528
      %v543 = vpack.c.b16 %v531, %v530
      %v544 = vpack.c.b16 %v533, %v532
      %v545 = vpack.c.b16 %v535, %v534
      %v546 = vpack.c.b16 %v537, %v536
      %v547 = vpack.c.b16 %v539, %v538
      %556 = vmatprep.subr.bf16.mxu0 0
      %557 = vmatpush1.bf16.msra.mxu0 %v540
      %558 = vmatprep.subr.bf16.mxu0 0
      %559 = vmatpush1.bf16.msra.mxu0 %v541
      %560 = vmatprep.subr.bf16.mxu0 0
      %561 = vmatpush1.bf16.msra.mxu0 %v542
      %562 = vmatprep.subr.bf16.mxu0 0
      %563 = vmatpush1.bf16.msra.mxu0 %v543
      %564 = vmatprep.subr.bf16.mxu0 0
      %565 = vmatpush1.bf16.msra.mxu0 %v544
      %566 = vmatprep.subr.bf16.mxu0 0
      %567 = vmatpush1.bf16.msra.mxu0 %v545
      %568 = vmatprep.subr.bf16.mxu0 0
      %569 = vmatpush1.bf16.msra.mxu0 %v546
      %570 = vmatprep.subr.bf16.mxu0 0
      %571 = vmatpush1.bf16.msra.mxu0 %v547
      %572 = vmatprep.subr.bf16.mxu0 0
      %573 = vmatpush1.bf16.msra.mxu0 0
      %574 = vmatprep.subr.bf16.mxu0 0
      %575 = vmatpush1.bf16.msra.mxu0 0
      %576 = vmatprep.subr.bf16.mxu0 0
      %577 = vmatpush1.bf16.msra.mxu0 0
      %578 = vmatprep.subr.bf16.mxu0 0
      %579 = vmatpush1.bf16.msra.mxu0 0
      %580 = vmatprep.subr.bf16.mxu0 0
      %581 = vmatpush1.bf16.msra.mxu0 0
      %582 = vmatprep.subr.bf16.mxu0 0
      %583 = vmatpush1.bf16.msra.mxu0 0
      %584 = vmatprep.subr.bf16.mxu0 0
      %585 = vmatpush1.bf16.msra.mxu0 0
      %586 = vmatprep.subr.bf16.mxu0 0
      %587 = vmatpush1.bf16.msra.mxu0 0
      %588 = vmatprep.mubr.bf16.mxu0 0
      %589 = vmatmul.mubr.bf16.gmra.mrb[0].mxu0 %v167
      %v590 = vpop.f32.mrb[0].mxu0
      %v591 = vadd.f32 0.0, %v590
      %v592 = vpop.f32.mrb[0].mxu0
      %v593 = vpop.f32.mrb[0].mxu0
      %v594 = vpop.f32.mrb[0].mxu0
      %595 = vdwg.mxu0
      %v596 = vadd.f32 %v490, %v591
      %597 = vst.msk [vmem:[%s488 + $0x1] sm:$0x7] %vm381, %v596
      %s598 = scalar_lea.vmem %s1, 256
      %v599 = vld [vmem:[%s598] sm:$0xf]
      %v600 = vld [vmem:[%s598 + $0x4] sm:$0xf]
      %v601 = vld [vmem:[%s598 + $0x8] sm:$0xf]
      %v602 = vld [vmem:[%s598 + $0xc] sm:$0xf]
      %v603 = vld [vmem:[%s598 + $0x10] sm:$0xf]
      %v604 = vld [vmem:[%s598 + $0x14] sm:$0xf]
      %v605 = vld [vmem:[%s598 + $0x18] sm:$0xf]
      %v606 = vld [vmem:[%s598 + $0x1c] sm:$0xf]
      %v607 = vld [vmem:[%s598 + $0x20] sm:$0xf]
      %v608 = vld [vmem:[%s598 + $0x24] sm:$0xf]
      %v609 = vld [vmem:[%s598 + $0x28] sm:$0xf]
      %v610 = vld [vmem:[%s598 + $0x2c] sm:$0xf]
      %v611 = vld [vmem:[%s598 + $0x30] sm:$0xf]
      %v612 = vld [vmem:[%s598 + $0x34] sm:$0xf]
      %v613 = vld [vmem:[%s598 + $0x38] sm:$0xf]
      %v614 = vld [vmem:[%s598 + $0x3c] sm:$0xf]
      %v631 = vunpack.c.l.b16 %v599
      %v632 = vunpack.c.l.b16 %v600
      %v633 = vunpack.c.l.b16 %v601
      %v634 = vunpack.c.l.b16 %v602
      %v635 = vunpack.c.l.b16 %v603
      %v636 = vunpack.c.l.b16 %v604
      %v637 = vunpack.c.l.b16 %v605
      %v638 = vunpack.c.l.b16 %v606
      %v639 = vunpack.c.l.b16 %v607
      %v640 = vunpack.c.l.b16 %v608
      %v641 = vunpack.c.l.b16 %v609
      %v642 = vunpack.c.l.b16 %v610
      %v643 = vunpack.c.l.b16 %v611
      %v644 = vunpack.c.l.b16 %v612
      %v645 = vunpack.c.l.b16 %v613
      %v646 = vunpack.c.l.b16 %v614
      %v647 = vpack.c.b16 %v632, %v631
      %v648 = vpack.c.b16 %v634, %v633
      %v649 = vpack.c.b16 %v636, %v635
      %v650 = vpack.c.b16 %v638, %v637
      %v651 = vpack.c.b16 %v640, %v639
      %v652 = vpack.c.b16 %v642, %v641
      %v653 = vpack.c.b16 %v644, %v643
      %v654 = vpack.c.b16 %v646, %v645
      %663 = vmatprep.subr.bf16.mxu0 0
      %664 = vmatpush1.bf16.msra.mxu0 %v647
      %665 = vmatprep.subr.bf16.mxu0 0
      %666 = vmatpush1.bf16.msra.mxu0 %v648
      %667 = vmatprep.subr.bf16.mxu0 0
      %668 = vmatpush1.bf16.msra.mxu0 %v649
      %669 = vmatprep.subr.bf16.mxu0 0
      %670 = vmatpush1.bf16.msra.mxu0 %v650
      %671 = vmatprep.subr.bf16.mxu0 0
      %672 = vmatpush1.bf16.msra.mxu0 %v651
      %673 = vmatprep.subr.bf16.mxu0 0
      %674 = vmatpush1.bf16.msra.mxu0 %v652
      %675 = vmatprep.subr.bf16.mxu0 0
      %676 = vmatpush1.bf16.msra.mxu0 %v653
      %677 = vmatprep.subr.bf16.mxu0 0
      %678 = vmatpush1.bf16.msra.mxu0 %v654
      %679 = vmatprep.subr.bf16.mxu0 0
      %680 = vmatpush1.bf16.msra.mxu0 0
      %681 = vmatprep.subr.bf16.mxu0 0
      %682 = vmatpush1.bf16.msra.mxu0 0
      %683 = vmatprep.subr.bf16.mxu0 0
      %684 = vmatpush1.bf16.msra.mxu0 0
      %685 = vmatprep.subr.bf16.mxu0 0
      %686 = vmatpush1.bf16.msra.mxu0 0
      %687 = vmatprep.subr.bf16.mxu0 0
      %688 = vmatpush1.bf16.msra.mxu0 0
      %689 = vmatprep.subr.bf16.mxu0 0
      %690 = vmatpush1.bf16.msra.mxu0 0
      %691 = vmatprep.subr.bf16.mxu0 0
      %692 = vmatpush1.bf16.msra.mxu0 0
      %693 = vmatprep.subr.bf16.mxu0 0
      %694 = vmatpush1.bf16.msra.mxu0 0
      %695 = vmatprep.mubr.bf16.mxu0 0
      %696 = vmatmul.mubr.bf16.gmra.mrb[0].mxu0 %v167
      %v697 = vpop.f32.mrb[0].mxu0
      %v698 = vadd.f32 0.0, %v697
      %v699 = vpop.f32.mrb[0].mxu0
      %v700 = vpop.f32.mrb[0].mxu0
      %v701 = vpop.f32.mrb[0].mxu0
      %702 = vdwg.mxu0
      %s703 = scalar_lea.vmem [#allocation2], 8
      %704 = vst.msk [vmem:[%s703] sm:$0xf] %vm272, %v698
      %v705 = vld [vmem:[%s703] sm:$0x7]
      %s706 = scalar_lea.vmem %s1, 320
      %v707 = vld [vmem:[%s706] sm:$0xf]
      %v708 = vld [vmem:[%s706 + $0x4] sm:$0xf]
      %v709 = vld [vmem:[%s706 + $0x8] sm:$0xf]
      %v710 = vld [vmem:[%s706 + $0xc] sm:$0xf]
      %v711 = vld [vmem:[%s706 + $0x10] sm:$0xf]
      %v712 = vld [vmem:[%s706 + $0x14] sm:$0xf]
      %v713 = vld [vmem:[%s706 + $0x18] sm:$0xf]
      %v714 = vld [vmem:[%s706 + $0x1c] sm:$0xf]
      %v715 = vld [vmem:[%s706 + $0x20] sm:$0xf]
      %v716 = vld [vmem:[%s706 + $0x24] sm:$0xf]
      %v717 = vld [vmem:[%s706 + $0x28] sm:$0xf]
      %v718 = vld [vmem:[%s706 + $0x2c] sm:$0xf]
      %v719 = vld [vmem:[%s706 + $0x30] sm:$0xf]
      %v720 = vld [vmem:[%s706 + $0x34] sm:$0xf]
      %v721 = vld [vmem:[%s706 + $0x38] sm:$0xf]
      %v722 = vld [vmem:[%s706 + $0x3c] sm:$0xf]
      %v725 = vunpack.c.l.s4 1983009808
      %v726 = vunpack.c.0.s8 %v725
      %v727 = vlaneseq
      %v728 = vshrl.u32 %v727, 7
      %v729 = vsub.s32 %v726, %v728
      %v730 = vrot.slane %v167, %v729
      %v732 = vshrl.u32 %v730, 16
      %v734 = vshll.u32 %v730, 16
      %v736 = vrot.slane %v734, 1
      %v737 = vor.u32 %v732, %v736
      %v755 = vunpack.c.l.b16 %v707
      %v756 = vunpack.c.l.b16 %v708
      %v757 = vunpack.c.l.b16 %v709
      %v758 = vunpack.c.l.b16 %v710
      %v759 = vunpack.c.l.b16 %v711
      %v760 = vunpack.c.l.b16 %v712
      %v761 = vunpack.c.l.b16 %v713
      %v762 = vunpack.c.l.b16 %v714
      %v763 = vunpack.c.l.b16 %v715
      %v764 = vunpack.c.l.b16 %v716
      %v765 = vunpack.c.l.b16 %v717
      %v766 = vunpack.c.l.b16 %v718
      %v767 = vunpack.c.l.b16 %v719
      %v768 = vunpack.c.l.b16 %v720
      %v769 = vunpack.c.l.b16 %v721
      %v770 = vunpack.c.l.b16 %v722
      %v771 = vpack.c.b16 %v756, %v755
      %v772 = vpack.c.b16 %v758, %v757
      %v773 = vpack.c.b16 %v760, %v759
      %v774 = vpack.c.b16 %v762, %v761
      %v775 = vpack.c.b16 %v764, %v763
      %v776 = vpack.c.b16 %v766, %v765
      %v777 = vpack.c.b16 %v768, %v767
      %v778 = vpack.c.b16 %v770, %v769
      %787 = vmatprep.subr.bf16.mxu0 0
      %788 = vmatpush1.bf16.msra.mxu0 %v771
      %789 = vmatprep.subr.bf16.mxu0 0
      %790 = vmatpush1.bf16.msra.mxu0 %v772
      %791 = vmatprep.subr.bf16.mxu0 0
      %792 = vmatpush1.bf16.msra.mxu0 %v773
      %793 = vmatprep.subr.bf16.mxu0 0
      %794 = vmatpush1.bf16.msra.mxu0 %v774
      %795 = vmatprep.subr.bf16.mxu0 0
      %796 = vmatpush1.bf16.msra.mxu0 %v775
      %797 = vmatprep.subr.bf16.mxu0 0
      %798 = vmatpush1.bf16.msra.mxu0 %v776
      %799 = vmatprep.subr.bf16.mxu0 0
      %800 = vmatpush1.bf16.msra.mxu0 %v777
      %801 = vmatprep.subr.bf16.mxu0 0
      %802 = vmatpush1.bf16.msra.mxu0 %v778
      %803 = vmatprep.subr.bf16.mxu0 0
      %804 = vmatpush1.bf16.msra.mxu0 0
      %805 = vmatprep.subr.bf16.mxu0 0
      %806 = vmatpush1.bf16.msra.mxu0 0
      %807 = vmatprep.subr.bf16.mxu0 0
      %808 = vmatpush1.bf16.msra.mxu0 0
      %809 = vmatprep.subr.bf16.mxu0 0
      %810 = vmatpush1.bf16.msra.mxu0 0
      %811 = vmatprep.subr.bf16.mxu0 0
      %812 = vmatpush1.bf16.msra.mxu0 0
      %813 = vmatprep.subr.bf16.mxu0 0
      %814 = vmatpush1.bf16.msra.mxu0 0
      %815 = vmatprep.subr.bf16.mxu0 0
      %816 = vmatpush1.bf16.msra.mxu0 0
      %817 = vmatprep.subr.bf16.mxu0 0
      %818 = vmatpush1.bf16.msra.mxu0 0
      %819 = vmatprep.mubr.bf16.mxu0 0
      %820 = vmatmul.mubr.bf16.gmra.mrb[0].mxu0 %v737
      %v821 = vpop.f32.mrb[0].mxu0
      %v822 = vadd.f32 0.0, %v821
      %v823 = vpop.f32.mrb[0].mxu0
      %v824 = vpop.f32.mrb[0].mxu0
      %v825 = vpop.f32.mrb[0].mxu0
      %826 = vdwg.mxu0
      %v827 = vadd.f32 %v705, %v822
      %828 = vst.msk [vmem:[%s703] sm:$0x7] %vm381, %v827
      %s829 = scalar_lea.vmem %s1, 384
      %v830 = vld [vmem:[%s829] sm:$0xf]
      %v831 = vld [vmem:[%s829 + $0x4] sm:$0xf]
      %v832 = vld [vmem:[%s829 + $0x8] sm:$0xf]
      %v833 = vld [vmem:[%s829 + $0xc] sm:$0xf]
      %v834 = vld [vmem:[%s829 + $0x10] sm:$0xf]
      %v835 = vld [vmem:[%s829 + $0x14] sm:$0xf]
      %v836 = vld [vmem:[%s829 + $0x18] sm:$0xf]
      %v837 = vld [vmem:[%s829 + $0x1c] sm:$0xf]
      %v838 = vld [vmem:[%s829 + $0x20] sm:$0xf]
      %v839 = vld [vmem:[%s829 + $0x24] sm:$0xf]
      %v840 = vld [vmem:[%s829 + $0x28] sm:$0xf]
      %v841 = vld [vmem:[%s829 + $0x2c] sm:$0xf]
      %v842 = vld [vmem:[%s829 + $0x30] sm:$0xf]
      %v843 = vld [vmem:[%s829 + $0x34] sm:$0xf]
      %v844 = vld [vmem:[%s829 + $0x38] sm:$0xf]
      %v845 = vld [vmem:[%s829 + $0x3c] sm:$0xf]
      %v862 = vunpack.c.l.b16 %v830
      %v863 = vunpack.c.l.b16 %v831
      %v864 = vunpack.c.l.b16 %v832
      %v865 = vunpack.c.l.b16 %v833
      %v866 = vunpack.c.l.b16 %v834
      %v867 = vunpack.c.l.b16 %v835
      %v868 = vunpack.c.l.b16 %v836
      %v869 = vunpack.c.l.b16 %v837
      %v870 = vunpack.c.l.b16 %v838
      %v871 = vunpack.c.l.b16 %v839
      %v872 = vunpack.c.l.b16 %v840
      %v873 = vunpack.c.l.b16 %v841
      %v874 = vunpack.c.l.b16 %v842
      %v875 = vunpack.c.l.b16 %v843
      %v876 = vunpack.c.l.b16 %v844
      %v877 = vunpack.c.l.b16 %v845
      %v878 = vpack.c.b16 %v863, %v862
      %v879 = vpack.c.b16 %v865, %v864
      %v880 = vpack.c.b16 %v867, %v866
      %v881 = vpack.c.b16 %v869, %v868
      %v882 = vpack.c.b16 %v871, %v870
      %v883 = vpack.c.b16 %v873, %v872
      %v884 = vpack.c.b16 %v875, %v874
      %v885 = vpack.c.b16 %v877, %v876
      %894 = vmatprep.subr.bf16.mxu0 0
      %895 = vmatpush1.bf16.msra.mxu0 %v878
      %896 = vmatprep.subr.bf16.mxu0 0
      %897 = vmatpush1.bf16.msra.mxu0 %v879
      %898 = vmatprep.subr.bf16.mxu0 0
      %899 = vmatpush1.bf16.msra.mxu0 %v880
      %900 = vmatprep.subr.bf16.mxu0 0
      %901 = vmatpush1.bf16.msra.mxu0 %v881
      %902 = vmatprep.subr.bf16.mxu0 0
      %903 = vmatpush1.bf16.msra.mxu0 %v882
      %904 = vmatprep.subr.bf16.mxu0 0
      %905 = vmatpush1.bf16.msra.mxu0 %v883
      %906 = vmatprep.subr.bf16.mxu0 0
      %907 = vmatpush1.bf16.msra.mxu0 %v884
      %908 = vmatprep.subr.bf16.mxu0 0
      %909 = vmatpush1.bf16.msra.mxu0 %v885
      %910 = vmatprep.subr.bf16.mxu0 0
      %911 = vmatpush1.bf16.msra.mxu0 0
      %912 = vmatprep.subr.bf16.mxu0 0
      %913 = vmatpush1.bf16.msra.mxu0 0
      %914 = vmatprep.subr.bf16.mxu0 0
      %915 = vmatpush1.bf16.msra.mxu0 0
      %916 = vmatprep.subr.bf16.mxu0 0
      %917 = vmatpush1.bf16.msra.mxu0 0
      %918 = vmatprep.subr.bf16.mxu0 0
      %919 = vmatpush1.bf16.msra.mxu0 0
      %920 = vmatprep.subr.bf16.mxu0 0
      %921 = vmatpush1.bf16.msra.mxu0 0
      %922 = vmatprep.subr.bf16.mxu0 0
      %923 = vmatpush1.bf16.msra.mxu0 0
      %924 = vmatprep.subr.bf16.mxu0 0
      %925 = vmatpush1.bf16.msra.mxu0 0
      %926 = vmatprep.mubr.bf16.mxu0 0
      %927 = vmatmul.mubr.bf16.gmra.mrb[0].mxu0 %v167
      %v928 = vpop.f32.mrb[0].mxu0
      %v929 = vadd.f32 0.0, %v928
      %v930 = vpop.f32.mrb[0].mxu0
      %v931 = vpop.f32.mrb[0].mxu0
      %v932 = vpop.f32.mrb[0].mxu0
      %933 = vdwg.mxu0
      %s934 = scalar_lea.vmem [#allocation2], 12
      %935 = vst.msk [vmem:[%s934] sm:$0xf] %vm272, %v929
      %v936 = vld [vmem:[%s934] sm:$0x7]
      %s937 = scalar_lea.vmem %s1, 448
      %v938 = vld [vmem:[%s937] sm:$0xf]
      %v939 = vld [vmem:[%s937 + $0x4] sm:$0xf]
      %v940 = vld [vmem:[%s937 + $0x8] sm:$0xf]
      %v941 = vld [vmem:[%s937 + $0xc] sm:$0xf]
      %v942 = vld [vmem:[%s937 + $0x10] sm:$0xf]
      %v943 = vld [vmem:[%s937 + $0x14] sm:$0xf]
      %v944 = vld [vmem:[%s937 + $0x18] sm:$0xf]
      %v945 = vld [vmem:[%s937 + $0x1c] sm:$0xf]
      %v946 = vld [vmem:[%s937 + $0x20] sm:$0xf]
      %v947 = vld [vmem:[%s937 + $0x24] sm:$0xf]
      %v948 = vld [vmem:[%s937 + $0x28] sm:$0xf]
      %v949 = vld [vmem:[%s937 + $0x2c] sm:$0xf]
      %v950 = vld [vmem:[%s937 + $0x30] sm:$0xf]
      %v951 = vld [vmem:[%s937 + $0x34] sm:$0xf]
      %v952 = vld [vmem:[%s937 + $0x38] sm:$0xf]
      %v953 = vld [vmem:[%s937 + $0x3c] sm:$0xf]
      %v970 = vunpack.c.l.b16 %v938
      %v971 = vunpack.c.l.b16 %v939
      %v972 = vunpack.c.l.b16 %v940
      %v973 = vunpack.c.l.b16 %v941
      %v974 = vunpack.c.l.b16 %v942
      %v975 = vunpack.c.l.b16 %v943
      %v976 = vunpack.c.l.b16 %v944
      %v977 = vunpack.c.l.b16 %v945
      %v978 = vunpack.c.l.b16 %v946
      %v979 = vunpack.c.l.b16 %v947
      %v980 = vunpack.c.l.b16 %v948
      %v981 = vunpack.c.l.b16 %v949
      %v982 = vunpack.c.l.b16 %v950
      %v983 = vunpack.c.l.b16 %v951
      %v984 = vunpack.c.l.b16 %v952
      %v985 = vunpack.c.l.b16 %v953
      %v986 = vpack.c.b16 %v971, %v970
      %v987 = vpack.c.b16 %v973, %v972
      %v988 = vpack.c.b16 %v975, %v974
      %v989 = vpack.c.b16 %v977, %v976
      %v990 = vpack.c.b16 %v979, %v978
      %v991 = vpack.c.b16 %v981, %v980
      %v992 = vpack.c.b16 %v983, %v982
      %v993 = vpack.c.b16 %v985, %v984
      %1002 = vmatprep.subr.bf16.mxu0 0
      %1003 = vmatpush1.bf16.msra.mxu0 %v986
      %1004 = vmatprep.subr.bf16.mxu0 0
      %1005 = vmatpush1.bf16.msra.mxu0 %v987
      %1006 = vmatprep.subr.bf16.mxu0 0
      %1007 = vmatpush1.bf16.msra.mxu0 %v988
      %1008 = vmatprep.subr.bf16.mxu0 0
      %1009 = vmatpush1.bf16.msra.mxu0 %v989
      %1010 = vmatprep.subr.bf16.mxu0 0
      %1011 = vmatpush1.bf16.msra.mxu0 %v990
      %1012 = vmatprep.subr.bf16.mxu0 0
      %1013 = vmatpush1.bf16.msra.mxu0 %v991
      %1014 = vmatprep.subr.bf16.mxu0 0
      %1015 = vmatpush1.bf16.msra.mxu0 %v992
      %1016 = vmatprep.subr.bf16.mxu0 0
      %1017 = vmatpush1.bf16.msra.mxu0 %v993
      %1018 = vmatprep.subr.bf16.mxu0 0
      %1019 = vmatpush1.bf16.msra.mxu0 0
      %1020 = vmatprep.subr.bf16.mxu0 0
      %1021 = vmatpush1.bf16.msra.mxu0 0
      %1022 = vmatprep.subr.bf16.mxu0 0
      %1023 = vmatpush1.bf16.msra.mxu0 0
      %1024 = vmatprep.subr.bf16.mxu0 0
      %1025 = vmatpush1.bf16.msra.mxu0 0
      %1026 = vmatprep.subr.bf16.mxu0 0
      %1027 = vmatpush1.bf16.msra.mxu0 0
      %1028 = vmatprep.subr.bf16.mxu0 0
      %1029 = vmatpush1.bf16.msra.mxu0 0
      %1030 = vmatprep.subr.bf16.mxu0 0
      %1031 = vmatpush1.bf16.msra.mxu0 0
      %1032 = vmatprep.subr.bf16.mxu0 0
      %1033 = vmatpush1.bf16.msra.mxu0 0
      %1034 = vmatprep.mubr.bf16.mxu0 0
      %1035 = vmatmul.mubr.bf16.gmra.mrb[0].mxu0 %v737
      %v1036 = vpop.f32.mrb[0].mxu0
      %v1037 = vadd.f32 0.0, %v1036
      %v1038 = vpop.f32.mrb[0].mxu0
      %v1039 = vpop.f32.mrb[0].mxu0
      %v1040 = vpop.f32.mrb[0].mxu0
      %1041 = vdwg.mxu0
      %v1042 = vadd.f32 %v936, %v1037
      %1043 = vst.msk [vmem:[%s934] sm:$0x7] %vm381, %v1042
      %v1044 = vld [vmem:[#allocation2] sm:$0xf]
      %v1045 = vld [vmem:[%s488] sm:$0xf]
      %v1046 = vmax.f32 %v1044, %v1045
      %v1047 = vld [vmem:[%s703] sm:$0xf]
      %v1048 = vld [vmem:[%s934] sm:$0xf]
      %v1049 = vmax.f32 %v1047, %v1048
      %v1050 = vmax.f32 %v1046, %v1049
      %v1051 = vld [vmem:[%s2] sm:$0x1]
      %v1053 = vlaneseq
      %v1054 = vshrl.u32 %v1053, 7
      %v1055 = vsub.s32 0, %v1054
      %v1056 = vrot.slane %v1051, %v1055
      %v1058 = vadd.f32 %v1050, %v1056
      %v1059 = vmax.f32 %v1058, 0.0
      %v1060 = vpack.c.bf16 %v1059, %v1059
      %vm1061 = vcmask 517120
      %1062 = vst.msk [vmem:[%s165] sm:$0x3] %vm1061, %v1060
      %p1063 = scmp.lt.s32.totalorder %s14, 1
      %s1064 = scalar_select %p1063, %s14, 1
      %s1065 = smul.addr %s1064, 2
      %s1066 = scalar_lea.vmem %s3, %s1065
      // Predicated region
      $region33: #{vae_forward.6} parent=31 // pred_check
        %p1067 = pneg %p100
      $region34: #{vae_forward.6} parent=31 // pred_check_branch
        %1069 = sbr.rel (%p1067) target = $region36
      $region35: #{vae_forward.6} parent=31 // pred_region
        _
      $region36: #{vae_forward.6} parent=31 // pred_fallthru
        _
    $region32: #{vae_forward.6} parent=5 // pred_fallthru
      _
    %p1070 = scmp.le.s32.totalorder 2, %s9
    // Predicated region
    $region37: #{vae_forward.6} parent=5 // pred_check
      %p1071 = pneg %p1070
    $region38: #{vae_forward.6} parent=5 // pred_check_branch
      %1073 = sbr.rel (%p1071) target = $region40
    $region39: #{vae_forward.6} parent=5 // pred_region
      %s1074 = ssub.s32 %s9, 2
      // Predicated region
      $region41: #{vae_forward.6} parent=39 // pred_check
        %p1075 = pneg %p106
      $region42: #{vae_forward.6} parent=39 // pred_check_branch
        %1077 = sbr.rel (%p1075) target = $region44
      $region43: #{vae_forward.6} parent=39 // pred_region
        %p1078 = scmp.lt.s32.totalorder %s15, 1
        %s1079 = scalar_select %p1078, %s15, 1
        %s1080 = smul.addr %s1079, 2
        %s1081 = scalar_lea.vmem %s3, %s1080
      $region44: #{vae_forward.6} parent=39 // pred_fallthru
        _
    $region40: #{vae_forward.6} parent=5 // pred_fallthru
      _
  $region6: #{vae_forward.6} parent=0 // loop_footer
    %s13 = sadd.s32 1, %s9
  $region7: #{vae_forward.6} parent=0 // loop_footer_branch
    %8 = sbr.rel target = $region3
  $region8: #{vae_forward.6} parent=0 // loop_exit
    _

// kernel: vae_forward.9
$region0: #{vae_forward.9}
  #allocation0 [shape = 'u32[]', space=smem, size = 0x4, offset = 0x4, fixed_abs, tag = 'smem constant byte address 0x4 - core index']
  #allocation1 [shape = 'u32[144,128]{1,0:T(1,128)}', space=vmem, size = 0x12000, scoped, tag = 'internal scratch']
  #allocation2 [shape = 'f32[8,64]{1,0:T(8,128)}', space=vmem, size = 0x1000, scoped, tag = 'scratch operand']
  %s0 = inlined_call_operand.vmem [shape: bf16[2,8,64], index: 0, kind: input, shape index: {}]
  %s1 = inlined_call_operand.vmem [shape: bf16[3,64,64], index: 1, kind: input, shape index: {}]
  %s2 = inlined_call_operand.vmem [shape: f32[1,64], index: 2, kind: input, shape index: {}]
  %s3 = inlined_call_operand.vmem [shape: f32[2,2,8,64], index: 3, kind: output, shape index: {}]
  %s4 = sld [smem:[#allocation0]]
  $region45: #{vae_forward.9} parent=0
    _
  %s6 = ssub.s32 1, %s4
  %s7 = scalar_select 0, %s6, %s4
  loop: start=0, step=1, limit=4
  $region2: #{vae_forward.9} parent=0 // loop_pre_header
    _
  $region3: #{vae_forward.9} parent=0 // loop_header
    %s9 = sphi 0, %s13
    %p10 = scmp.ge.s32.totalorder %s9, 4
    %s19 = sphi 0, %s21
    %s22 = sphi 0, %s19
    %s23 = sphi 0, %s22
    %s39 = sphi 0, %s23
    %s43 = sphi 0, %s43
    %s45 = sphi 0, %s43
    %s46 = sphi 0, %s45
    %s60 = sphi 0, %s46
    %s64 = sphi 0, %s64
    %s66 = sphi 0, %s64
    %s67 = sphi 0, %s66
    %s81 = sphi 0, %s67
    %s87 = sphi 0, %s89
    %s90 = sphi 0, %s87
    %s91 = sphi 0, %s90
    %s107 = sphi 0, %s91
  $region4: #{vae_forward.9} parent=0 // loop_header_branch
    %12 = sbr.rel (%p10) target = $region8
  $region5: #{vae_forward.9} parent=0 // loop_body
    %s14 = ssub.s32 %s9, 1
    %s15 = ssub.s32 %s9, 2
    %s16 = sadd.s32 %s9, 1
    %s17 = ssub.s32 %s9, %s16
    %p18 = scmp.eq.s32.totalorder %s17, 0
    %s20 = sadd.s32 %s19, 1
    %s21 = scalar_select %p18, %s19, %s20
    %p24 = pneg %p18
    %p25 = scmp.eq.s32.totalorder %s9, 1
    %p26 = por %p24, %p25
    %p27 = scmp.ne.s32.totalorder %s19, %s22
    %p28 = scmp.eq.s32.totalorder %s9, 0
    %p29 = por %p27, %p28
    %p30 = scmp.ne.s32.totalorder %s19, %s22
    %p31 = scmp.eq.s32.totalorder %s14, 1
    %p32 = por %p30, %p31
    %p33 = scmp.ne.s32.totalorder %s22, %s23
    %p34 = scmp.eq.s32.totalorder %s14, 0
    %p35 = por %p33, %p34
    %p36 = scmp.ne.s32.totalorder %s22, %s23
    %p37 = scmp.eq.s32.totalorder %s15, 1
    %p38 = por %p36, %p37
    %p40 = scmp.ne.s32.totalorder %s23, %s39
    %p41 = scmp.eq.s32.totalorder %s15, 0
    %p42 = por %p40, %p41
    %s44 = sadd.s32 %s43, 1
    %p47 = scmp.eq.s32.totalorder %s9, 1
    %p48 = scmp.ne.s32.totalorder %s43, %s45
    %p49 = scmp.eq.s32.totalorder %s9, 0
    %p50 = por %p48, %p49
    %p51 = scmp.ne.s32.totalorder %s43, %s45
    %p52 = scmp.eq.s32.totalorder %s14, 1
    %p53 = por %p51, %p52
    %p54 = scmp.ne.s32.totalorder %s45, %s46
    %p55 = scmp.eq.s32.totalorder %s14, 0
    %p56 = por %p54, %p55
    %p57 = scmp.ne.s32.totalorder %s45, %s46
    %p58 = scmp.eq.s32.totalorder %s15, 1
    %p59 = por %p57, %p58
    %p61 = scmp.ne.s32.totalorder %s46, %s60
    %p62 = scmp.eq.s32.totalorder %s15, 0
    %p63 = por %p61, %p62
    %s65 = sadd.s32 %s64, 1
    %p68 = scmp.eq.s32.totalorder %s9, 1
    %p69 = scmp.ne.s32.totalorder %s64, %s66
    %p70 = scmp.eq.s32.totalorder %s9, 0
    %p71 = por %p69, %p70
    %p72 = scmp.ne.s32.totalorder %s64, %s66
    %p73 = scmp.eq.s32.totalorder %s14, 1
    %p74 = por %p72, %p73
    %p75 = scmp.ne.s32.totalorder %s66, %s67
    %p76 = scmp.eq.s32.totalorder %s14, 0
    %p77 = por %p75, %p76
    %p78 = scmp.ne.s32.totalorder %s66, %s67
    %p79 = scmp.eq.s32.totalorder %s15, 1
    %p80 = por %p78, %p79
    %p82 = scmp.ne.s32.totalorder %s67, %s81
    %p83 = scmp.eq.s32.totalorder %s15, 0
    %p84 = por %p82, %p83
    %s85 = ssub.s32 %s9, %s16
    %p86 = scmp.eq.s32.totalorder %s85, 0
    %s88 = sadd.s32 %s87, 1
    %s89 = scalar_select %p86, %s87, %s88
    %p92 = pneg %p86
    %p93 = scmp.eq.s32.totalorder %s9, 1
    %p94 = por %p92, %p93
    %p95 = scmp.ne.s32.totalorder %s87, %s90
    %p96 = scmp.eq.s32.totalorder %s9, 0
    %p97 = por %p95, %p96
    %p98 = scmp.ne.s32.totalorder %s87, %s90
    %p99 = scmp.eq.s32.totalorder %s14, 1
    %p100 = por %p98, %p99
    %p101 = scmp.ne.s32.totalorder %s90, %s91
    %p102 = scmp.eq.s32.totalorder %s14, 0
    %p103 = por %p101, %p102
    %p104 = scmp.ne.s32.totalorder %s90, %s91
    %p105 = scmp.eq.s32.totalorder %s15, 1
    %p106 = por %p104, %p105
    %p108 = scmp.ne.s32.totalorder %s91, %s107
    %p109 = scmp.eq.s32.totalorder %s15, 0
    %p110 = por %p108, %p109
    %p111 = scmp.le.s32.totalorder 1, %s9
    %p112 = scmp.lt.s32.totalorder %s9, 3
    %p113 = pnand %p111, %p112
    %p114 = pneg %p113
    // Predicated region
    $region9: #{vae_forward.9} parent=5 // pred_check
      _
    $region10: #{vae_forward.9} parent=5 // pred_check_branch
      %116 = sbr.rel (%p113) target = $region12
    $region11: #{vae_forward.9} parent=5 // pred_region
      %s117 = ssub.s32 %s9, 1
      // Predicated region
      $region13: #{vae_forward.9} parent=11 // pred_check
        %p118 = pneg %p56
      $region14: #{vae_forward.9} parent=11 // pred_check_branch
        %120 = sbr.rel (%p118) target = $region16
      $region15: #{vae_forward.9} parent=11 // pred_region
        _
      $region16: #{vae_forward.9} parent=11 // pred_fallthru
        _
      // Predicated region
      $region17: #{vae_forward.9} parent=11 // pred_check
        %p121 = pneg %p77
      $region18: #{vae_forward.9} parent=11 // pred_check_branch
        %123 = sbr.rel (%p121) target = $region20
      $region19: #{vae_forward.9} parent=11 // pred_region
        _
      $region20: #{vae_forward.9} parent=11 // pred_fallthru
        _
    $region12: #{vae_forward.9} parent=5 // pred_fallthru
      _
    %p124 = scmp.lt.s32.totalorder %s9, 2
    // Predicated region
    $region21: #{vae_forward.9} parent=5 // pred_check
      %p125 = pneg %p124
    $region22: #{vae_forward.9} parent=5 // pred_check_branch
      %127 = sbr.rel (%p125) target = $region24
    $region23: #{vae_forward.9} parent=5 // pred_region
      // Predicated region
      $region25: #{vae_forward.9} parent=23 // pred_check
        %p128 = pneg %p29
      $region26: #{vae_forward.9} parent=23 // pred_check_branch
        %130 = sbr.rel (%p128) target = $region28
      $region27: #{vae_forward.9} parent=23 // pred_region
        %p131 = scmp.lt.s32.totalorder %s9, 1
        %s132 = scalar_select %p131, %s9, 1
        %s133 = smul.addr %s132, 4
        %s134 = scalar_lea.vmem %s0, %s133
      $region28: #{vae_forward.9} parent=23 // pred_fallthru
        _
    $region24: #{vae_forward.9} parent=5 // pred_fallthru
      _
    %p135 = scmp.le.s32.totalorder 1, %s9
    %p136 = scmp.lt.s32.totalorder %s9, 3
    %p137 = pnand %p135, %p136
    %p138 = pneg %p137
    // Predicated region
    $region29: #{vae_forward.9} parent=5 // pred_check
      _
    $region30: #{vae_forward.9} parent=5 // pred_check_branch
      %140 = sbr.rel (%p137) target = $region32
    $region31: #{vae_forward.9} parent=5 // pred_region
      %s141 = ssub.s32 %s9, 1
      %p142 = scmp.lt.s32.totalorder %s14, 1
      %s143 = scalar_select %p142, %s14, 1
      %s144 = smul.addr %s143, 4
      %s145 = scalar_lea.vmem %s0, %s144
      %p146 = pneg %p35
      %p147 = pneg %p32
      %p148 = pneg %p56
      %p149 = pneg %p53
      %p150 = pneg %p77
      %p151 = pneg %p74
      %p152 = pneg %p103
      %p153 = pneg %p100
      %p154 = scmp.lt.s32.totalorder %s14, 1
      %s155 = scalar_select %p154, %s14, 1
      %s156 = smul.addr %s155, 2
      %s157 = smul.addr %s156, 8
      %s158 = scalar_lea.vmem %s3, %s157
      %p159 = scmp.lt.s32.totalorder %s14, 1
      %s160 = scalar_select %p159, %s14, 1
      %s161 = smul.addr %s160, 4
      %s162 = scalar_lea.vmem %s0, %s161
      %p163 = scmp.lt.s32.totalorder %s14, 1
      %s164 = scalar_select %p163, %s14, 1
      %s165 = smul.addr %s164, 2
      %s166 = smul.addr %s165, 8
      %s167 = scalar_lea.vmem %s3, %s166
      %v169 = vld [vmem:[%s162] sm:$0xf]
      %v170 = vld [vmem:[%s1] sm:$0xf]
      %v171 = vld [vmem:[%s1 + $0x4] sm:$0xf]
      %v172 = vld [vmem:[%s1 + $0x8] sm:$0xf]
      %v173 = vld [vmem:[%s1 + $0xc] sm:$0xf]
      %v174 = vld [vmem:[%s1 + $0x10] sm:$0xf]
      %v175 = vld [vmem:[%s1 + $0x14] sm:$0xf]
      %v176 = vld [vmem:[%s1 + $0x18] sm:$0xf]
      %v177 = vld [vmem:[%s1 + $0x1c] sm:$0xf]
      %v178 = vld [vmem:[%s2] sm:$0x1]
      %v180 = vlaneseq
      %v181 = vshrl.u32 %v180, 7
      %v182 = vsub.s32 0, %v181
      %v183 = vrot.slane %v178, %v182
      %v193 = vunpack.c.l.b16 %v170
      %v194 = vunpack.c.l.b16 %v171
      %v195 = vunpack.c.l.b16 %v172
      %v196 = vunpack.c.l.b16 %v173
      %v197 = vunpack.c.l.b16 %v174
      %v198 = vunpack.c.l.b16 %v175
      %v199 = vunpack.c.l.b16 %v176
      %v200 = vunpack.c.l.b16 %v177
      %v201 = vpack.c.b16 %v194, %v193
      %v202 = vpack.c.b16 %v196, %v195
      %v203 = vpack.c.b16 %v198, %v197
      %v204 = vpack.c.b16 %v200, %v199
      %vm209 = vcmask 523264
      %v211 = vsel %vm209, %v169, 0
      %213 = vmatprep.subr.bf16.mxu0 0
      %214 = vmatpush1.bf16.msra.mxu0 %v201
      %215 = vmatprep.subr.bf16.mxu0 0
      %216 = vmatpush1.bf16.msra.mxu0 %v202
      %217 = vmatprep.subr.bf16.mxu0 0
      %218 = vmatpush1.bf16.msra.mxu0 %v203
      %219 = vmatprep.subr.bf16.mxu0 0
      %220 = vmatpush1.bf16.msra.mxu0 %v204
      %221 = vmatprep.subr.bf16.mxu0 0
      %222 = vmatpush1.bf16.msra.mxu0 0
      %223 = vmatprep.subr.bf16.mxu0 0
      %224 = vmatpush1.bf16.msra.mxu0 0
      %225 = vmatprep.subr.bf16.mxu0 0
      %226 = vmatpush1.bf16.msra.mxu0 0
      %227 = vmatprep.subr.bf16.mxu0 0
      %228 = vmatpush1.bf16.msra.mxu0 0
      %229 = vmatprep.subr.bf16.mxu0 0
      %230 = vmatpush1.bf16.msra.mxu0 0
      %231 = vmatprep.subr.bf16.mxu0 0
      %232 = vmatpush1.bf16.msra.mxu0 0
      %233 = vmatprep.subr.bf16.mxu0 0
      %234 = vmatpush1.bf16.msra.mxu0 0
      %235 = vmatprep.subr.bf16.mxu0 0
      %236 = vmatpush1.bf16.msra.mxu0 0
      %237 = vmatprep.subr.bf16.mxu0 0
      %238 = vmatpush1.bf16.msra.mxu0 0
      %239 = vmatprep.subr.bf16.mxu0 0
      %240 = vmatpush1.bf16.msra.mxu0 0
      %241 = vmatprep.subr.bf16.mxu0 0
      %242 = vmatpush1.bf16.msra.mxu0 0
      %243 = vmatprep.subr.bf16.mxu0 0
      %244 = vmatpush1.bf16.msra.mxu0 0
      %245 = vmatprep.mubr.bf16.mxu0 0
      %246 = vmatmul.mubr.bf16.gmra.mrb[0].mxu0 %v211
      %v247 = vpop.f32.mrb[0].mxu0
      %v248 = vadd.f32 %v183, %v247
      %v249 = vpop.f32.mrb[0].mxu0
      %v250 = vpop.f32.mrb[0].mxu0
      %v251 = vpop.f32.mrb[0].mxu0
      %252 = vdwg.mxu0
      %s253 = scalar_lea.vmem %s1, 32
      %v254 = vld [vmem:[%s253] sm:$0xf]
      %v255 = vld [vmem:[%s253 + $0x4] sm:$0xf]
      %v256 = vld [vmem:[%s253 + $0x8] sm:$0xf]
      %v257 = vld [vmem:[%s253 + $0xc] sm:$0xf]
      %v258 = vld [vmem:[%s253 + $0x10] sm:$0xf]
      %v259 = vld [vmem:[%s253 + $0x14] sm:$0xf]
      %v260 = vld [vmem:[%s253 + $0x18] sm:$0xf]
      %v261 = vld [vmem:[%s253 + $0x1c] sm:$0xf]
      %v270 = vunpack.c.l.b16 %v254
      %v271 = vunpack.c.l.b16 %v255
      %v272 = vunpack.c.l.b16 %v256
      %v273 = vunpack.c.l.b16 %v257
      %v274 = vunpack.c.l.b16 %v258
      %v275 = vunpack.c.l.b16 %v259
      %v276 = vunpack.c.l.b16 %v260
      %v277 = vunpack.c.l.b16 %v261
      %v278 = vpack.c.b16 %v271, %v270
      %v279 = vpack.c.b16 %v273, %v272
      %v280 = vpack.c.b16 %v275, %v274
      %v281 = vpack.c.b16 %v277, %v276
      %286 = vmatprep.subr.bf16.mxu0 0
      %287 = vmatpush1.bf16.msra.mxu0 %v278
      %288 = vmatprep.subr.bf16.mxu0 0
      %289 = vmatpush1.bf16.msra.mxu0 %v279
      %290 = vmatprep.subr.bf16.mxu0 0
      %291 = vmatpush1.bf16.msra.mxu0 %v280
      %292 = vmatprep.subr.bf16.mxu0 0
      %293 = vmatpush1.bf16.msra.mxu0 %v281
      %294 = vmatprep.subr.bf16.mxu0 0
      %295 = vmatpush1.bf16.msra.mxu0 0
      %296 = vmatprep.subr.bf16.mxu0 0
      %297 = vmatpush1.bf16.msra.mxu0 0
      %298 = vmatprep.subr.bf16.mxu0 0
      %299 = vmatpush1.bf16.msra.mxu0 0
      %300 = vmatprep.subr.bf16.mxu0 0
      %301 = vmatpush1.bf16.msra.mxu0 0
      %302 = vmatprep.subr.bf16.mxu0 0
      %303 = vmatpush1.bf16.msra.mxu0 0
      %304 = vmatprep.subr.bf16.mxu0 0
      %305 = vmatpush1.bf16.msra.mxu0 0
      %306 = vmatprep.subr.bf16.mxu0 0
      %307 = vmatpush1.bf16.msra.mxu0 0
      %308 = vmatprep.subr.bf16.mxu0 0
      %309 = vmatpush1.bf16.msra.mxu0 0
      %310 = vmatprep.subr.bf16.mxu0 0
      %311 = vmatpush1.bf16.msra.mxu0 0
      %312 = vmatprep.subr.bf16.mxu0 0
      %313 = vmatpush1.bf16.msra.mxu0 0
      %314 = vmatprep.subr.bf16.mxu0 0
      %315 = vmatpush1.bf16.msra.mxu0 0
      %316 = vmatprep.subr.bf16.mxu0 0
      %317 = vmatpush1.bf16.msra.mxu0 0
      %318 = vmatprep.mubr.bf16.mxu0 0
      %319 = vmatmul.mubr.bf16.gmra.mrb[0].mxu0 %v211
      %v320 = vpop.f32.mrb[0].mxu0
      %v321 = vadd.f32 0.0, %v320
      %v322 = vpop.f32.mrb[0].mxu0
      %v323 = vpop.f32.mrb[0].mxu0
      %v324 = vpop.f32.mrb[0].mxu0
      %325 = vdwg.mxu0
      %326 = vst.msk [vmem:[#allocation2] sm:$0xff] %vm209, %v321
      %v327 = vld [vmem:[#allocation2] sm:$0x7f]
      %s328 = scalar_lea.vmem %s1, 64
      %v329 = vld [vmem:[%s328] sm:$0xf]
      %v330 = vld [vmem:[%s328 + $0x4] sm:$0xf]
      %v331 = vld [vmem:[%s328 + $0x8] sm:$0xf]
      %v332 = vld [vmem:[%s328 + $0xc] sm:$0xf]
      %v333 = vld [vmem:[%s328 + $0x10] sm:$0xf]
      %v334 = vld [vmem:[%s328 + $0x14] sm:$0xf]
      %v335 = vld [vmem:[%s328 + $0x18] sm:$0xf]
      %v336 = vld [vmem:[%s328 + $0x1c] sm:$0xf]
      %v338 = vunpack.c.l.b16 %v169
      %v339 = vpack.c.b16 %v338, %v338
      %v341 = vshrl.u32 %v339, 16
      %v343 = vshll.u32 %v339, 16
      %v345 = vrot.slane %v343, 1
      %v346 = vor.u32 %v341, %v345
      %v355 = vunpack.c.l.b16 %v329
      %v356 = vunpack.c.l.b16 %v330
      %v357 = vunpack.c.l.b16 %v331
      %v358 = vunpack.c.l.b16 %v332
      %v359 = vunpack.c.l.b16 %v333
      %v360 = vunpack.c.l.b16 %v334
      %v361 = vunpack.c.l.b16 %v335
      %v362 = vunpack.c.l.b16 %v336
      %v363 = vpack.c.b16 %v356, %v355
      %v364 = vpack.c.b16 %v358, %v357
      %v365 = vpack.c.b16 %v360, %v359
      %v366 = vpack.c.b16 %v362, %v361
      %v372 = vsel %vm209, %v346, 0
      %374 = vmatprep.subr.bf16.mxu0 0
      %375 = vmatpush1.bf16.msra.mxu0 %v363
      %376 = vmatprep.subr.bf16.mxu0 0
      %377 = vmatpush1.bf16.msra.mxu0 %v364
      %378 = vmatprep.subr.bf16.mxu0 0
      %379 = vmatpush1.bf16.msra.mxu0 %v365
      %380 = vmatprep.subr.bf16.mxu0 0
      %381 = vmatpush1.bf16.msra.mxu0 %v366
      %382 = vmatprep.subr.bf16.mxu0 0
      %383 = vmatpush1.bf16.msra.mxu0 0
      %384 = vmatprep.subr.bf16.mxu0 0
      %385 = vmatpush1.bf16.msra.mxu0 0
      %386 = vmatprep.subr.bf16.mxu0 0
      %387 = vmatpush1.bf16.msra.mxu0 0
      %388 = vmatprep.subr.bf16.mxu0 0
      %389 = vmatpush1.bf16.msra.mxu0 0
      %390 = vmatprep.subr.bf16.mxu0 0
      %391 = vmatpush1.bf16.msra.mxu0 0
      %392 = vmatprep.subr.bf16.mxu0 0
      %393 = vmatpush1.bf16.msra.mxu0 0
      %394 = vmatprep.subr.bf16.mxu0 0
      %395 = vmatpush1.bf16.msra.mxu0 0
      %396 = vmatprep.subr.bf16.mxu0 0
      %397 = vmatpush1.bf16.msra.mxu0 0
      %398 = vmatprep.subr.bf16.mxu0 0
      %399 = vmatpush1.bf16.msra.mxu0 0
      %400 = vmatprep.subr.bf16.mxu0 0
      %401 = vmatpush1.bf16.msra.mxu0 0
      %402 = vmatprep.subr.bf16.mxu0 0
      %403 = vmatpush1.bf16.msra.mxu0 0
      %404 = vmatprep.subr.bf16.mxu0 0
      %405 = vmatpush1.bf16.msra.mxu0 0
      %406 = vmatprep.mubr.bf16.mxu0 0
      %407 = vmatmul.mubr.bf16.gmra.mrb[0].mxu0 %v372
      %v408 = vpop.f32.mrb[0].mxu0
      %v409 = vadd.f32 0.0, %v408
      %v410 = vpop.f32.mrb[0].mxu0
      %v411 = vpop.f32.mrb[0].mxu0
      %v412 = vpop.f32.mrb[0].mxu0
      %413 = vdwg.mxu0
      %v414 = vadd.f32 %v327, %v409
      %vm415 = vcmask 522240
      %416 = vst.msk [vmem:[#allocation2] sm:$0x7f] %vm415, %v414
      %v417 = vld [vmem:[#allocation2] sm:$0xff]
      %v418 = vld [vmem:[%s2] sm:$0x1]
      %v420 = vlaneseq
      %v421 = vshrl.u32 %v420, 7
      %v422 = vsub.s32 0, %v421
      %v423 = vrot.slane %v418, %v422
      %v425 = vadd.f32 %v417, %v423
      %v426 = vxor.u32 %v248, 2147483648
      %v427 = vmul.f32 %v426, 1.442695
      %v428 = vpow.pop %v427
      %v429 = vadd.f32 %v428, 1.0
      %v430 = vrcp.pop %v429
      %v431 = vmul.f32 1.0, %v430
      %v432 = vxor.u32 %v425, 2147483648
      %v433 = vmul.f32 %v432, 1.442695
      %v434 = vpow.pop %v433
      %v435 = vadd.f32 %v434, 1.0
      %v436 = vrcp.pop %v435
      %v437 = vmul.f32 1.0, %v436
      %438 = vst.msk [vmem:[%s167] sm:$0xff] %vm209, %v431
      %s439 = scalar_lea.vmem %s167, 8
      %440 = vst.msk [vmem:[%s439] sm:$0xff] %vm209, %v437
      %p441 = scmp.lt.s32.totalorder %s14, 1
      %s442 = scalar_select %p441, %s14, 1
      %s443 = smul.addr %s442, 2
      %s444 = smul.addr %s443, 8
      %s445 = scalar_lea.vmem %s3, %s444
      // Predicated region
      $region33: #{vae_forward.9} parent=31 // pred_check
        %p446 = pneg %p100
      $region34: #{vae_forward.9} parent=31 // pred_check_branch
        %448 = sbr.rel (%p446) target = $region36
      $region35: #{vae_forward.9} parent=31 // pred_region
        _
      $region36: #{vae_forward.9} parent=31 // pred_fallthru
        _
    $region32: #{vae_forward.9} parent=5 // pred_fallthru
      _
    %p449 = scmp.le.s32.totalorder 2, %s9
    // Predicated region
    $region37: #{vae_forward.9} parent=5 // pred_check
      %p450 = pneg %p449
    $region38: #{vae_forward.9} parent=5 // pred_check_branch
      %452 = sbr.rel (%p450) target = $region40
    $region39: #{vae_forward.9} parent=5 // pred_region
      %s453 = ssub.s32 %s9, 2
      // Predicated region
      $region41: #{vae_forward.9} parent=39 // pred_check
        %p454 = pneg %p106
      $region42: #{vae_forward.9} parent=39 // pred_check_branch
        %456 = sbr.rel (%p454) target = $region44
      $region43: #{vae_forward.9} parent=39 // pred_region
        %p457 = scmp.lt.s32.totalorder %s15, 1
        %s458 = scalar_select %p457, %s15, 1
        %s459 = smul.addr %s458, 2
        %s460 = smul.addr %s459, 8
        %s461 = scalar_lea.vmem %s3, %s460
      $region44: #{vae_forward.9} parent=39 // pred_fallthru
        _
    $region40: #{vae_forward.9} parent=5 // pred_fallthru
      _
  $region6: #{vae_forward.9} parent=0 // loop_footer
    %s13 = sadd.s32 1, %s9
  $region7: #{vae_forward.9} parent=0 // loop_footer_branch
    %8 = sbr.rel target = $region3
  $region8: #{vae_forward.9} parent=0 // loop_exit
    _

</llo_original>
